<compile_context>
chip_gen: v6e
topology: v6e:2x2x1
jax: 0.10.0
libtpu: 0.0.40
codegen_flags: <defaults>
</compile_context>

<pallas_src>
import functools
import math

import jax
import jax.numpy as jnp
from jax.experimental import pallas as pl
from jax.experimental.pallas import tpu as pltpu


# ----------------------------------------------------------------------------
# Pallas kernel: one fused SAGEConv('mean') layer, tiled with a reduction axis.
# ----------------------------------------------------------------------------
def _sage_layer_kernel(a_ref, xk_ref, xi_ref, w_ref, b_ref, o_ref, acc_ref,
                       *, fin, apply_relu):
    """Grid = (row tile i, adjacency-column tile k); k is the reduction axis.

    acc_ref : f32 VMEM scratch (tm, 2*fin) = [ neighbor-mean accumulator | self feats ]
    """
    k = pl.program_id(1)

    @pl.when(k == 0)
    def _init():
        acc_ref[...] = jnp.zeros_like(acc_ref)
        acc_ref[:, fin:] = xi_ref[...].astype(jnp.float32)   # self features (resident per i)

    # Mean aggregation: partial (A_tile @ X_tile) on the MXU, bf16 in, f32 accumulate.
    acc_ref[:, :fin] += jnp.dot(a_ref[...], xk_ref[...],
                                preferred_element_type=jnp.float32)

    @pl.when(k == pl.num_programs(1) - 1)
    def _finalize():
        cat = acc_ref[...].astype(jnp.bfloat16)               # (tm, 2*fin)
        # Fused fc_neigh + fc_self : [neigh | x] @ [W_neigh ; W_self]  (single MXU pass)
        out = jnp.dot(cat, w_ref[...],
                      preferred_element_type=jnp.float32) + b_ref[...]
        if apply_relu:
            out = jnp.maximum(out, 0.0)
        o_ref[...] = out.astype(o_ref.dtype)


def sage_layer(a, x, w_cat, bias, *, apply_relu, out_dtype, tm=256, tk=256):
    """One SAGEConv('mean') layer. All inputs pre-padded: N % tm == N % tk == 0,
    feature dims multiples of 128, a/x/w_cat in bf16, bias in f32."""
    n = a.shape[0]
    fin = x.shape[1]
    fout = w_cat.shape[1]
    assert n % tm == 0 and n % tk == 0
    assert fin % 128 == 0 and fout % 128 == 0
    assert w_cat.shape[0] == 2 * fin

    grid = (n // tm, n // tk)
    kernel = functools.partial(_sage_layer_kernel, fin=fin, apply_relu=apply_relu)
    return pl.pallas_call(
        kernel,
        out_shape=jax.ShapeDtypeStruct((n, fout), out_dtype),
        grid_spec=pltpu.PrefetchScalarGridSpec(
            num_scalar_prefetch=0,
            grid=grid,
            in_specs=[
                pl.BlockSpec((tm, tk), lambda i, k: (i, k)),         # A tile (streamed)
                pl.BlockSpec((tk, fin), lambda i, k: (k, 0)),        # X rows for aggregation
                pl.BlockSpec((tm, fin), lambda i, k: (i, 0)),        # X rows for fc_self (resident per i)
                pl.BlockSpec((2 * fin, fout), lambda i, k: (0, 0)),  # W_cat (resident)
                pl.BlockSpec((1, fout), lambda i, k: (0, 0)),        # bias  (resident)
            ],
            out_specs=pl.BlockSpec((tm, fout), lambda i, k: (i, 0)),
            scratch_shapes=[pltpu.VMEM((tm, 2 * fin), jnp.float32)],
        ),
        compiler_params=pltpu.CompilerParams(
            dimension_semantics=("parallel", "arbitrary"),
            vmem_limit_bytes=48 * 1024 * 1024,   # safe on v5e/v6e (128 MiB) and v7x (64 MiB)
        ),
    )(a, x, x, w_cat, bias)


# ----------------------------------------------------------------------------
# NodeClassifier forward: conv1 -> ReLU -> conv2  (padding / packing in JAX)
# ----------------------------------------------------------------------------
def _round_up(v, m):
    return ((v + m - 1) // m) * m


def _pad2d(arr, rows, cols, dtype):
    return jnp.zeros((rows, cols), dtype).at[:arr.shape[0], :arr.shape[1]].set(
        arr.astype(dtype))


def node_classifier_forward(a_mean, x, params, *, tm=256, tk=256):
    n, fin = x.shape
    hid = params["w_neigh1"].shape[1]
    out_feats = params["w_neigh2"].shape[1]

    n_pad = _round_up(n, math.lcm(tm, tk))
    fin_p = _round_up(max(fin, 128), 128)
    hid_p = _round_up(max(hid, 128), 128)
    out_p = _round_up(max(out_feats, 128), 128)   # lane-dense output, sliced afterwards

    a_p = _pad2d(a_mean, n_pad, n_pad, jnp.bfloat16)
    x_p = _pad2d(x, n_pad, fin_p, jnp.bfloat16)

    def pack(w_neigh, w_self, b, fi_p, fo_p):
        fi, fo = w_neigh.shape
        w_cat = jnp.zeros((2 * fi_p, fo_p), jnp.bfloat16)
        w_cat = w_cat.at[:fi, :fo].set(w_neigh.astype(jnp.bfloat16))
        w_cat = w_cat.at[fi_p:fi_p + fi, :fo].set(w_self.astype(jnp.bfloat16))
        b_p = jnp.zeros((1, fo_p), jnp.float32).at[0, :fo].set(b.astype(jnp.float32))
        return w_cat, b_p

    w1, b1 = pack(params["w_neigh1"], params["w_self1"], params["b1"], fin_p, hid_p)
    w2, b2 = pack(params["w_neigh2"], params["w_self2"], params["b2"], hid_p, out_p)

    h = sage_layer(a_p, x_p, w1, b1, apply_relu=True,
                   out_dtype=jnp.bfloat16, tm=tm, tk=tk)
    logits = sage_layer(a_p, h, w2, b2, apply_relu=False,
                        out_dtype=jnp.float32, tm=tm, tk=tk)
    return logits[:n, :out_feats]


# ----------------------------------------------------------------------------
# Parameter / graph construction and references
# ----------------------------------------------------------------------------
def init_params(key, in_feats, hidden_feats, out_feats):
    k = jax.random.split(key, 6)

    def glorot(rng, fan_in, fan_out):
        scale = jnp.sqrt(2.0 / (fan_in + fan_out))
        return scale * jax.random.normal(rng, (fan_in, fan_out), jnp.float32)

    return {
        "w_neigh1": glorot(k[0], in_feats, hidden_feats),
        "w_self1":  glorot(k[1], in_feats, hidden_feats),
        "b1":       0.1 * jax.random.normal(k[2], (hidden_feats,), jnp.float32),
        "w_neigh2": glorot(k[3], hidden_feats, out_feats),
        "w_self2":  glorot(k[4], hidden_feats, out_feats),
        "b2":       0.1 * jax.random.normal(k[5], (out_feats,), jnp.float32),
    }


def make_mean_adjacency(key, num_nodes, edge_prob=0.3):
    # A[i, j] = 1 if edge j -> i (message from j to i); no self loops.
    adj = (jax.random.uniform(key, (num_nodes, num_nodes)) < edge_prob).astype(jnp.float32)
    adj = adj * (1.0 - jnp.eye(num_nodes, dtype=jnp.float32))
    deg_in = jnp.sum(adj, axis=1, keepdims=True)
    return adj / jnp.maximum(deg_in, 1.0)


def reference_forward_f32(a, x, params):
    hp = jax.lax.Precision.HIGHEST
    h = jnp.maximum(jnp.dot(jnp.dot(a, x, precision=hp), params["w_neigh1"], precision=hp)
                    + jnp.dot(x, params["w_self1"], precision=hp) + params["b1"], 0.0)
    return (jnp.dot(jnp.dot(a, h, precision=hp), params["w_neigh2"], precision=hp)
            + jnp.dot(h, params["w_self2"], precision=hp) + params["b2"])


def reference_forward_bf16_model(a, x, params):
    # Mirrors the kernel's bf16 input quantization with f32 accumulation.
    hp = jax.lax.Precision.HIGHEST
    q = lambda v: v.astype(jnp.bfloat16).astype(jnp.float32)
    a_q = q(a)

    def layer(xin, wn, ws, b, relu):
        xq = q(xin)
        neigh = q(jnp.dot(a_q, xq, precision=hp))          # f32 acc -> bf16 before fc
        out = (jnp.dot(neigh, q(wn), precision=hp)
               + jnp.dot(xq, q(ws), precision=hp) + b)
        return jnp.maximum(out, 0.0) if relu else out

    h = layer(x, params["w_neigh1"], params["w_self1"], params["b1"], True)
    h = h.astype(jnp.bfloat16).astype(jnp.float32)          # layer-1 output stored bf16
    return layer(h, params["w_neigh2"], params["w_self2"], params["b2"], False)


if __name__ == "__main__":
    # Small shapes consistent with the module defaults (137 -> 256 -> 2).
    N = 300
    IN_FEATS = 137
    HIDDEN_FEATS = 256
    OUT_FEATS = 2

    key = jax.random.PRNGKey(0)
    k_graph, k_feat, k_param = jax.random.split(key, 3)

    a_mean = make_mean_adjacency(k_graph, N, edge_prob=0.3)
    x = jax.random.normal(k_feat, (N, IN_FEATS), jnp.float32)
    params = init_params(k_param, IN_FEATS, HIDDEN_FEATS, OUT_FEATS)

    fwd = jax.jit(node_classifier_forward)
    logits = jax.block_until_ready(fwd(a_mean, x, params))
    assert logits.shape == (N, OUT_FEATS)

    # Tight check against a reference that models the kernel's bf16-input numerics.
    ref_model = reference_forward_bf16_model(a_mean, x, params)
    assert jnp.allclose(logits, ref_model, atol=1e-2, rtol=1e-2), \
        float(jnp.max(jnp.abs(logits - ref_model)))

    # Loose sanity check against the full-f32 reference (bf16 MXU inputs are intended).
    ref_f32 = reference_forward_f32(a_mean, x, params)
    assert jnp.allclose(logits, ref_f32, atol=2.5e-1, rtol=1e-1), \
        float(jnp.max(jnp.abs(logits - ref_f32)))

    print("KERNEL_OK")
</pallas_src>

<mosaic_0001>
module attributes {stable_mosaic.version = 11 : i64} {
  func.func @_sage_layer_kernel(%arg0: i32, %arg1: i32, %arg2: memref<256x256xbf16, #tpu.memory_space<vmem>>, %arg3: memref<256x256xbf16, #tpu.memory_space<vmem>>, %arg4: memref<256x256xbf16, #tpu.memory_space<vmem>>, %arg5: memref<512x256xbf16, #tpu.memory_space<vmem>>, %arg6: memref<1x256xf32, #tpu.memory_space<vmem>>, %arg7: memref<256x256xbf16, #tpu.memory_space<vmem>>, %arg8: memref<256x512xf32, #tpu.memory_space<vmem>>) attributes {dimension_semantics = [#tpu.dimension_semantics<parallel>, #tpu.dimension_semantics<arbitrary>], iteration_bounds = array<i64: 2, 2>, scalar_prefetch = 0 : i64, scratch_operands = 1 : i64, tpu.core_type = #tpu.core_type<tc>, window_params = [{transform_indices = @transform_0, window_bounds = array<i64: 256, 256>}, {transform_indices = @transform_1, window_bounds = array<i64: 256, 256>}, {transform_indices = @transform_2, window_bounds = array<i64: 256, 256>}, {pipeline_mode = #tpu.pipeline_mode<synchronous>, transform_indices = @transform_3, window_bounds = array<i64: 512, 256>}, {pipeline_mode = #tpu.pipeline_mode<synchronous>, transform_indices = @transform_4, window_bounds = array<i64: 1, 256>}, {transform_indices = @transform_5, window_bounds = array<i64: 256, 256>}]} {
    %c0_i32 = arith.constant 0 : i32
    %0 = arith.cmpi eq, %arg1, %c0_i32 : i32
    %1 = arith.extui %0 : i1 to i32
    %c0_i32_0 = arith.constant 0 : i32
    %2 = arith.cmpi ne, %1, %c0_i32_0 : i32
    scf.if %2 {
      %cst_9 = arith.constant 0.000000e+00 : f32
      %12 = vector.broadcast %cst_9 : f32 to vector<256x512xf32>
      %c0_10 = arith.constant 0 : index
      %c0_11 = arith.constant 0 : index
      %13 = vector.load %arg8[%c0_10, %c0_11] : memref<256x512xf32, #tpu.memory_space<vmem>>, vector<256x512xf32>
      tpu.vector_store %arg8[%c0_10, %c0_11], %12 {strides = array<i32>} : memref<256x512xf32, #tpu.memory_space<vmem>>, vector<256x512xf32>,
      %c0_12 = arith.constant 0 : index
      %c0_13 = arith.constant 0 : index
      %14 = vector.load %arg4[%c0_12, %c0_13] : memref<256x256xbf16, #tpu.memory_space<vmem>>, vector<256x256xbf16>
      %15 = arith.extf %14 : vector<256x256xbf16> to vector<256x256xf32>
      %c0_14 = arith.constant 0 : index
      %c256 = arith.constant 256 : index
      %16 = vector.load %arg8[%c0_14, %c256] : memref<256x512xf32, #tpu.memory_space<vmem>>, vector<256x256xf32>
      tpu.vector_store %arg8[%c0_14, %c256], %15 {strides = array<i32>} : memref<256x512xf32, #tpu.memory_space<vmem>>, vector<256x256xf32>,
    } else {
    }
    %c0 = arith.constant 0 : index
    %c0_1 = arith.constant 0 : index
    %3 = vector.load %arg8[%c0, %c0_1] : memref<256x512xf32, #tpu.memory_space<vmem>>, vector<256x256xf32>
    %c0_2 = arith.constant 0 : index
    %c0_3 = arith.constant 0 : index
    %4 = vector.load %arg2[%c0_2, %c0_3] : memref<256x256xbf16, #tpu.memory_space<vmem>>, vector<256x256xbf16>
    %c0_4 = arith.constant 0 : index
    %c0_5 = arith.constant 0 : index
    %5 = vector.load %arg3[%c0_4, %c0_5] : memref<256x256xbf16, #tpu.memory_space<vmem>>, vector<256x256xbf16>
    %cst = arith.constant dense<0.000000e+00> : vector<256x256xf32>
    %6 = tpu.matmul %4, %5, %cst {dimension_numbers = #tpu.dot_dimension_numbers<[1], [0], [0], [1], [0, 0, 1, 1], [], []>} : vector<256x256xbf16>, vector<256x256xbf16>, vector<256x256xf32> -> vector<256x256xf32>
    %7 = arith.addf %3, %6 : vector<256x256xf32>
    %c0_6 = arith.constant 0 : index
    %c0_7 = arith.constant 0 : index
    %8 = vector.load %arg8[%c0_6, %c0_7] : memref<256x512xf32, #tpu.memory_space<vmem>>, vector<256x256xf32>
    tpu.vector_store %arg8[%c0_6, %c0_7], %7 {strides = array<i32>} : memref<256x512xf32, #tpu.memory_space<vmem>>, vector<256x256xf32>,
    %c1_i32 = arith.constant 1 : i32
    %9 = arith.cmpi eq, %arg1, %c1_i32 : i32
    %10 = arith.extui %9 : i1 to i32
    %c0_i32_8 = arith.constant 0 : i32
    %11 = arith.cmpi ne, %10, %c0_i32_8 : i32
    scf.if %11 {
      %c0_9 = arith.constant 0 : index
      %c0_10 = arith.constant 0 : index
      %12 = vector.load %arg8[%c0_9, %c0_10] : memref<256x512xf32, #tpu.memory_space<vmem>>, vector<256x512xf32>
      %13 = arith.truncf %12 : vector<256x512xf32> to vector<256x512xbf16>
      %c0_11 = arith.constant 0 : index
      %c0_12 = arith.constant 0 : index
      %14 = vector.load %arg5[%c0_11, %c0_12] : memref<512x256xbf16, #tpu.memory_space<vmem>>, vector<512x256xbf16>
      %cst_13 = arith.constant dense<0.000000e+00> : vector<256x256xf32>
      %15 = tpu.matmul %13, %14, %cst_13 {dimension_numbers = #tpu.dot_dimension_numbers<[1], [0], [0], [1], [0, 0, 1, 1], [], []>} : vector<256x512xbf16>, vector<512x256xbf16>, vector<256x256xf32> -> vector<256x256xf32>
      %c0_14 = arith.constant 0 : index
      %c0_15 = arith.constant 0 : index
      %16 = vector.load %arg6[%c0_14, %c0_15] : memref<1x256xf32, #tpu.memory_space<vmem>>, vector<1x256xf32>
      %17 = vector.broadcast %16 : vector<1x256xf32> to vector<256x256xf32>
      %18 = arith.addf %15, %17 : vector<256x256xf32>
      %cst_16 = arith.constant 0.000000e+00 : f32
      %19 = vector.broadcast %cst_16 : f32 to vector<256x256xf32>
      %20 = arith.maximumf %18, %19 : vector<256x256xf32>
      %21 = arith.truncf %20 : vector<256x256xf32> to vector<256x256xbf16>
      %c0_17 = arith.constant 0 : index
      %c0_18 = arith.constant 0 : index
      %22 = vector.load %arg7[%c0_17, %c0_18] : memref<256x256xbf16, #tpu.memory_space<vmem>>, vector<256x256xbf16>
      tpu.vector_store %arg7[%c0_17, %c0_18], %21 {strides = array<i32>} : memref<256x256xbf16, #tpu.memory_space<vmem>>, vector<256x256xbf16>,
    } else {
    }
    return
  }
  func.func @transform_0(%arg0: i32, %arg1: i32) -> (i32, i32) {
    %c0_i32 = arith.constant 0 : i32
    return %arg0, %arg1 : i32, i32
  }
  func.func @transform_1(%arg0: i32, %arg1: i32) -> (i32, i32) {
    %c0_i32 = arith.constant 0 : i32
    %c0_i32_0 = arith.constant 0 : i32
    return %arg1, %c0_i32 : i32, i32
  }
  func.func @transform_2(%arg0: i32, %arg1: i32) -> (i32, i32) {
    %c0_i32 = arith.constant 0 : i32
    %c0_i32_0 = arith.constant 0 : i32
    return %arg0, %c0_i32 : i32, i32
  }
  func.func @transform_3(%arg0: i32, %arg1: i32) -> (i32, i32) {
    %c0_i32 = arith.constant 0 : i32
    %c0_i32_0 = arith.constant 0 : i32
    %c0_i32_1 = arith.constant 0 : i32
    return %c0_i32, %c0_i32_0 : i32, i32
  }
  func.func @transform_4(%arg0: i32, %arg1: i32) -> (i32, i32) {
    %c0_i32 = arith.constant 0 : i32
    %c0_i32_0 = arith.constant 0 : i32
    %c0_i32_1 = arith.constant 0 : i32
    return %c0_i32, %c0_i32_0 : i32, i32
  }
  func.func @transform_5(%arg0: i32, %arg1: i32) -> (i32, i32) {
    %c0_i32 = arith.constant 0 : i32
    %c0_i32_0 = arith.constant 0 : i32
    return %arg0, %c0_i32 : i32, i32
  }
}

module attributes {stable_mosaic.version = 11 : i64} {
  func.func @_sage_layer_kernel(%arg0: i32, %arg1: i32, %arg2: memref<256x256xbf16, #tpu.memory_space<vmem>>, %arg3: memref<256x256xbf16, #tpu.memory_space<vmem>>, %arg4: memref<256x256xbf16, #tpu.memory_space<vmem>>, %arg5: memref<512x128xbf16, #tpu.memory_space<vmem>>, %arg6: memref<1x128xf32, #tpu.memory_space<vmem>>, %arg7: memref<256x128xf32, #tpu.memory_space<vmem>>, %arg8: memref<256x512xf32, #tpu.memory_space<vmem>>) attributes {dimension_semantics = [#tpu.dimension_semantics<parallel>, #tpu.dimension_semantics<arbitrary>], iteration_bounds = array<i64: 2, 2>, scalar_prefetch = 0 : i64, scratch_operands = 1 : i64, tpu.core_type = #tpu.core_type<tc>, window_params = [{transform_indices = @transform_0, window_bounds = array<i64: 256, 256>}, {transform_indices = @transform_1, window_bounds = array<i64: 256, 256>}, {transform_indices = @transform_2, window_bounds = array<i64: 256, 256>}, {pipeline_mode = #tpu.pipeline_mode<synchronous>, transform_indices = @transform_3, window_bounds = array<i64: 512, 128>}, {pipeline_mode = #tpu.pipeline_mode<synchronous>, transform_indices = @transform_4, window_bounds = array<i64: 1, 128>}, {transform_indices = @transform_5, window_bounds = array<i64: 256, 128>}]} {
    %c0_i32 = arith.constant 0 : i32
    %0 = arith.cmpi eq, %arg1, %c0_i32 : i32
    %1 = arith.extui %0 : i1 to i32
    %c0_i32_0 = arith.constant 0 : i32
    %2 = arith.cmpi ne, %1, %c0_i32_0 : i32
    scf.if %2 {
      %cst_9 = arith.constant 0.000000e+00 : f32
      %12 = vector.broadcast %cst_9 : f32 to vector<256x512xf32>
      %c0_10 = arith.constant 0 : index
      %c0_11 = arith.constant 0 : index
      %13 = vector.load %arg8[%c0_10, %c0_11] : memref<256x512xf32, #tpu.memory_space<vmem>>, vector<256x512xf32>
      tpu.vector_store %arg8[%c0_10, %c0_11], %12 {strides = array<i32>} : memref<256x512xf32, #tpu.memory_space<vmem>>, vector<256x512xf32>,
      %c0_12 = arith.constant 0 : index
      %c0_13 = arith.constant 0 : index
      %14 = vector.load %arg4[%c0_12, %c0_13] : memref<256x256xbf16, #tpu.memory_space<vmem>>, vector<256x256xbf16>
      %15 = arith.extf %14 : vector<256x256xbf16> to vector<256x256xf32>
      %c0_14 = arith.constant 0 : index
      %c256 = arith.constant 256 : index
      %16 = vector.load %arg8[%c0_14, %c256] : memref<256x512xf32, #tpu.memory_space<vmem>>, vector<256x256xf32>
      tpu.vector_store %arg8[%c0_14, %c256], %15 {strides = array<i32>} : memref<256x512xf32, #tpu.memory_space<vmem>>, vector<256x256xf32>,
    } else {
    }
    %c0 = arith.constant 0 : index
    %c0_1 = arith.constant 0 : index
    %3 = vector.load %arg8[%c0, %c0_1] : memref<256x512xf32, #tpu.memory_space<vmem>>, vector<256x256xf32>
    %c0_2 = arith.constant 0 : index
    %c0_3 = arith.constant 0 : index
    %4 = vector.load %arg2[%c0_2, %c0_3] : memref<256x256xbf16, #tpu.memory_space<vmem>>, vector<256x256xbf16>
    %c0_4 = arith.constant 0 : index
    %c0_5 = arith.constant 0 : index
    %5 = vector.load %arg3[%c0_4, %c0_5] : memref<256x256xbf16, #tpu.memory_space<vmem>>, vector<256x256xbf16>
    %cst = arith.constant dense<0.000000e+00> : vector<256x256xf32>
    %6 = tpu.matmul %4, %5, %cst {dimension_numbers = #tpu.dot_dimension_numbers<[1], [0], [0], [1], [0, 0, 1, 1], [], []>} : vector<256x256xbf16>, vector<256x256xbf16>, vector<256x256xf32> -> vector<256x256xf32>
    %7 = arith.addf %3, %6 : vector<256x256xf32>
    %c0_6 = arith.constant 0 : index
    %c0_7 = arith.constant 0 : index
    %8 = vector.load %arg8[%c0_6, %c0_7] : memref<256x512xf32, #tpu.memory_space<vmem>>, vector<256x256xf32>
    tpu.vector_store %arg8[%c0_6, %c0_7], %7 {strides = array<i32>} : memref<256x512xf32, #tpu.memory_space<vmem>>, vector<256x256xf32>,
    %c1_i32 = arith.constant 1 : i32
    %9 = arith.cmpi eq, %arg1, %c1_i32 : i32
    %10 = arith.extui %9 : i1 to i32
    %c0_i32_8 = arith.constant 0 : i32
    %11 = arith.cmpi ne, %10, %c0_i32_8 : i32
    scf.if %11 {
      %c0_9 = arith.constant 0 : index
      %c0_10 = arith.constant 0 : index
      %12 = vector.load %arg8[%c0_9, %c0_10] : memref<256x512xf32, #tpu.memory_space<vmem>>, vector<256x512xf32>
      %13 = arith.truncf %12 : vector<256x512xf32> to vector<256x512xbf16>
      %c0_11 = arith.constant 0 : index
      %c0_12 = arith.constant 0 : index
      %14 = vector.load %arg5[%c0_11, %c0_12] : memref<512x128xbf16, #tpu.memory_space<vmem>>, vector<512x128xbf16>
      %cst_13 = arith.constant dense<0.000000e+00> : vector<256x128xf32>
      %15 = tpu.matmul %13, %14, %cst_13 {dimension_numbers = #tpu.dot_dimension_numbers<[1], [0], [0], [1], [0, 0, 1, 1], [], []>} : vector<256x512xbf16>, vector<512x128xbf16>, vector<256x128xf32> -> vector<256x128xf32>
      %c0_14 = arith.constant 0 : index
      %c0_15 = arith.constant 0 : index
      %16 = vector.load %arg6[%c0_14, %c0_15] : memref<1x128xf32, #tpu.memory_space<vmem>>, vector<1x128xf32>
      %17 = vector.broadcast %16 : vector<1x128xf32> to vector<256x128xf32>
      %18 = arith.addf %15, %17 : vector<256x128xf32>
      %c0_16 = arith.constant 0 : index
      %c0_17 = arith.constant 0 : index
      %19 = vector.load %arg7[%c0_16, %c0_17] : memref<256x128xf32, #tpu.memory_space<vmem>>, vector<256x128xf32>
      tpu.vector_store %arg7[%c0_16, %c0_17], %18 {strides = array<i32>} : memref<256x128xf32, #tpu.memory_space<vmem>>, vector<256x128xf32>,
    } else {
    }
    return
  }
  func.func @transform_0(%arg0: i32, %arg1: i32) -> (i32, i32) {
    %c0_i32 = arith.constant 0 : i32
    return %arg0, %arg1 : i32, i32
  }
  func.func @transform_1(%arg0: i32, %arg1: i32) -> (i32, i32) {
    %c0_i32 = arith.constant 0 : i32
    %c0_i32_0 = arith.constant 0 : i32
    return %arg1, %c0_i32 : i32, i32
  }
  func.func @transform_2(%arg0: i32, %arg1: i32) -> (i32, i32) {
    %c0_i32 = arith.constant 0 : i32
    %c0_i32_0 = arith.constant 0 : i32
    return %arg0, %c0_i32 : i32, i32
  }
  func.func @transform_3(%arg0: i32, %arg1: i32) -> (i32, i32) {
    %c0_i32 = arith.constant 0 : i32
    %c0_i32_0 = arith.constant 0 : i32
    %c0_i32_1 = arith.constant 0 : i32
    return %c0_i32, %c0_i32_0 : i32, i32
  }
  func.func @transform_4(%arg0: i32, %arg1: i32) -> (i32, i32) {
    %c0_i32 = arith.constant 0 : i32
    %c0_i32_0 = arith.constant 0 : i32
    %c0_i32_1 = arith.constant 0 : i32
    return %c0_i32, %c0_i32_0 : i32, i32
  }
  func.func @transform_5(%arg0: i32, %arg1: i32) -> (i32, i32) {
    %c0_i32 = arith.constant 0 : i32
    %c0_i32_0 = arith.constant 0 : i32
    return %arg0, %c0_i32 : i32, i32
  }
}

</mosaic_0001>

<llo_original>
// kernel: node_classifier_forward.2
$region0: #{node_classifier_forward.2}
  #allocation0 [shape = 'u32[]', space=smem, size = 0x4, offset = 0x4, fixed_abs, tag = 'smem constant byte address 0x4 - core index']
  #allocation1 [shape = 'u32[144,128]{1,0:T(1,128)}', space=vmem, size = 0x12000, scoped, tag = 'internal scratch']
  #allocation2 [shape = 'f32[256,512]{1,0:T(8,128)}', space=vmem, size = 0x80000, scoped, tag = 'scratch operand']
  %s0 = inlined_call_operand.vmem [shape: bf16[512,512], index: 0, kind: input, shape index: {}]
  %s1 = inlined_call_operand.vmem [shape: bf16[512,256], index: 1, kind: input, shape index: {}, may-alias: {1,2}]
  %s2 = inlined_call_operand.vmem [shape: bf16[512,256], index: 2, kind: input, shape index: {}, may-alias: {1,2}]
  %s3 = inlined_call_operand.vmem [shape: bf16[512,256], index: 3, kind: input, shape index: {}]
  %s4 = inlined_call_operand.vmem [shape: f32[1,256], index: 4, kind: input, shape index: {}]
  %s5 = inlined_call_operand.vmem [shape: bf16[512,256], index: 5, kind: output, shape index: {}]
  %s6 = sld [smem:[#allocation0]]
  $region99: #{node_classifier_forward.2} parent=0
    _
  %s8 = ssub.s32 1, %s6
  %s9 = scalar_select 0, %s8, %s6
  $region1: #{node_classifier_forward.2} parent=0
    #allocation3 [shape = 'u8[262144]{0}', space=vmem, size = 0x40000, scoped, tag = 'input window, operand 0']
    loop: start=0, step=1, limit=6
    $region2: #{node_classifier_forward.2} parent=1 // loop_pre_header
      _
    $region3: #{node_classifier_forward.2} parent=1 // loop_header
      %s11 = sphi 0, %s15
      %p12 = scmp.ge.s32.totalorder %s11, 6
      %s18 = sphi 0, %s30
      %s19 = sphi 0, %s26
      %s20 = sphi 0, %s18
      %s21 = sphi 0, %s19
      %s22 = sphi 0, %s20
      %s23 = sphi 0, %s21
      %s35 = sphi 0, %s37
      %s38 = sphi 0, %s35
      %s39 = sphi 0, %s38
      %s55 = sphi 0, %s39
      %s61 = sphi 0, %s63
      %s64 = sphi 0, %s61
      %s65 = sphi 0, %s64
      %s81 = sphi 0, %s65
      %s87 = sphi 0, %s89
      %s90 = sphi 0, %s87
      %s91 = sphi 0, %s90
      %s107 = sphi 0, %s91
      %s111 = sphi 0, %s111
      %s113 = sphi 0, %s111
      %s114 = sphi 0, %s113
      %s128 = sphi 0, %s114
      %s132 = sphi 0, %s132
      %s134 = sphi 0, %s132
      %s135 = sphi 0, %s134
      %s149 = sphi 0, %s135
      %s155 = sphi 0, %s157
      %s158 = sphi 0, %s155
      %s159 = sphi 0, %s158
      %s175 = sphi 0, %s159
    $region4: #{node_classifier_forward.2} parent=1 // loop_header_branch
      %14 = sbr.rel (%p12) target = $region8
    $region5: #{node_classifier_forward.2} parent=1 // loop_body
      %s16 = ssub.s32 %s11, 1
      %s17 = ssub.s32 %s11, 2
      %s24 = sadd.s32 1, %s19
      %p25 = scmp.ge.s32.totalorder %s24, 2
      %s26 = scalar_select %p25, 0, %s24
      %s27 = sadd.s32 1, %s18
      %s28 = scalar_select %p25, %s27, %s18
      %p29 = scmp.ge.s32.totalorder %s28, 2
      %s30 = scalar_select %p29, 0, %s28
      %s31 = ssub.s32 %s18, %s30
      %s32 = ssub.s32 %s19, %s26
      %s33 = sor.u32 %s31, %s32
      %p34 = scmp.eq.s32.totalorder %s33, 0
      %s36 = sadd.s32 %s35, 1
      %s37 = scalar_select %p34, %s35, %s36
      %p40 = pneg %p34
      %p41 = scmp.eq.s32.totalorder %s11, 3
      %p42 = por %p40, %p41
      %p43 = scmp.ne.s32.totalorder %s35, %s38
      %p44 = scmp.eq.s32.totalorder %s11, 0
      %p45 = por %p43, %p44
      %p46 = scmp.ne.s32.totalorder %s35, %s38
      %p47 = scmp.eq.s32.totalorder %s16, 3
      %p48 = por %p46, %p47
      %p49 = scmp.ne.s32.totalorder %s38, %s39
      %p50 = scmp.eq.s32.totalorder %s16, 0
      %p51 = por %p49, %p50
      %p52 = scmp.ne.s32.totalorder %s38, %s39
      %p53 = scmp.eq.s32.totalorder %s17, 3
      %p54 = por %p52, %p53
      %p56 = scmp.ne.s32.totalorder %s39, %s55
      %p57 = scmp.eq.s32.totalorder %s17, 0
      %p58 = por %p56, %p57
      %s59 = ssub.s32 %s19, %s26
      %p60 = scmp.eq.s32.totalorder %s59, 0
      %s62 = sadd.s32 %s61, 1
      %s63 = scalar_select %p60, %s61, %s62
      %p66 = pneg %p60
      %p67 = scmp.eq.s32.totalorder %s11, 3
      %p68 = por %p66, %p67
      %p69 = scmp.ne.s32.totalorder %s61, %s64
      %p70 = scmp.eq.s32.totalorder %s11, 0
      %p71 = por %p69, %p70
      %p72 = scmp.ne.s32.totalorder %s61, %s64
      %p73 = scmp.eq.s32.totalorder %s16, 3
      %p74 = por %p72, %p73
      %p75 = scmp.ne.s32.totalorder %s64, %s65
      %p76 = scmp.eq.s32.totalorder %s16, 0
      %p77 = por %p75, %p76
      %p78 = scmp.ne.s32.totalorder %s64, %s65
      %p79 = scmp.eq.s32.totalorder %s17, 3
      %p80 = por %p78, %p79
      %p82 = scmp.ne.s32.totalorder %s65, %s81
      %p83 = scmp.eq.s32.totalorder %s17, 0
      %p84 = por %p82, %p83
      %s85 = ssub.s32 %s18, %s30
      %p86 = scmp.eq.s32.totalorder %s85, 0
      %s88 = sadd.s32 %s87, 1
      %s89 = scalar_select %p86, %s87, %s88
      %p92 = pneg %p86
      %p93 = scmp.eq.s32.totalorder %s11, 3
      %p94 = por %p92, %p93
      %p95 = scmp.ne.s32.totalorder %s87, %s90
      %p96 = scmp.eq.s32.totalorder %s11, 0
      %p97 = por %p95, %p96
      %p98 = scmp.ne.s32.totalorder %s87, %s90
      %p99 = scmp.eq.s32.totalorder %s16, 3
      %p100 = por %p98, %p99
      %p101 = scmp.ne.s32.totalorder %s90, %s91
      %p102 = scmp.eq.s32.totalorder %s16, 0
      %p103 = por %p101, %p102
      %p104 = scmp.ne.s32.totalorder %s90, %s91
      %p105 = scmp.eq.s32.totalorder %s17, 3
      %p106 = por %p104, %p105
      %p108 = scmp.ne.s32.totalorder %s91, %s107
      %p109 = scmp.eq.s32.totalorder %s17, 0
      %p110 = por %p108, %p109
      %s112 = sadd.s32 %s111, 1
      %p115 = scmp.eq.s32.totalorder %s11, 3
      %p116 = scmp.ne.s32.totalorder %s111, %s113
      %p117 = scmp.eq.s32.totalorder %s11, 0
      %p118 = por %p116, %p117
      %p119 = scmp.ne.s32.totalorder %s111, %s113
      %p120 = scmp.eq.s32.totalorder %s16, 3
      %p121 = por %p119, %p120
      %p122 = scmp.ne.s32.totalorder %s113, %s114
      %p123 = scmp.eq.s32.totalorder %s16, 0
      %p124 = por %p122, %p123
      %p125 = scmp.ne.s32.totalorder %s113, %s114
      %p126 = scmp.eq.s32.totalorder %s17, 3
      %p127 = por %p125, %p126
      %p129 = scmp.ne.s32.totalorder %s114, %s128
      %p130 = scmp.eq.s32.totalorder %s17, 0
      %p131 = por %p129, %p130
      %s133 = sadd.s32 %s132, 1
      %p136 = scmp.eq.s32.totalorder %s11, 3
      %p137 = scmp.ne.s32.totalorder %s132, %s134
      %p138 = scmp.eq.s32.totalorder %s11, 0
      %p139 = por %p137, %p138
      %p140 = scmp.ne.s32.totalorder %s132, %s134
      %p141 = scmp.eq.s32.totalorder %s16, 3
      %p142 = por %p140, %p141
      %p143 = scmp.ne.s32.totalorder %s134, %s135
      %p144 = scmp.eq.s32.totalorder %s16, 0
      %p145 = por %p143, %p144
      %p146 = scmp.ne.s32.totalorder %s134, %s135
      %p147 = scmp.eq.s32.totalorder %s17, 3
      %p148 = por %p146, %p147
      %p150 = scmp.ne.s32.totalorder %s135, %s149
      %p151 = scmp.eq.s32.totalorder %s17, 0
      %p152 = por %p150, %p151
      %s153 = ssub.s32 %s18, %s30
      %p154 = scmp.eq.s32.totalorder %s153, 0
      %s156 = sadd.s32 %s155, 1
      %s157 = scalar_select %p154, %s155, %s156
      %p160 = pneg %p154
      %p161 = scmp.eq.s32.totalorder %s11, 3
      %p162 = por %p160, %p161
      %p163 = scmp.ne.s32.totalorder %s155, %s158
      %p164 = scmp.eq.s32.totalorder %s11, 0
      %p165 = por %p163, %p164
      %p166 = scmp.ne.s32.totalorder %s155, %s158
      %p167 = scmp.eq.s32.totalorder %s16, 3
      %p168 = por %p166, %p167
      %p169 = scmp.ne.s32.totalorder %s158, %s159
      %p170 = scmp.eq.s32.totalorder %s16, 0
      %p171 = por %p169, %p170
      %p172 = scmp.ne.s32.totalorder %s158, %s159
      %p173 = scmp.eq.s32.totalorder %s17, 3
      %p174 = por %p172, %p173
      %p176 = scmp.ne.s32.totalorder %s159, %s175
      %p177 = scmp.eq.s32.totalorder %s17, 0
      %p178 = por %p176, %p177
      %p179 = scmp.le.s32.totalorder 1, %s11
      %p180 = scmp.lt.s32.totalorder %s11, 5
      %p181 = pnand %p179, %p180
      %p182 = pneg %p181
      // Predicated region
      $region9: #{node_classifier_forward.2} parent=5 // pred_check
        _
      $region10: #{node_classifier_forward.2} parent=5 // pred_check_branch
        %184 = sbr.rel (%p181) target = $region12
      $region11: #{node_classifier_forward.2} parent=5 // pred_region
        %s185 = ssub.s32 %s11, 1
        // Predicated region
        $region13: #{node_classifier_forward.2} parent=11 // pred_check
          %p186 = pneg %p124
        $region14: #{node_classifier_forward.2} parent=11 // pred_check_branch
          %188 = sbr.rel (%p186) target = $region16
        $region15: #{node_classifier_forward.2} parent=11 // pred_region
          _
        $region16: #{node_classifier_forward.2} parent=11 // pred_fallthru
          _
        // Predicated region
        $region17: #{node_classifier_forward.2} parent=11 // pred_check
          %p189 = pneg %p145
        $region18: #{node_classifier_forward.2} parent=11 // pred_check_branch
          %191 = sbr.rel (%p189) target = $region20
        $region19: #{node_classifier_forward.2} parent=11 // pred_region
          _
        $region20: #{node_classifier_forward.2} parent=11 // pred_fallthru
          _
      $region12: #{node_classifier_forward.2} parent=5 // pred_fallthru
        _
      %p192 = scmp.lt.s32.totalorder %s11, 4
      // Predicated region
      $region21: #{node_classifier_forward.2} parent=5 // pred_check
        %p193 = pneg %p192
      $region22: #{node_classifier_forward.2} parent=5 // pred_check_branch
        %195 = sbr.rel (%p193) target = $region24
      $region23: #{node_classifier_forward.2} parent=5 // pred_region
        // Predicated region
        $region25: #{node_classifier_forward.2} parent=23 // pred_check
          %p196 = pneg %p45
        $region26: #{node_classifier_forward.2} parent=23 // pred_check_branch
          %198 = sbr.rel (%p196) target = $region28
        $region27: #{node_classifier_forward.2} parent=23 // pred_region
          %s199 = sand.u32 %s35, 1
          %s200 = sand.u32 %s35, 1
          %s201 = smul.addr %s200, 256
          %s202 = scalar_lea.vmem [#allocation3], %s201
          %s203 = smul.u32 32, %s18
          %s204 = smul.u32 2, %s19
          %s205 = smul.addr %s203, 4
          %s206 = sadd.s32 %s204, %s205
          %s207 = smul.addr %s206, 4
          %s208 = scalar_lea.vmem %s0, %s207
          // Predicated region
          $region29: #{node_classifier_forward.2} parent=27 // pred_check
            _
          $region30: #{node_classifier_forward.2} parent=27 // pred_check_branch
            %210 = sbr.rel (0) target = $region32
          $region31: #{node_classifier_forward.2} parent=27 // pred_region
            // Predicated region
            $region33: #{node_classifier_forward.2} parent=31 // pred_check
              _
            $region34: #{node_classifier_forward.2} parent=31 // pred_check_branch
              %212 = sbr.rel (0) target = $region36
            $region35: #{node_classifier_forward.2} parent=31 // pred_region
              // Predicated region
              $region48: #{node_classifier_forward.2} parent=35 // pred_check
                _
              $region49: #{node_classifier_forward.2} parent=35 // pred_check_branch
                %290 = sbr.rel (0) target = $region51
              $region50: #{node_classifier_forward.2} parent=35 // pred_region
                loop: start=0, step=1, limit=1
                $region52: #{node_classifier_forward.2} parent=50 // loop_pre_header
                  _
                $region53: #{node_classifier_forward.2} parent=50 // loop_header
                  %s292 = sphi 0, %s296
                  %p293 = scmp.ge.s32.totalorder %s292, 1
                  %s297 = sphi %s208, %s208
                  %s298 = sphi %s202, %s202
                $region54: #{node_classifier_forward.2} parent=50 // loop_header_branch
                  %295 = sbr.rel (%p293) target = $region58
                $region55: #{node_classifier_forward.2} parent=50 // loop_body
                  %v299 = vld [vmem:[%s297] sm:$0xff]
                  %300 = vst [vmem:[%s298] sm:$0xff] %v299
                  %v301 = vld [vmem:[%s297 + $0x10] sm:$0xff]
                  %302 = vst [vmem:[%s298 + $0x8] sm:$0xff] %v301
                  %v303 = vld [vmem:[%s297 + $0x20] sm:$0xff]
                  %304 = vst [vmem:[%s298 + $0x10] sm:$0xff] %v303
                  %v305 = vld [vmem:[%s297 + $0x30] sm:$0xff]
                  %306 = vst [vmem:[%s298 + $0x18] sm:$0xff] %v305
                  %v307 = vld [vmem:[%s297 + $0x40] sm:$0xff]
                  %308 = vst [vmem:[%s298 + $0x20] sm:$0xff] %v307
                  %v309 = vld [vmem:[%s297 + $0x50] sm:$0xff]
                  %310 = vst [vmem:[%s298 + $0x28] sm:$0xff] %v309
                  %v311 = vld [vmem:[%s297 + $0x60] sm:$0xff]
                  %312 = vst [vmem:[%s298 + $0x30] sm:$0xff] %v311
                  %v313 = vld [vmem:[%s297 + $0x70] sm:$0xff]
                  %314 = vst [vmem:[%s298 + $0x38] sm:$0xff] %v313
                  %v315 = vld [vmem:[%s297 + $0x80] sm:$0xff]
                  %316 = vst [vmem:[%s298 + $0x40] sm:$0xff] %v315
                  %v317 = vld [vmem:[%s297 + $0x90] sm:$0xff]
                  %318 = vst [vmem:[%s298 + $0x48] sm:$0xff] %v317
                  %v319 = vld [vmem:[%s297 + $0xa0] sm:$0xff]
                  %320 = vst [vmem:[%s298 + $0x50] sm:$0xff] %v319
                  %v321 = vld [vmem:[%s297 + $0xb0] sm:$0xff]
                  %322 = vst [vmem:[%s298 + $0x58] sm:$0xff] %v321
                  %v323 = vld [vmem:[%s297 + $0xc0] sm:$0xff]
                  %324 = vst [vmem:[%s298 + $0x60] sm:$0xff] %v323
                  %v325 = vld [vmem:[%s297 + $0xd0] sm:$0xff]
                  %326 = vst [vmem:[%s298 + $0x68] sm:$0xff] %v325
                  %v327 = vld [vmem:[%s297 + $0xe0] sm:$0xff]
                  %328 = vst [vmem:[%s298 + $0x70] sm:$0xff] %v327
                  %v329 = vld [vmem:[%s297 + $0xf0] sm:$0xff]
                  %330 = vst [vmem:[%s298 + $0x78] sm:$0xff] %v329
                  %v331 = vld [vmem:[%s297 + $0x100] sm:$0xff]
                  %332 = vst [vmem:[%s298 + $0x80] sm:$0xff] %v331
                  %v333 = vld [vmem:[%s297 + $0x110] sm:$0xff]
                  %334 = vst [vmem:[%s298 + $0x88] sm:$0xff] %v333
                  %v335 = vld [vmem:[%s297 + $0x120] sm:$0xff]
                  %336 = vst [vmem:[%s298 + $0x90] sm:$0xff] %v335
                  %v337 = vld [vmem:[%s297 + $0x130] sm:$0xff]
                  %338 = vst [vmem:[%s298 + $0x98] sm:$0xff] %v337
                  %v339 = vld [vmem:[%s297 + $0x140] sm:$0xff]
                  %340 = vst [vmem:[%s298 + $0xa0] sm:$0xff] %v339
                  %v341 = vld [vmem:[%s297 + $0x150] sm:$0xff]
                  %342 = vst [vmem:[%s298 + $0xa8] sm:$0xff] %v341
                  %v343 = vld [vmem:[%s297 + $0x160] sm:$0xff]
                  %344 = vst [vmem:[%s298 + $0xb0] sm:$0xff] %v343
                  %v345 = vld [vmem:[%s297 + $0x170] sm:$0xff]
                  %346 = vst [vmem:[%s298 + $0xb8] sm:$0xff] %v345
                  %v347 = vld [vmem:[%s297 + $0x180] sm:$0xff]
                  %348 = vst [vmem:[%s298 + $0xc0] sm:$0xff] %v347
                  %v349 = vld [vmem:[%s297 + $0x190] sm:$0xff]
                  %350 = vst [vmem:[%s298 + $0xc8] sm:$0xff] %v349
                  %v351 = vld [vmem:[%s297 + $0x1a0] sm:$0xff]
                  %352 = vst [vmem:[%s298 + $0xd0] sm:$0xff] %v351
                  %v353 = vld [vmem:[%s297 + $0x1b0] sm:$0xff]
                  %354 = vst [vmem:[%s298 + $0xd8] sm:$0xff] %v353
                  %v355 = vld [vmem:[%s297 + $0x1c0] sm:$0xff]
                  %356 = vst [vmem:[%s298 + $0xe0] sm:$0xff] %v355
                  %v357 = vld [vmem:[%s297 + $0x1d0] sm:$0xff]
                  %358 = vst [vmem:[%s298 + $0xe8] sm:$0xff] %v357
                  %v359 = vld [vmem:[%s297 + $0x1e0] sm:$0xff]
                  %360 = vst [vmem:[%s298 + $0xf0] sm:$0xff] %v359
                  %v361 = vld [vmem:[%s297 + $0x1f0] sm:$0xff]
                  %362 = vst [vmem:[%s298 + $0xf8] sm:$0xff] %v361
                $region56: #{node_classifier_forward.2} parent=50 // loop_footer
                  %s296 = sadd.s32 1, %s292
                $region57: #{node_classifier_forward.2} parent=50 // loop_footer_branch
                  %291 = sbr.rel target = $region53
                $region58: #{node_classifier_forward.2} parent=50 // loop_exit
                  _
              $region51: #{node_classifier_forward.2} parent=35 // pred_fallthru
                _
              // Predicated region
              $region59: #{node_classifier_forward.2} parent=35 // pred_check
                _
              $region60: #{node_classifier_forward.2} parent=35 // pred_check_branch
                %364 = sbr.rel target = $region62
              $region61: #{node_classifier_forward.2} parent=35 // pred_region
                _
              $region62: #{node_classifier_forward.2} parent=35 // pred_fallthru
                _
            $region36: #{node_classifier_forward.2} parent=31 // pred_fallthru
              _
            // Predicated region
            $region37: #{node_classifier_forward.2} parent=31 // pred_check
              _
            $region38: #{node_classifier_forward.2} parent=31 // pred_check_branch
              %214 = sbr.rel target = $region40
            $region39: #{node_classifier_forward.2} parent=31 // pred_region
              %s216 = ssub.s32 256, 1
              loop: start=0, step=1, limit=1
              $region41: #{node_classifier_forward.2} parent=39 // loop_pre_header
                _
              $region42: #{node_classifier_forward.2} parent=39 // loop_header
                %s218 = sphi 0, %s222
                %p219 = scmp.ge.s32.totalorder %s218, 1
                %s223 = sphi %s208, %s208
                %s224 = sphi %s202, %s202
              $region43: #{node_classifier_forward.2} parent=39 // loop_header_branch
                %221 = sbr.rel (%p219) target = $region47
              $region44: #{node_classifier_forward.2} parent=39 // loop_body
                %v225 = vld [vmem:[%s223] sm:%s216]
                %226 = vst [vmem:[%s224] sm:%s216] %v225
                %v227 = vld [vmem:[%s223 + $0x10] sm:%s216]
                %228 = vst [vmem:[%s224 + $0x8] sm:%s216] %v227
                %v229 = vld [vmem:[%s223 + $0x20] sm:%s216]
                %230 = vst [vmem:[%s224 + $0x10] sm:%s216] %v229
                %v231 = vld [vmem:[%s223 + $0x30] sm:%s216]
                %232 = vst [vmem:[%s224 + $0x18] sm:%s216] %v231
                %v233 = vld [vmem:[%s223 + $0x40] sm:%s216]
                %234 = vst [vmem:[%s224 + $0x20] sm:%s216] %v233
                %v235 = vld [vmem:[%s223 + $0x50] sm:%s216]
                %236 = vst [vmem:[%s224 + $0x28] sm:%s216] %v235
                %v237 = vld [vmem:[%s223 + $0x60] sm:%s216]
                %238 = vst [vmem:[%s224 + $0x30] sm:%s216] %v237
                %v239 = vld [vmem:[%s223 + $0x70] sm:%s216]
                %240 = vst [vmem:[%s224 + $0x38] sm:%s216] %v239
                %v241 = vld [vmem:[%s223 + $0x80] sm:%s216]
                %242 = vst [vmem:[%s224 + $0x40] sm:%s216] %v241
                %v243 = vld [vmem:[%s223 + $0x90] sm:%s216]
                %244 = vst [vmem:[%s224 + $0x48] sm:%s216] %v243
                %v245 = vld [vmem:[%s223 + $0xa0] sm:%s216]
                %246 = vst [vmem:[%s224 + $0x50] sm:%s216] %v245
                %v247 = vld [vmem:[%s223 + $0xb0] sm:%s216]
                %248 = vst [vmem:[%s224 + $0x58] sm:%s216] %v247
                %v249 = vld [vmem:[%s223 + $0xc0] sm:%s216]
                %250 = vst [vmem:[%s224 + $0x60] sm:%s216] %v249
                %v251 = vld [vmem:[%s223 + $0xd0] sm:%s216]
                %252 = vst [vmem:[%s224 + $0x68] sm:%s216] %v251
                %v253 = vld [vmem:[%s223 + $0xe0] sm:%s216]
                %254 = vst [vmem:[%s224 + $0x70] sm:%s216] %v253
                %v255 = vld [vmem:[%s223 + $0xf0] sm:%s216]
                %256 = vst [vmem:[%s224 + $0x78] sm:%s216] %v255
                %v257 = vld [vmem:[%s223 + $0x100] sm:%s216]
                %258 = vst [vmem:[%s224 + $0x80] sm:%s216] %v257
                %v259 = vld [vmem:[%s223 + $0x110] sm:%s216]
                %260 = vst [vmem:[%s224 + $0x88] sm:%s216] %v259
                %v261 = vld [vmem:[%s223 + $0x120] sm:%s216]
                %262 = vst [vmem:[%s224 + $0x90] sm:%s216] %v261
                %v263 = vld [vmem:[%s223 + $0x130] sm:%s216]
                %264 = vst [vmem:[%s224 + $0x98] sm:%s216] %v263
                %v265 = vld [vmem:[%s223 + $0x140] sm:%s216]
                %266 = vst [vmem:[%s224 + $0xa0] sm:%s216] %v265
                %v267 = vld [vmem:[%s223 + $0x150] sm:%s216]
                %268 = vst [vmem:[%s224 + $0xa8] sm:%s216] %v267
                %v269 = vld [vmem:[%s223 + $0x160] sm:%s216]
                %270 = vst [vmem:[%s224 + $0xb0] sm:%s216] %v269
                %v271 = vld [vmem:[%s223 + $0x170] sm:%s216]
                %272 = vst [vmem:[%s224 + $0xb8] sm:%s216] %v271
                %v273 = vld [vmem:[%s223 + $0x180] sm:%s216]
                %274 = vst [vmem:[%s224 + $0xc0] sm:%s216] %v273
                %v275 = vld [vmem:[%s223 + $0x190] sm:%s216]
                %276 = vst [vmem:[%s224 + $0xc8] sm:%s216] %v275
                %v277 = vld [vmem:[%s223 + $0x1a0] sm:%s216]
                %278 = vst [vmem:[%s224 + $0xd0] sm:%s216] %v277
                %v279 = vld [vmem:[%s223 + $0x1b0] sm:%s216]
                %280 = vst [vmem:[%s224 + $0xd8] sm:%s216] %v279
                %v281 = vld [vmem:[%s223 + $0x1c0] sm:%s216]
                %282 = vst [vmem:[%s224 + $0xe0] sm:%s216] %v281
                %v283 = vld [vmem:[%s223 + $0x1d0] sm:%s216]
                %284 = vst [vmem:[%s224 + $0xe8] sm:%s216] %v283
                %v285 = vld [vmem:[%s223 + $0x1e0] sm:%s216]
                %286 = vst [vmem:[%s224 + $0xf0] sm:%s216] %v285
                %v287 = vld [vmem:[%s223 + $0x1f0] sm:%s216]
                %288 = vst [vmem:[%s224 + $0xf8] sm:%s216] %v287
              $region45: #{node_classifier_forward.2} parent=39 // loop_footer
                %s222 = sadd.s32 1, %s218
              $region46: #{node_classifier_forward.2} parent=39 // loop_footer_branch
                %217 = sbr.rel target = $region42
              $region47: #{node_classifier_forward.2} parent=39 // loop_exit
                _
            $region40: #{node_classifier_forward.2} parent=31 // pred_fallthru
              _
          $region32: #{node_classifier_forward.2} parent=27 // pred_fallthru
            _
          %365 = vnop
        $region28: #{node_classifier_forward.2} parent=23 // pred_fallthru
          _
        // Predicated region
        $region63: #{node_classifier_forward.2} parent=23 // pred_check
          %p366 = pneg %p71
        $region64: #{node_classifier_forward.2} parent=23 // pred_check_branch
          %368 = sbr.rel (%p366) target = $region66
        $region65: #{node_classifier_forward.2} parent=23 // pred_region
          %s369 = smul.u32 32, %s19
          %p370 = scmp.lt.s32.totalorder %s369, 63
          %s371 = scalar_select %p370, %s369, 63
          %s372 = smul.addr %s371, 2
          %s373 = smul.addr %s372, 4
          %s374 = scalar_lea.vmem %s1, %s373
          %s375 = smul.u32 32, %s19
        $region66: #{node_classifier_forward.2} parent=23 // pred_fallthru
          _
        // Predicated region
        $region67: #{node_classifier_forward.2} parent=23 // pred_check
          %p376 = pneg %p97
        $region68: #{node_classifier_forward.2} parent=23 // pred_check_branch
          %378 = sbr.rel (%p376) target = $region70
        $region69: #{node_classifier_forward.2} parent=23 // pred_region
          %s379 = smul.u32 32, %s18
          %p380 = scmp.lt.s32.totalorder %s379, 63
          %s381 = scalar_select %p380, %s379, 63
          %s382 = smul.addr %s381, 2
          %s383 = smul.addr %s382, 4
          %s384 = scalar_lea.vmem %s2, %s383
          %s385 = smul.u32 32, %s18
        $region70: #{node_classifier_forward.2} parent=23 // pred_fallthru
          _
      $region24: #{node_classifier_forward.2} parent=5 // pred_fallthru
        _
      %p386 = scmp.le.s32.totalorder 1, %s11
      %p387 = scmp.lt.s32.totalorder %s11, 5
      %p388 = pnand %p386, %p387
      %p389 = pneg %p388
      // Predicated region
      $region71: #{node_classifier_forward.2} parent=5 // pred_check
        _
      $region72: #{node_classifier_forward.2} parent=5 // pred_check_branch
        %391 = sbr.rel (%p388) target = $region74
      $region73: #{node_classifier_forward.2} parent=5 // pred_region
        %s392 = ssub.s32 %s11, 1
        %s393 = sand.u32 %s38, 1
        %s394 = sand.u32 %s38, 1
        %s395 = smul.addr %s394, 256
        %s396 = scalar_lea.vmem [#allocation3], %s395
        // Predicated region
        $region75: #{node_classifier_forward.2} parent=73 // pred_check
          %p397 = pneg %p51
        $region76: #{node_classifier_forward.2} parent=73 // pred_check_branch
          %399 = sbr.rel (%p397) target = $region78
        $region77: #{node_classifier_forward.2} parent=73 // pred_region
          _
        $region78: #{node_classifier_forward.2} parent=73 // pred_fallthru
          _
        %s400 = sand.u32 %s38, 1
        %s401 = sand.u32 %s38, 1
        %s402 = smul.addr %s401, 256
        %s403 = scalar_lea.vmem [#allocation3], %s402
        %p404 = pneg %p51
        %p405 = pneg %p48
        %s406 = smul.u32 32, %s21
        %p407 = scmp.lt.s32.totalorder %s406, 63
        %s408 = scalar_select %p407, %s406, 63
        %s409 = smul.addr %s408, 2
        %s410 = smul.addr %s409, 4
        %s411 = scalar_lea.vmem %s1, %s410
        %p412 = pneg %p77
        %p413 = pneg %p74
        %s414 = smul.u32 32, %s20
        %p415 = scmp.lt.s32.totalorder %s414, 63
        %s416 = scalar_select %p415, %s414, 63
        %s417 = smul.addr %s416, 2
        %s418 = smul.addr %s417, 4
        %s419 = scalar_lea.vmem %s2, %s418
        %p420 = pneg %p103
        %p421 = pneg %p100
        %p422 = pneg %p124
        %p423 = pneg %p121
        %p424 = pneg %p145
        %p425 = pneg %p142
        %p426 = pneg %p171
        %p427 = pneg %p168
        %s428 = smul.u32 32, %s20
        %p429 = scmp.lt.s32.totalorder %s428, 63
        %s430 = scalar_select %p429, %s428, 63
        %s431 = smul.addr %s430, 2
        %s432 = smul.addr %s431, 4
        %s433 = scalar_lea.vmem %s5, %s432
        %s434 = smul.u32 32, %s20
        %s435 = smul.u32 2, %s21
        %s436 = smul.u32 32, %s21
        %p437 = scmp.lt.s32.totalorder %s436, 63
        %s438 = scalar_select %p437, %s436, 63
        %s439 = smul.addr %s438, 2
        %s440 = smul.addr %s439, 4
        %s441 = scalar_lea.vmem %s1, %s440
        %s442 = smul.u32 32, %s21
        %s443 = smul.u32 32, %s20
        %p444 = scmp.lt.s32.totalorder %s443, 63
        %s445 = scalar_select %p444, %s443, 63
        %s446 = smul.addr %s445, 2
        %s447 = smul.addr %s446, 4
        %s448 = scalar_lea.vmem %s2, %s447
        %s449 = smul.u32 32, %s20
        %s450 = smul.u32 32, %s20
        %p451 = scmp.lt.s32.totalorder %s450, 63
        %s452 = scalar_select %p451, %s450, 63
        %s453 = smul.addr %s452, 2
        %s454 = smul.addr %s453, 4
        %s455 = scalar_lea.vmem %s5, %s454
        %s456 = smul.u32 32, %s20
        %p457 = scmp.eq.s32.totalorder %s21, 0
        // Predicated region
        $region79: #{node_classifier_forward.2} parent=73 // pred_check
          %p458 = pneg %p457
        $region80: #{node_classifier_forward.2} parent=73 // pred_check_branch
          %460 = sbr.rel (%p458) target = $region82
        $region81: #{node_classifier_forward.2} parent=73 // pred_region
          %461 = vst [vmem:[#allocation2] sm:$0xff] 0.0
          %462 = vst [vmem:[#allocation2 + $0x8] sm:$0xff] 0.0
          %463 = vst [vmem:[#allocation2 + $0x10] sm:$0xff] 0.0
          %464 = vst [vmem:[#allocation2 + $0x18] sm:$0xff] 0.0
          %465 = vst [vmem:[#allocation2 + $0x20] sm:$0xff] 0.0
          %466 = vst [vmem:[#allocation2 + $0x28] sm:$0xff] 0.0
          %467 = vst [vmem:[#allocation2 + $0x30] sm:$0xff] 0.0
          %468 = vst [vmem:[#allocation2 + $0x38] sm:$0xff] 0.0
          %469 = vst [vmem:[#allocation2 + $0x40] sm:$0xff] 0.0
          %470 = vst [vmem:[#allocation2 + $0x48] sm:$0xff] 0.0
          %471 = vst [vmem:[#allocation2 + $0x50] sm:$0xff] 0.0
          %472 = vst [vmem:[#allocation2 + $0x58] sm:$0xff] 0.0
          %473 = vst [vmem:[#allocation2 + $0x60] sm:$0xff] 0.0
          %474 = vst [vmem:[#allocation2 + $0x68] sm:$0xff] 0.0
          %475 = vst [vmem:[#allocation2 + $0x70] sm:$0xff] 0.0
          %476 = vst [vmem:[#allocation2 + $0x78] sm:$0xff] 0.0
          %477 = vst [vmem:[#allocation2 + $0x80] sm:$0xff] 0.0
          %478 = vst [vmem:[#allocation2 + $0x88] sm:$0xff] 0.0
          %479 = vst [vmem:[#allocation2 + $0x90] sm:$0xff] 0.0
          %480 = vst [vmem:[#allocation2 + $0x98] sm:$0xff] 0.0
          %481 = vst [vmem:[#allocation2 + $0xa0] sm:$0xff] 0.0
          %482 = vst [vmem:[#allocation2 + $0xa8] sm:$0xff] 0.0
          %483 = vst [vmem:[#allocation2 + $0xb0] sm:$0xff] 0.0
          %484 = vst [vmem:[#allocation2 + $0xb8] sm:$0xff] 0.0
          %485 = vst [vmem:[#allocation2 + $0xc0] sm:$0xff] 0.0
          %486 = vst [vmem:[#allocation2 + $0xc8] sm:$0xff] 0.0
          %487 = vst [vmem:[#allocation2 + $0xd0] sm:$0xff] 0.0
          %488 = vst [vmem:[#allocation2 + $0xd8] sm:$0xff] 0.0
          %489 = vst [vmem:[#allocation2 + $0xe0] sm:$0xff] 0.0
          %490 = vst [vmem:[#allocation2 + $0xe8] sm:$0xff] 0.0
          %491 = vst [vmem:[#allocation2 + $0xf0] sm:$0xff] 0.0
          %492 = vst [vmem:[#allocation2 + $0xf8] sm:$0xff] 0.0
          %493 = vst [vmem:[#allocation2 + $0x100] sm:$0xff] 0.0
          %494 = vst [vmem:[#allocation2 + $0x108] sm:$0xff] 0.0
          %495 = vst [vmem:[#allocation2 + $0x110] sm:$0xff] 0.0
          %496 = vst [vmem:[#allocation2 + $0x118] sm:$0xff] 0.0
          %497 = vst [vmem:[#allocation2 + $0x120] sm:$0xff] 0.0
          %498 = vst [vmem:[#allocation2 + $0x128] sm:$0xff] 0.0
          %499 = vst [vmem:[#allocation2 + $0x130] sm:$0xff] 0.0
          %500 = vst [vmem:[#allocation2 + $0x138] sm:$0xff] 0.0
          %501 = vst [vmem:[#allocation2 + $0x140] sm:$0xff] 0.0
          %502 = vst [vmem:[#allocation2 + $0x148] sm:$0xff] 0.0
          %503 = vst [vmem:[#allocation2 + $0x150] sm:$0xff] 0.0
          %504 = vst [vmem:[#allocation2 + $0x158] sm:$0xff] 0.0
          %505 = vst [vmem:[#allocation2 + $0x160] sm:$0xff] 0.0
          %506 = vst [vmem:[#allocation2 + $0x168] sm:$0xff] 0.0
          %507 = vst [vmem:[#allocation2 + $0x170] sm:$0xff] 0.0
          %508 = vst [vmem:[#allocation2 + $0x178] sm:$0xff] 0.0
          %509 = vst [vmem:[#allocation2 + $0x180] sm:$0xff] 0.0
          %510 = vst [vmem:[#allocation2 + $0x188] sm:$0xff] 0.0
          %511 = vst [vmem:[#allocation2 + $0x190] sm:$0xff] 0.0
          %512 = vst [vmem:[#allocation2 + $0x198] sm:$0xff] 0.0
          %513 = vst [vmem:[#allocation2 + $0x1a0] sm:$0xff] 0.0
          %514 = vst [vmem:[#allocation2 + $0x1a8] sm:$0xff] 0.0
          %515 = vst [vmem:[#allocation2 + $0x1b0] sm:$0xff] 0.0
          %516 = vst [vmem:[#allocation2 + $0x1b8] sm:$0xff] 0.0
          %517 = vst [vmem:[#allocation2 + $0x1c0] sm:$0xff] 0.0
          %518 = vst [vmem:[#allocation2 + $0x1c8] sm:$0xff] 0.0
          %519 = vst [vmem:[#allocation2 + $0x1d0] sm:$0xff] 0.0
          %520 = vst [vmem:[#allocation2 + $0x1d8] sm:$0xff] 0.0
          %521 = vst [vmem:[#allocation2 + $0x1e0] sm:$0xff] 0.0
          %522 = vst [vmem:[#allocation2 + $0x1e8] sm:$0xff] 0.0
          %523 = vst [vmem:[#allocation2 + $0x1f0] sm:$0xff] 0.0
          %524 = vst [vmem:[#allocation2 + $0x1f8] sm:$0xff] 0.0
          %525 = vst [vmem:[#allocation2 + $0x200] sm:$0xff] 0.0
          %526 = vst [vmem:[#allocation2 + $0x208] sm:$0xff] 0.0
          %527 = vst [vmem:[#allocation2 + $0x210] sm:$0xff] 0.0
          %528 = vst [vmem:[#allocation2 + $0x218] sm:$0xff] 0.0
          %529 = vst [vmem:[#allocation2 + $0x220] sm:$0xff] 0.0
          %530 = vst [vmem:[#allocation2 + $0x228] sm:$0xff] 0.0
          %531 = vst [vmem:[#allocation2 + $0x230] sm:$0xff] 0.0
          %532 = vst [vmem:[#allocation2 + $0x238] sm:$0xff] 0.0
          %533 = vst [vmem:[#allocation2 + $0x240] sm:$0xff] 0.0
          %534 = vst [vmem:[#allocation2 + $0x248] sm:$0xff] 0.0
          %535 = vst [vmem:[#allocation2 + $0x250] sm:$0xff] 0.0
          %536 = vst [vmem:[#allocation2 + $0x258] sm:$0xff] 0.0
          %537 = vst [vmem:[#allocation2 + $0x260] sm:$0xff] 0.0
          %538 = vst [vmem:[#allocation2 + $0x268] sm:$0xff] 0.0
          %539 = vst [vmem:[#allocation2 + $0x270] sm:$0xff] 0.0
          %540 = vst [vmem:[#allocation2 + $0x278] sm:$0xff] 0.0
          %541 = vst [vmem:[#allocation2 + $0x280] sm:$0xff] 0.0
          %542 = vst [vmem:[#allocation2 + $0x288] sm:$0xff] 0.0
          %543 = vst [vmem:[#allocation2 + $0x290] sm:$0xff] 0.0
          %544 = vst [vmem:[#allocation2 + $0x298] sm:$0xff] 0.0
          %545 = vst [vmem:[#allocation2 + $0x2a0] sm:$0xff] 0.0
          %546 = vst [vmem:[#allocation2 + $0x2a8] sm:$0xff] 0.0
          %547 = vst [vmem:[#allocation2 + $0x2b0] sm:$0xff] 0.0
          %548 = vst [vmem:[#allocation2 + $0x2b8] sm:$0xff] 0.0
          %549 = vst [vmem:[#allocation2 + $0x2c0] sm:$0xff] 0.0
          %550 = vst [vmem:[#allocation2 + $0x2c8] sm:$0xff] 0.0
          %551 = vst [vmem:[#allocation2 + $0x2d0] sm:$0xff] 0.0
          %552 = vst [vmem:[#allocation2 + $0x2d8] sm:$0xff] 0.0
          %553 = vst [vmem:[#allocation2 + $0x2e0] sm:$0xff] 0.0
          %554 = vst [vmem:[#allocation2 + $0x2e8] sm:$0xff] 0.0
          %555 = vst [vmem:[#allocation2 + $0x2f0] sm:$0xff] 0.0
          %556 = vst [vmem:[#allocation2 + $0x2f8] sm:$0xff] 0.0
          %557 = vst [vmem:[#allocation2 + $0x300] sm:$0xff] 0.0
          %558 = vst [vmem:[#allocation2 + $0x308] sm:$0xff] 0.0
          %559 = vst [vmem:[#allocation2 + $0x310] sm:$0xff] 0.0
          %560 = vst [vmem:[#allocation2 + $0x318] sm:$0xff] 0.0
          %561 = vst [vmem:[#allocation2 + $0x320] sm:$0xff] 0.0
          %562 = vst [vmem:[#allocation2 + $0x328] sm:$0xff] 0.0
          %563 = vst [vmem:[#allocation2 + $0x330] sm:$0xff] 0.0
          %564 = vst [vmem:[#allocation2 + $0x338] sm:$0xff] 0.0
          %565 = vst [vmem:[#allocation2 + $0x340] sm:$0xff] 0.0
          %566 = vst [vmem:[#allocation2 + $0x348] sm:$0xff] 0.0
          %567 = vst [vmem:[#allocation2 + $0x350] sm:$0xff] 0.0
          %568 = vst [vmem:[#allocation2 + $0x358] sm:$0xff] 0.0
          %569 = vst [vmem:[#allocation2 + $0x360] sm:$0xff] 0.0
          %570 = vst [vmem:[#allocation2 + $0x368] sm:$0xff] 0.0
          %571 = vst [vmem:[#allocation2 + $0x370] sm:$0xff] 0.0
          %572 = vst [vmem:[#allocation2 + $0x378] sm:$0xff] 0.0
          %573 = vst [vmem:[#allocation2 + $0x380] sm:$0xff] 0.0
          %574 = vst [vmem:[#allocation2 + $0x388] sm:$0xff] 0.0
          %575 = vst [vmem:[#allocation2 + $0x390] sm:$0xff] 0.0
          %576 = vst [vmem:[#allocation2 + $0x398] sm:$0xff] 0.0
          %577 = vst [vmem:[#allocation2 + $0x3a0] sm:$0xff] 0.0
          %578 = vst [vmem:[#allocation2 + $0x3a8] sm:$0xff] 0.0
          %579 = vst [vmem:[#allocation2 + $0x3b0] sm:$0xff] 0.0
          %580 = vst [vmem:[#allocation2 + $0x3b8] sm:$0xff] 0.0
          %581 = vst [vmem:[#allocation2 + $0x3c0] sm:$0xff] 0.0
          %582 = vst [vmem:[#allocation2 + $0x3c8] sm:$0xff] 0.0
          %583 = vst [vmem:[#allocation2 + $0x3d0] sm:$0xff] 0.0
          %584 = vst [vmem:[#allocation2 + $0x3d8] sm:$0xff] 0.0
          %585 = vst [vmem:[#allocation2 + $0x3e0] sm:$0xff] 0.0
          %586 = vst [vmem:[#allocation2 + $0x3e8] sm:$0xff] 0.0
          %587 = vst [vmem:[#allocation2 + $0x3f0] sm:$0xff] 0.0
          %588 = vst [vmem:[#allocation2 + $0x3f8] sm:$0xff] 0.0
          %v589 = vld [vmem:[%s448] sm:$0xff]
          %v590 = vld [vmem:[%s448 + $0x8] sm:$0xff]
          %v591 = vld [vmem:[%s448 + $0x10] sm:$0xff]
          %v592 = vld [vmem:[%s448 + $0x18] sm:$0xff]
          %v593 = vld [vmem:[%s448 + $0x20] sm:$0xff]
          %v594 = vld [vmem:[%s448 + $0x28] sm:$0xff]
          %v595 = vld [vmem:[%s448 + $0x30] sm:$0xff]
          %v596 = vld [vmem:[%s448 + $0x38] sm:$0xff]
          %v597 = vld [vmem:[%s448 + $0x40] sm:$0xff]
          %v598 = vld [vmem:[%s448 + $0x48] sm:$0xff]
          %v599 = vld [vmem:[%s448 + $0x50] sm:$0xff]
          %v600 = vld [vmem:[%s448 + $0x58] sm:$0xff]
          %v601 = vld [vmem:[%s448 + $0x60] sm:$0xff]
          %v602 = vld [vmem:[%s448 + $0x68] sm:$0xff]
          %v603 = vld [vmem:[%s448 + $0x70] sm:$0xff]
          %v604 = vld [vmem:[%s448 + $0x78] sm:$0xff]
          %v605 = vld [vmem:[%s448 + $0x80] sm:$0xff]
          %v606 = vld [vmem:[%s448 + $0x88] sm:$0xff]
          %v607 = vld [vmem:[%s448 + $0x90] sm:$0xff]
          %v608 = vld [vmem:[%s448 + $0x98] sm:$0xff]
          %v609 = vld [vmem:[%s448 + $0xa0] sm:$0xff]
          %v610 = vld [vmem:[%s448 + $0xa8] sm:$0xff]
          %v611 = vld [vmem:[%s448 + $0xb0] sm:$0xff]
          %v612 = vld [vmem:[%s448 + $0xb8] sm:$0xff]
          %v613 = vld [vmem:[%s448 + $0xc0] sm:$0xff]
          %v614 = vld [vmem:[%s448 + $0xc8] sm:$0xff]
          %v615 = vld [vmem:[%s448 + $0xd0] sm:$0xff]
          %v616 = vld [vmem:[%s448 + $0xd8] sm:$0xff]
          %v617 = vld [vmem:[%s448 + $0xe0] sm:$0xff]
          %v618 = vld [vmem:[%s448 + $0xe8] sm:$0xff]
          %v619 = vld [vmem:[%s448 + $0xf0] sm:$0xff]
          %v620 = vld [vmem:[%s448 + $0xf8] sm:$0xff]
          %v621 = vunpack.c.l.bf16 %v589
          %v622 = vunpack.c.h.bf16 %v589
          %v623 = vunpack.c.l.bf16 %v590
          %v624 = vunpack.c.h.bf16 %v590
          %v625 = vunpack.c.l.bf16 %v591
          %v626 = vunpack.c.h.bf16 %v591
          %v627 = vunpack.c.l.bf16 %v592
          %v628 = vunpack.c.h.bf16 %v592
          %v629 = vunpack.c.l.bf16 %v593
          %v630 = vunpack.c.h.bf16 %v593
          %v631 = vunpack.c.l.bf16 %v594
          %v632 = vunpack.c.h.bf16 %v594
          %v633 = vunpack.c.l.bf16 %v595
          %v634 = vunpack.c.h.bf16 %v595
          %v635 = vunpack.c.l.bf16 %v596
          %v636 = vunpack.c.h.bf16 %v596
          %v637 = vunpack.c.l.bf16 %v597
          %v638 = vunpack.c.h.bf16 %v597
          %v639 = vunpack.c.l.bf16 %v598
          %v640 = vunpack.c.h.bf16 %v598
          %v641 = vunpack.c.l.bf16 %v599
          %v642 = vunpack.c.h.bf16 %v599
          %v643 = vunpack.c.l.bf16 %v600
          %v644 = vunpack.c.h.bf16 %v600
          %v645 = vunpack.c.l.bf16 %v601
          %v646 = vunpack.c.h.bf16 %v601
          %v647 = vunpack.c.l.bf16 %v602
          %v648 = vunpack.c.h.bf16 %v602
          %v649 = vunpack.c.l.bf16 %v603
          %v650 = vunpack.c.h.bf16 %v603
          %v651 = vunpack.c.l.bf16 %v604
          %v652 = vunpack.c.h.bf16 %v604
          %v653 = vunpack.c.l.bf16 %v605
          %v654 = vunpack.c.h.bf16 %v605
          %v655 = vunpack.c.l.bf16 %v606
          %v656 = vunpack.c.h.bf16 %v606
          %v657 = vunpack.c.l.bf16 %v607
          %v658 = vunpack.c.h.bf16 %v607
          %v659 = vunpack.c.l.bf16 %v608
          %v660 = vunpack.c.h.bf16 %v608
          %v661 = vunpack.c.l.bf16 %v609
          %v662 = vunpack.c.h.bf16 %v609
          %v663 = vunpack.c.l.bf16 %v610
          %v664 = vunpack.c.h.bf16 %v610
          %v665 = vunpack.c.l.bf16 %v611
          %v666 = vunpack.c.h.bf16 %v611
          %v667 = vunpack.c.l.bf16 %v612
          %v668 = vunpack.c.h.bf16 %v612
          %v669 = vunpack.c.l.bf16 %v613
          %v670 = vunpack.c.h.bf16 %v613
          %v671 = vunpack.c.l.bf16 %v614
          %v672 = vunpack.c.h.bf16 %v614
          %v673 = vunpack.c.l.bf16 %v615
          %v674 = vunpack.c.h.bf16 %v615
          %v675 = vunpack.c.l.bf16 %v616
          %v676 = vunpack.c.h.bf16 %v616
          %v677 = vunpack.c.l.bf16 %v617
          %v678 = vunpack.c.h.bf16 %v617
          %v679 = vunpack.c.l.bf16 %v618
          %v680 = vunpack.c.h.bf16 %v618
          %v681 = vunpack.c.l.bf16 %v619
          %v682 = vunpack.c.h.bf16 %v619
          %v683 = vunpack.c.l.bf16 %v620
          %v684 = vunpack.c.h.bf16 %v620
          %685 = vst [vmem:[#allocation2 + $0x10] sm:$0xff] %v621
          %686 = vst [vmem:[#allocation2 + $0x18] sm:$0xff] %v622
          %687 = vst [vmem:[#allocation2 + $0x30] sm:$0xff] %v623
          %688 = vst [vmem:[#allocation2 + $0x38] sm:$0xff] %v624
          %689 = vst [vmem:[#allocation2 + $0x50] sm:$0xff] %v625
          %690 = vst [vmem:[#allocation2 + $0x58] sm:$0xff] %v626
          %691 = vst [vmem:[#allocation2 + $0x70] sm:$0xff] %v627
          %692 = vst [vmem:[#allocation2 + $0x78] sm:$0xff] %v628
          %693 = vst [vmem:[#allocation2 + $0x90] sm:$0xff] %v629
          %694 = vst [vmem:[#allocation2 + $0x98] sm:$0xff] %v630
          %695 = vst [vmem:[#allocation2 + $0xb0] sm:$0xff] %v631
          %696 = vst [vmem:[#allocation2 + $0xb8] sm:$0xff] %v632
          %697 = vst [vmem:[#allocation2 + $0xd0] sm:$0xff] %v633
          %698 = vst [vmem:[#allocation2 + $0xd8] sm:$0xff] %v634
          %699 = vst [vmem:[#allocation2 + $0xf0] sm:$0xff] %v635
          %700 = vst [vmem:[#allocation2 + $0xf8] sm:$0xff] %v636
          %701 = vst [vmem:[#allocation2 + $0x110] sm:$0xff] %v637
          %702 = vst [vmem:[#allocation2 + $0x118] sm:$0xff] %v638
          %703 = vst [vmem:[#allocation2 + $0x130] sm:$0xff] %v639
          %704 = vst [vmem:[#allocation2 + $0x138] sm:$0xff] %v640
          %705 = vst [vmem:[#allocation2 + $0x150] sm:$0xff] %v641
          %706 = vst [vmem:[#allocation2 + $0x158] sm:$0xff] %v642
          %707 = vst [vmem:[#allocation2 + $0x170] sm:$0xff] %v643
          %708 = vst [vmem:[#allocation2 + $0x178] sm:$0xff] %v644
          %709 = vst [vmem:[#allocation2 + $0x190] sm:$0xff] %v645
          %710 = vst [vmem:[#allocation2 + $0x198] sm:$0xff] %v646
          %711 = vst [vmem:[#allocation2 + $0x1b0] sm:$0xff] %v647
          %712 = vst [vmem:[#allocation2 + $0x1b8] sm:$0xff] %v648
          %713 = vst [vmem:[#allocation2 + $0x1d0] sm:$0xff] %v649
          %714 = vst [vmem:[#allocation2 + $0x1d8] sm:$0xff] %v650
          %715 = vst [vmem:[#allocation2 + $0x1f0] sm:$0xff] %v651
          %716 = vst [vmem:[#allocation2 + $0x1f8] sm:$0xff] %v652
          %717 = vst [vmem:[#allocation2 + $0x210] sm:$0xff] %v653
          %718 = vst [vmem:[#allocation2 + $0x218] sm:$0xff] %v654
          %719 = vst [vmem:[#allocation2 + $0x230] sm:$0xff] %v655
          %720 = vst [vmem:[#allocation2 + $0x238] sm:$0xff] %v656
          %721 = vst [vmem:[#allocation2 + $0x250] sm:$0xff] %v657
          %722 = vst [vmem:[#allocation2 + $0x258] sm:$0xff] %v658
          %723 = vst [vmem:[#allocation2 + $0x270] sm:$0xff] %v659
          %724 = vst [vmem:[#allocation2 + $0x278] sm:$0xff] %v660
          %725 = vst [vmem:[#allocation2 + $0x290] sm:$0xff] %v661
          %726 = vst [vmem:[#allocation2 + $0x298] sm:$0xff] %v662
          %727 = vst [vmem:[#allocation2 + $0x2b0] sm:$0xff] %v663
          %728 = vst [vmem:[#allocation2 + $0x2b8] sm:$0xff] %v664
          %729 = vst [vmem:[#allocation2 + $0x2d0] sm:$0xff] %v665
          %730 = vst [vmem:[#allocation2 + $0x2d8] sm:$0xff] %v666
          %731 = vst [vmem:[#allocation2 + $0x2f0] sm:$0xff] %v667
          %732 = vst [vmem:[#allocation2 + $0x2f8] sm:$0xff] %v668
          %733 = vst [vmem:[#allocation2 + $0x310] sm:$0xff] %v669
          %734 = vst [vmem:[#allocation2 + $0x318] sm:$0xff] %v670
          %735 = vst [vmem:[#allocation2 + $0x330] sm:$0xff] %v671
          %736 = vst [vmem:[#allocation2 + $0x338] sm:$0xff] %v672
          %737 = vst [vmem:[#allocation2 + $0x350] sm:$0xff] %v673
          %738 = vst [vmem:[#allocation2 + $0x358] sm:$0xff] %v674
          %739 = vst [vmem:[#allocation2 + $0x370] sm:$0xff] %v675
          %740 = vst [vmem:[#allocation2 + $0x378] sm:$0xff] %v676
          %741 = vst [vmem:[#allocation2 + $0x390] sm:$0xff] %v677
          %742 = vst [vmem:[#allocation2 + $0x398] sm:$0xff] %v678
          %743 = vst [vmem:[#allocation2 + $0x3b0] sm:$0xff] %v679
          %744 = vst [vmem:[#allocation2 + $0x3b8] sm:$0xff] %v680
          %745 = vst [vmem:[#allocation2 + $0x3d0] sm:$0xff] %v681
          %746 = vst [vmem:[#allocation2 + $0x3d8] sm:$0xff] %v682
          %747 = vst [vmem:[#allocation2 + $0x3f0] sm:$0xff] %v683
          %748 = vst [vmem:[#allocation2 + $0x3f8] sm:$0xff] %v684
        $region82: #{node_classifier_forward.2} parent=73 // pred_fallthru
          _
        %v749 = vld [vmem:[#allocation2] sm:$0xff]
        %v750 = vld [vmem:[#allocation2 + $0x8] sm:$0xff]
        %v751 = vld [vmem:[#allocation2 + $0x20] sm:$0xff]
        %v752 = vld [vmem:[#allocation2 + $0x28] sm:$0xff]
        %v753 = vld [vmem:[#allocation2 + $0x40] sm:$0xff]
        %v754 = vld [vmem:[#allocation2 + $0x48] sm:$0xff]
        %v755 = vld [vmem:[#allocation2 + $0x60] sm:$0xff]
        %v756 = vld [vmem:[#allocation2 + $0x68] sm:$0xff]
        %v757 = vld [vmem:[#allocation2 + $0x80] sm:$0xff]
        %v758 = vld [vmem:[#allocation2 + $0x88] sm:$0xff]
        %v759 = vld [vmem:[#allocation2 + $0xa0] sm:$0xff]
        %v760 = vld [vmem:[#allocation2 + $0xa8] sm:$0xff]
        %v761 = vld [vmem:[#allocation2 + $0xc0] sm:$0xff]
        %v762 = vld [vmem:[#allocation2 + $0xc8] sm:$0xff]
        %v763 = vld [vmem:[#allocation2 + $0xe0] sm:$0xff]
        %v764 = vld [vmem:[#allocation2 + $0xe8] sm:$0xff]
        %v765 = vld [vmem:[#allocation2 + $0x100] sm:$0xff]
        %v766 = vld [vmem:[#allocation2 + $0x108] sm:$0xff]
        %v767 = vld [vmem:[#allocation2 + $0x120] sm:$0xff]
        %v768 = vld [vmem:[#allocation2 + $0x128] sm:$0xff]
        %v769 = vld [vmem:[#allocation2 + $0x140] sm:$0xff]
        %v770 = vld [vmem:[#allocation2 + $0x148] sm:$0xff]
        %v771 = vld [vmem:[#allocation2 + $0x160] sm:$0xff]
        %v772 = vld [vmem:[#allocation2 + $0x168] sm:$0xff]
        %v773 = vld [vmem:[#allocation2 + $0x180] sm:$0xff]
        %v774 = vld [vmem:[#allocation2 + $0x188] sm:$0xff]
        %v775 = vld [vmem:[#allocation2 + $0x1a0] sm:$0xff]
        %v776 = vld [vmem:[#allocation2 + $0x1a8] sm:$0xff]
        %v777 = vld [vmem:[#allocation2 + $0x1c0] sm:$0xff]
        %v778 = vld [vmem:[#allocation2 + $0x1c8] sm:$0xff]
        %v779 = vld [vmem:[#allocation2 + $0x1e0] sm:$0xff]
        %v780 = vld [vmem:[#allocation2 + $0x1e8] sm:$0xff]
        %v781 = vld [vmem:[#allocation2 + $0x200] sm:$0xff]
        %v782 = vld [vmem:[#allocation2 + $0x208] sm:$0xff]
        %v783 = vld [vmem:[#allocation2 + $0x220] sm:$0xff]
        %v784 = vld [vmem:[#allocation2 + $0x228] sm:$0xff]
        %v785 = vld [vmem:[#allocation2 + $0x240] sm:$0xff]
        %v786 = vld [vmem:[#allocation2 + $0x248] sm:$0xff]
        %v787 = vld [vmem:[#allocation2 + $0x260] sm:$0xff]
        %v788 = vld [vmem:[#allocation2 + $0x268] sm:$0xff]
        %v789 = vld [vmem:[#allocation2 + $0x280] sm:$0xff]
        %v790 = vld [vmem:[#allocation2 + $0x288] sm:$0xff]
        %v791 = vld [vmem:[#allocation2 + $0x2a0] sm:$0xff]
        %v792 = vld [vmem:[#allocation2 + $0x2a8] sm:$0xff]
        %v793 = vld [vmem:[#allocation2 + $0x2c0] sm:$0xff]
        %v794 = vld [vmem:[#allocation2 + $0x2c8] sm:$0xff]
        %v795 = vld [vmem:[#allocation2 + $0x2e0] sm:$0xff]
        %v796 = vld [vmem:[#allocation2 + $0x2e8] sm:$0xff]
        %v797 = vld [vmem:[#allocation2 + $0x300] sm:$0xff]
        %v798 = vld [vmem:[#allocation2 + $0x308] sm:$0xff]
        %v799 = vld [vmem:[#allocation2 + $0x320] sm:$0xff]
        %v800 = vld [vmem:[#allocation2 + $0x328] sm:$0xff]
        %v801 = vld [vmem:[#allocation2 + $0x340] sm:$0xff]
        %v802 = vld [vmem:[#allocation2 + $0x348] sm:$0xff]
        %v803 = vld [vmem:[#allocation2 + $0x360] sm:$0xff]
        %v804 = vld [vmem:[#allocation2 + $0x368] sm:$0xff]
        %v805 = vld [vmem:[#allocation2 + $0x380] sm:$0xff]
        %v806 = vld [vmem:[#allocation2 + $0x388] sm:$0xff]
        %v807 = vld [vmem:[#allocation2 + $0x3a0] sm:$0xff]
        %v808 = vld [vmem:[#allocation2 + $0x3a8] sm:$0xff]
        %v809 = vld [vmem:[#allocation2 + $0x3c0] sm:$0xff]
        %v810 = vld [vmem:[#allocation2 + $0x3c8] sm:$0xff]
        %v811 = vld [vmem:[#allocation2 + $0x3e0] sm:$0xff]
        %v812 = vld [vmem:[#allocation2 + $0x3e8] sm:$0xff]
        %v813 = vld [vmem:[%s396] sm:$0xff]
        %v814 = vld [vmem:[%s396 + $0x8] sm:$0xff]
        %v815 = vld [vmem:[%s396 + $0x10] sm:$0xff]
        %v816 = vld [vmem:[%s396 + $0x18] sm:$0xff]
        %v817 = vld [vmem:[%s396 + $0x20] sm:$0xff]
        %v818 = vld [vmem:[%s396 + $0x28] sm:$0xff]
        %v819 = vld [vmem:[%s396 + $0x30] sm:$0xff]
        %v820 = vld [vmem:[%s396 + $0x38] sm:$0xff]
        %v821 = vld [vmem:[%s396 + $0x40] sm:$0xff]
        %v822 = vld [vmem:[%s396 + $0x48] sm:$0xff]
        %v823 = vld [vmem:[%s396 + $0x50] sm:$0xff]
        %v824 = vld [vmem:[%s396 + $0x58] sm:$0xff]
        %v825 = vld [vmem:[%s396 + $0x60] sm:$0xff]
        %v826 = vld [vmem:[%s396 + $0x68] sm:$0xff]
        %v827 = vld [vmem:[%s396 + $0x70] sm:$0xff]
        %v828 = vld [vmem:[%s396 + $0x78] sm:$0xff]
        %v829 = vld [vmem:[%s396 + $0x80] sm:$0xff]
        %v830 = vld [vmem:[%s396 + $0x88] sm:$0xff]
        %v831 = vld [vmem:[%s396 + $0x90] sm:$0xff]
        %v832 = vld [vmem:[%s396 + $0x98] sm:$0xff]
        %v833 = vld [vmem:[%s396 + $0xa0] sm:$0xff]
        %v834 = vld [vmem:[%s396 + $0xa8] sm:$0xff]
        %v835 = vld [vmem:[%s396 + $0xb0] sm:$0xff]
        %v836 = vld [vmem:[%s396 + $0xb8] sm:$0xff]
        %v837 = vld [vmem:[%s396 + $0xc0] sm:$0xff]
        %v838 = vld [vmem:[%s396 + $0xc8] sm:$0xff]
        %v839 = vld [vmem:[%s396 + $0xd0] sm:$0xff]
        %v840 = vld [vmem:[%s396 + $0xd8] sm:$0xff]
        %v841 = vld [vmem:[%s396 + $0xe0] sm:$0xff]
        %v842 = vld [vmem:[%s396 + $0xe8] sm:$0xff]
        %v843 = vld [vmem:[%s396 + $0xf0] sm:$0xff]
        %v844 = vld [vmem:[%s396 + $0xf8] sm:$0xff]
        %v845 = vld [vmem:[%s441] sm:$0xff]
        %v846 = vld [vmem:[%s441 + $0x8] sm:$0xff]
        %v847 = vld [vmem:[%s441 + $0x10] sm:$0xff]
        %v848 = vld [vmem:[%s441 + $0x18] sm:$0xff]
        %v849 = vld [vmem:[%s441 + $0x20] sm:$0xff]
        %v850 = vld [vmem:[%s441 + $0x28] sm:$0xff]
        %v851 = vld [vmem:[%s441 + $0x30] sm:$0xff]
        %v852 = vld [vmem:[%s441 + $0x38] sm:$0xff]
        %v853 = vld [vmem:[%s441 + $0x40] sm:$0xff]
        %v854 = vld [vmem:[%s441 + $0x48] sm:$0xff]
        %v855 = vld [vmem:[%s441 + $0x50] sm:$0xff]
        %v856 = vld [vmem:[%s441 + $0x58] sm:$0xff]
        %v857 = vld [vmem:[%s441 + $0x60] sm:$0xff]
        %v858 = vld [vmem:[%s441 + $0x68] sm:$0xff]
        %v859 = vld [vmem:[%s441 + $0x70] sm:$0xff]
        %v860 = vld [vmem:[%s441 + $0x78] sm:$0xff]
        %v861 = vld [vmem:[%s441 + $0x80] sm:$0xff]
        %v862 = vld [vmem:[%s441 + $0x88] sm:$0xff]
        %v863 = vld [vmem:[%s441 + $0x90] sm:$0xff]
        %v864 = vld [vmem:[%s441 + $0x98] sm:$0xff]
        %v865 = vld [vmem:[%s441 + $0xa0] sm:$0xff]
        %v866 = vld [vmem:[%s441 + $0xa8] sm:$0xff]
        %v867 = vld [vmem:[%s441 + $0xb0] sm:$0xff]
        %v868 = vld [vmem:[%s441 + $0xb8] sm:$0xff]
        %v869 = vld [vmem:[%s441 + $0xc0] sm:$0xff]
        %v870 = vld [vmem:[%s441 + $0xc8] sm:$0xff]
        %v871 = vld [vmem:[%s441 + $0xd0] sm:$0xff]
        %v872 = vld [vmem:[%s441 + $0xd8] sm:$0xff]
        %v873 = vld [vmem:[%s441 + $0xe0] sm:$0xff]
        %v874 = vld [vmem:[%s441 + $0xe8] sm:$0xff]
        %v875 = vld [vmem:[%s441 + $0xf0] sm:$0xff]
        %v876 = vld [vmem:[%s441 + $0xf8] sm:$0xff]
        %v909 = vunpack.c.l.b16 %v813
        %v910 = vunpack.c.h.b16 %v813
        %v911 = vunpack.c.l.b16 %v814
        %v912 = vunpack.c.h.b16 %v814
        %v913 = vunpack.c.l.b16 %v815
        %v914 = vunpack.c.h.b16 %v815
        %v915 = vunpack.c.l.b16 %v816
        %v916 = vunpack.c.h.b16 %v816
        %v917 = vunpack.c.l.b16 %v817
        %v918 = vunpack.c.h.b16 %v817
        %v919 = vunpack.c.l.b16 %v818
        %v920 = vunpack.c.h.b16 %v818
        %v921 = vunpack.c.l.b16 %v819
        %v922 = vunpack.c.h.b16 %v819
        %v923 = vunpack.c.l.b16 %v820
        %v924 = vunpack.c.h.b16 %v820
        %v925 = vunpack.c.l.b16 %v821
        %v926 = vunpack.c.h.b16 %v821
        %v927 = vunpack.c.l.b16 %v822
        %v928 = vunpack.c.h.b16 %v822
        %v929 = vunpack.c.l.b16 %v823
        %v930 = vunpack.c.h.b16 %v823
        %v931 = vunpack.c.l.b16 %v824
        %v932 = vunpack.c.h.b16 %v824
        %v933 = vunpack.c.l.b16 %v825
        %v934 = vunpack.c.h.b16 %v825
        %v935 = vunpack.c.l.b16 %v826
        %v936 = vunpack.c.h.b16 %v826
        %v937 = vunpack.c.l.b16 %v827
        %v938 = vunpack.c.h.b16 %v827
        %v939 = vunpack.c.l.b16 %v828
        %v940 = vunpack.c.h.b16 %v828
        %v941 = vunpack.c.l.b16 %v829
        %v942 = vunpack.c.h.b16 %v829
        %v943 = vunpack.c.l.b16 %v830
        %v944 = vunpack.c.h.b16 %v830
        %v945 = vunpack.c.l.b16 %v831
        %v946 = vunpack.c.h.b16 %v831
        %v947 = vunpack.c.l.b16 %v832
        %v948 = vunpack.c.h.b16 %v832
        %v949 = vunpack.c.l.b16 %v833
        %v950 = vunpack.c.h.b16 %v833
        %v951 = vunpack.c.l.b16 %v834
        %v952 = vunpack.c.h.b16 %v834
        %v953 = vunpack.c.l.b16 %v835
        %v954 = vunpack.c.h.b16 %v835
        %v955 = vunpack.c.l.b16 %v836
        %v956 = vunpack.c.h.b16 %v836
        %v957 = vunpack.c.l.b16 %v837
        %v958 = vunpack.c.h.b16 %v837
        %v959 = vunpack.c.l.b16 %v838
        %v960 = vunpack.c.h.b16 %v838
        %v961 = vunpack.c.l.b16 %v839
        %v962 = vunpack.c.h.b16 %v839
        %v963 = vunpack.c.l.b16 %v840
        %v964 = vunpack.c.h.b16 %v840
        %v965 = vunpack.c.l.b16 %v841
        %v966 = vunpack.c.h.b16 %v841
        %v967 = vunpack.c.l.b16 %v842
        %v968 = vunpack.c.h.b16 %v842
        %v969 = vunpack.c.l.b16 %v843
        %v970 = vunpack.c.h.b16 %v843
        %v971 = vunpack.c.l.b16 %v844
        %v972 = vunpack.c.h.b16 %v844
        %v973 = vpack.c.b16 %v911, %v909
        %v974 = vpack.c.b16 %v912, %v910
        %v975 = vpack.c.b16 %v915, %v913
        %v976 = vpack.c.b16 %v916, %v914
        %v977 = vpack.c.b16 %v919, %v917
        %v978 = vpack.c.b16 %v920, %v918
        %v979 = vpack.c.b16 %v923, %v921
        %v980 = vpack.c.b16 %v924, %v922
        %v981 = vpack.c.b16 %v927, %v925
        %v982 = vpack.c.b16 %v928, %v926
        %v983 = vpack.c.b16 %v931, %v929
        %v984 = vpack.c.b16 %v932, %v930
        %v985 = vpack.c.b16 %v935, %v933
        %v986 = vpack.c.b16 %v936, %v934
        %v987 = vpack.c.b16 %v939, %v937
        %v988 = vpack.c.b16 %v940, %v938
        %v989 = vpack.c.b16 %v943, %v941
        %v990 = vpack.c.b16 %v944, %v942
        %v991 = vpack.c.b16 %v947, %v945
        %v992 = vpack.c.b16 %v948, %v946
        %v993 = vpack.c.b16 %v951, %v949
        %v994 = vpack.c.b16 %v952, %v950
        %v995 = vpack.c.b16 %v955, %v953
        %v996 = vpack.c.b16 %v956, %v954
        %v997 = vpack.c.b16 %v959, %v957
        %v998 = vpack.c.b16 %v960, %v958
        %v999 = vpack.c.b16 %v963, %v961
        %v1000 = vpack.c.b16 %v964, %v962
        %v1001 = vpack.c.b16 %v967, %v965
        %v1002 = vpack.c.b16 %v968, %v966
        %v1003 = vpack.c.b16 %v971, %v969
        %v1004 = vpack.c.b16 %v972, %v970
        %v1069 = vunpack.c.l.b16 %v845
        %v1070 = vunpack.c.h.b16 %v845
        %v1071 = vunpack.c.l.b16 %v846
        %v1072 = vunpack.c.h.b16 %v846
        %v1073 = vunpack.c.l.b16 %v847
        %v1074 = vunpack.c.h.b16 %v847
        %v1075 = vunpack.c.l.b16 %v848
        %v1076 = vunpack.c.h.b16 %v848
        %v1077 = vunpack.c.l.b16 %v849
        %v1078 = vunpack.c.h.b16 %v849
        %v1079 = vunpack.c.l.b16 %v850
        %v1080 = vunpack.c.h.b16 %v850
        %v1081 = vunpack.c.l.b16 %v851
        %v1082 = vunpack.c.h.b16 %v851
        %v1083 = vunpack.c.l.b16 %v852
        %v1084 = vunpack.c.h.b16 %v852
        %v1085 = vunpack.c.l.b16 %v853
        %v1086 = vunpack.c.h.b16 %v853
        %v1087 = vunpack.c.l.b16 %v854
        %v1088 = vunpack.c.h.b16 %v854
        %v1089 = vunpack.c.l.b16 %v855
        %v1090 = vunpack.c.h.b16 %v855
        %v1091 = vunpack.c.l.b16 %v856
        %v1092 = vunpack.c.h.b16 %v856
        %v1093 = vunpack.c.l.b16 %v857
        %v1094 = vunpack.c.h.b16 %v857
        %v1095 = vunpack.c.l.b16 %v858
        %v1096 = vunpack.c.h.b16 %v858
        %v1097 = vunpack.c.l.b16 %v859
        %v1098 = vunpack.c.h.b16 %v859
        %v1099 = vunpack.c.l.b16 %v860
        %v1100 = vunpack.c.h.b16 %v860
        %v1101 = vunpack.c.l.b16 %v861
        %v1102 = vunpack.c.h.b16 %v861
        %v1103 = vunpack.c.l.b16 %v862
        %v1104 = vunpack.c.h.b16 %v862
        %v1105 = vunpack.c.l.b16 %v863
        %v1106 = vunpack.c.h.b16 %v863
        %v1107 = vunpack.c.l.b16 %v864
        %v1108 = vunpack.c.h.b16 %v864
        %v1109 = vunpack.c.l.b16 %v865
        %v1110 = vunpack.c.h.b16 %v865
        %v1111 = vunpack.c.l.b16 %v866
        %v1112 = vunpack.c.h.b16 %v866
        %v1113 = vunpack.c.l.b16 %v867
        %v1114 = vunpack.c.h.b16 %v867
        %v1115 = vunpack.c.l.b16 %v868
        %v1116 = vunpack.c.h.b16 %v868
        %v1117 = vunpack.c.l.b16 %v869
        %v1118 = vunpack.c.h.b16 %v869
        %v1119 = vunpack.c.l.b16 %v870
        %v1120 = vunpack.c.h.b16 %v870
        %v1121 = vunpack.c.l.b16 %v871
        %v1122 = vunpack.c.h.b16 %v871
        %v1123 = vunpack.c.l.b16 %v872
        %v1124 = vunpack.c.h.b16 %v872
        %v1125 = vunpack.c.l.b16 %v873
        %v1126 = vunpack.c.h.b16 %v873
        %v1127 = vunpack.c.l.b16 %v874
        %v1128 = vunpack.c.h.b16 %v874
        %v1129 = vunpack.c.l.b16 %v875
        %v1130 = vunpack.c.h.b16 %v875
        %v1131 = vunpack.c.l.b16 %v876
        %v1132 = vunpack.c.h.b16 %v876
        %v1133 = vpack.c.b16 %v1071, %v1069
        %v1134 = vpack.c.b16 %v1072, %v1070
        %v1135 = vpack.c.b16 %v1075, %v1073
        %v1136 = vpack.c.b16 %v1076, %v1074
        %v1137 = vpack.c.b16 %v1079, %v1077
        %v1138 = vpack.c.b16 %v1080, %v1078
        %v1139 = vpack.c.b16 %v1083, %v1081
        %v1140 = vpack.c.b16 %v1084, %v1082
        %v1141 = vpack.c.b16 %v1087, %v1085
        %v1142 = vpack.c.b16 %v1088, %v1086
        %v1143 = vpack.c.b16 %v1091, %v1089
        %v1144 = vpack.c.b16 %v1092, %v1090
        %v1145 = vpack.c.b16 %v1095, %v1093
        %v1146 = vpack.c.b16 %v1096, %v1094
        %v1147 = vpack.c.b16 %v1099, %v1097
        %v1148 = vpack.c.b16 %v1100, %v1098
        %v1149 = vpack.c.b16 %v1103, %v1101
        %v1150 = vpack.c.b16 %v1104, %v1102
        %v1151 = vpack.c.b16 %v1107, %v1105
        %v1152 = vpack.c.b16 %v1108, %v1106
        %v1153 = vpack.c.b16 %v1111, %v1109
        %v1154 = vpack.c.b16 %v1112, %v1110
        %v1155 = vpack.c.b16 %v1115, %v1113
        %v1156 = vpack.c.b16 %v1116, %v1114
        %v1157 = vpack.c.b16 %v1119, %v1117
        %v1158 = vpack.c.b16 %v1120, %v1118
        %v1159 = vpack.c.b16 %v1123, %v1121
        %v1160 = vpack.c.b16 %v1124, %v1122
        %v1161 = vpack.c.b16 %v1127, %v1125
        %v1162 = vpack.c.b16 %v1128, %v1126
        %v1163 = vpack.c.b16 %v1131, %v1129
        %v1164 = vpack.c.b16 %v1132, %v1130
        %1197 = vmatprep.subr.bf16.mxu0 %v1148
        %1198 = vmatpush1.bf16.msra.mxu0 %v1147
        %1199 = vmatprep.subr.bf16.mxu0 %v1146
        %1200 = vmatpush1.bf16.msra.mxu0 %v1145
        %1201 = vmatprep.subr.bf16.mxu0 %v1144
        %1202 = vmatpush1.bf16.msra.mxu0 %v1143
        %1203 = vmatprep.subr.bf16.mxu0 %v1142
        %1204 = vmatpush1.bf16.msra.mxu0 %v1141
        %1205 = vmatprep.subr.bf16.mxu0 %v1140
        %1206 = vmatpush1.bf16.msra.mxu0 %v1139
        %1207 = vmatprep.subr.bf16.mxu0 %v1138
        %1208 = vmatpush1.bf16.msra.mxu0 %v1137
        %1209 = vmatprep.subr.bf16.mxu0 %v1136
        %1210 = vmatpush1.bf16.msra.mxu0 %v1135
        %1211 = vmatprep.subr.bf16.mxu0 %v1134
        %1212 = vmatpush1.bf16.msra.mxu0 %v1133
        %1213 = vmatprep.subr.bf16.mxu0 %v1164
        %1214 = vmatpush2.bf16.msra.mxu0 %v1163
        %1215 = vmatprep.subr.bf16.mxu0 %v1162
        %1216 = vmatpush2.bf16.msra.mxu0 %v1161
        %1217 = vmatprep.subr.bf16.mxu0 %v1160
        %1218 = vmatpush2.bf16.msra.mxu0 %v1159
        %1219 = vmatprep.subr.bf16.mxu0 %v1158
        %1220 = vmatpush2.bf16.msra.mxu0 %v1157
        %1221 = vmatprep.subr.bf16.mxu0 %v1156
        %1222 = vmatpush2.bf16.msra.mxu0 %v1155
        %1223 = vmatprep.subr.bf16.mxu0 %v1154
        %1224 = vmatpush2.bf16.msra.mxu0 %v1153
        %1225 = vmatprep.subr.bf16.mxu0 %v1152
        %1226 = vmatpush2.bf16.msra.mxu0 %v1151
        %1227 = vmatprep.subr.bf16.mxu0 %v1150
        %1228 = vmatpush2.bf16.msra.mxu0 %v1149
        %1229 = vmatprep.mubr.bf16.mxu0 %v974
        %1230 = vmatmul.mubr.bf16.gmra.mxu0 %v973
        %v1231 = vpop.f32.mrf.mxu0
        %v1232 = vadd.f32 0.0, %v1231
        %v1233 = vpop.f32.mrf.mxu0
        %v1234 = vadd.f32 0.0, %v1233
        %v1235 = vpop.f32.mrf.mxu0
        %v1236 = vadd.f32 0.0, %v1235
        %v1237 = vpop.f32.mrf.mxu0
        %v1238 = vadd.f32 0.0, %v1237
        %1239 = vmatprep.mubr.bf16.mxu0 %v976
        %1240 = vmatmul.mubr.bf16.gmra.mxu0 %v975
        %v1241 = vpop.f32.mrf.mxu0
        %v1242 = vadd.f32 0.0, %v1241
        %v1243 = vpop.f32.mrf.mxu0
        %v1244 = vadd.f32 0.0, %v1243
        %v1245 = vpop.f32.mrf.mxu0
        %v1246 = vadd.f32 0.0, %v1245
        %v1247 = vpop.f32.mrf.mxu0
        %v1248 = vadd.f32 0.0, %v1247
        %1249 = vmatprep.mubr.bf16.mxu0 %v978
        %1250 = vmatmul.mubr.bf16.gmra.mxu0 %v977
        %v1251 = vpop.f32.mrf.mxu0
        %v1252 = vadd.f32 0.0, %v1251
        %v1253 = vpop.f32.mrf.mxu0
        %v1254 = vadd.f32 0.0, %v1253
        %v1255 = vpop.f32.mrf.mxu0
        %v1256 = vadd.f32 0.0, %v1255
        %v1257 = vpop.f32.mrf.mxu0
        %v1258 = vadd.f32 0.0, %v1257
        %1259 = vmatprep.mubr.bf16.mxu0 %v980
        %1260 = vmatmul.mubr.bf16.gmra.mxu0 %v979
        %v1261 = vpop.f32.mrf.mxu0
        %v1262 = vadd.f32 0.0, %v1261
        %v1263 = vpop.f32.mrf.mxu0
        %v1264 = vadd.f32 0.0, %v1263
        %v1265 = vpop.f32.mrf.mxu0
        %v1266 = vadd.f32 0.0, %v1265
        %v1267 = vpop.f32.mrf.mxu0
        %v1268 = vadd.f32 0.0, %v1267
        %1269 = vmatprep.mubr.bf16.mxu0 %v982
        %1270 = vmatmul.mubr.bf16.gmra.mxu0 %v981
        %v1271 = vpop.f32.mrf.mxu0
        %v1272 = vadd.f32 0.0, %v1271
        %v1273 = vpop.f32.mrf.mxu0
        %v1274 = vadd.f32 0.0, %v1273
        %v1275 = vpop.f32.mrf.mxu0
        %v1276 = vadd.f32 0.0, %v1275
        %v1277 = vpop.f32.mrf.mxu0
        %v1278 = vadd.f32 0.0, %v1277
        %1279 = vmatprep.mubr.bf16.mxu0 %v984
        %1280 = vmatmul.mubr.bf16.gmra.mxu0 %v983
        %v1281 = vpop.f32.mrf.mxu0
        %v1282 = vadd.f32 0.0, %v1281
        %v1283 = vpop.f32.mrf.mxu0
        %v1284 = vadd.f32 0.0, %v1283
        %v1285 = vpop.f32.mrf.mxu0
        %v1286 = vadd.f32 0.0, %v1285
        %v1287 = vpop.f32.mrf.mxu0
        %v1288 = vadd.f32 0.0, %v1287
        %1289 = vmatprep.mubr.bf16.mxu0 %v986
        %1290 = vmatmul.mubr.bf16.gmra.mxu0 %v985
        %v1291 = vpop.f32.mrf.mxu0
        %v1292 = vadd.f32 0.0, %v1291
        %v1293 = vpop.f32.mrf.mxu0
        %v1294 = vadd.f32 0.0, %v1293
        %v1295 = vpop.f32.mrf.mxu0
        %v1296 = vadd.f32 0.0, %v1295
        %v1297 = vpop.f32.mrf.mxu0
        %v1298 = vadd.f32 0.0, %v1297
        %1299 = vmatprep.mubr.bf16.mxu0 %v988
        %1300 = vmatmul.mubr.bf16.gmra.mxu0 %v987
        %v1301 = vpop.f32.mrf.mxu0
        %v1302 = vadd.f32 0.0, %v1301
        %v1303 = vpop.f32.mrf.mxu0
        %v1304 = vadd.f32 0.0, %v1303
        %v1305 = vpop.f32.mrf.mxu0
        %v1306 = vadd.f32 0.0, %v1305
        %v1307 = vpop.f32.mrf.mxu0
        %v1308 = vadd.f32 0.0, %v1307
        %1309 = vmatprep.mubr.bf16.mxu0 %v990
        %1310 = vmatmul.mubr.bf16.gmra.mxu0 %v989
        %v1311 = vpop.f32.mrf.mxu0
        %v1312 = vadd.f32 0.0, %v1311
        %v1313 = vpop.f32.mrf.mxu0
        %v1314 = vadd.f32 0.0, %v1313
        %v1315 = vpop.f32.mrf.mxu0
        %v1316 = vadd.f32 0.0, %v1315
        %v1317 = vpop.f32.mrf.mxu0
        %v1318 = vadd.f32 0.0, %v1317
        %1319 = vmatprep.mubr.bf16.mxu0 %v992
        %1320 = vmatmul.mubr.bf16.gmra.mxu0 %v991
        %v1321 = vpop.f32.mrf.mxu0
        %v1322 = vadd.f32 0.0, %v1321
        %v1323 = vpop.f32.mrf.mxu0
        %v1324 = vadd.f32 0.0, %v1323
        %v1325 = vpop.f32.mrf.mxu0
        %v1326 = vadd.f32 0.0, %v1325
        %v1327 = vpop.f32.mrf.mxu0
        %v1328 = vadd.f32 0.0, %v1327
        %1329 = vmatprep.mubr.bf16.mxu0 %v994
        %1330 = vmatmul.mubr.bf16.gmra.mxu0 %v993
        %v1331 = vpop.f32.mrf.mxu0
        %v1332 = vadd.f32 0.0, %v1331
        %v1333 = vpop.f32.mrf.mxu0
        %v1334 = vadd.f32 0.0, %v1333
        %v1335 = vpop.f32.mrf.mxu0
        %v1336 = vadd.f32 0.0, %v1335
        %v1337 = vpop.f32.mrf.mxu0
        %v1338 = vadd.f32 0.0, %v1337
        %1339 = vmatprep.mubr.bf16.mxu0 %v996
        %1340 = vmatmul.mubr.bf16.gmra.mxu0 %v995
        %v1341 = vpop.f32.mrf.mxu0
        %v1342 = vadd.f32 0.0, %v1341
        %v1343 = vpop.f32.mrf.mxu0
        %v1344 = vadd.f32 0.0, %v1343
        %v1345 = vpop.f32.mrf.mxu0
        %v1346 = vadd.f32 0.0, %v1345
        %v1347 = vpop.f32.mrf.mxu0
        %v1348 = vadd.f32 0.0, %v1347
        %1349 = vmatprep.mubr.bf16.mxu0 %v998
        %1350 = vmatmul.mubr.bf16.gmra.mxu0 %v997
        %v1351 = vpop.f32.mrf.mxu0
        %v1352 = vadd.f32 0.0, %v1351
        %v1353 = vpop.f32.mrf.mxu0
        %v1354 = vadd.f32 0.0, %v1353
        %v1355 = vpop.f32.mrf.mxu0
        %v1356 = vadd.f32 0.0, %v1355
        %v1357 = vpop.f32.mrf.mxu0
        %v1358 = vadd.f32 0.0, %v1357
        %1359 = vmatprep.mubr.bf16.mxu0 %v1000
        %1360 = vmatmul.mubr.bf16.gmra.mxu0 %v999
        %v1361 = vpop.f32.mrf.mxu0
        %v1362 = vadd.f32 0.0, %v1361
        %v1363 = vpop.f32.mrf.mxu0
        %v1364 = vadd.f32 0.0, %v1363
        %v1365 = vpop.f32.mrf.mxu0
        %v1366 = vadd.f32 0.0, %v1365
        %v1367 = vpop.f32.mrf.mxu0
        %v1368 = vadd.f32 0.0, %v1367
        %1369 = vmatprep.mubr.bf16.mxu0 %v1002
        %1370 = vmatmul.mubr.bf16.gmra.mxu0 %v1001
        %v1371 = vpop.f32.mrf.mxu0
        %v1372 = vadd.f32 0.0, %v1371
        %v1373 = vpop.f32.mrf.mxu0
        %v1374 = vadd.f32 0.0, %v1373
        %v1375 = vpop.f32.mrf.mxu0
        %v1376 = vadd.f32 0.0, %v1375
        %v1377 = vpop.f32.mrf.mxu0
        %v1378 = vadd.f32 0.0, %v1377
        %1379 = vmatprep.mubr.bf16.mxu0 %v1004
        %1380 = vmatmul.mubr.bf16.gmra.mxu0 %v1003
        %v1381 = vpop.f32.mrf.mxu0
        %v1382 = vadd.f32 0.0, %v1381
        %v1383 = vpop.f32.mrf.mxu0
        %v1384 = vadd.f32 0.0, %v1383
        %v1385 = vpop.f32.mrf.mxu0
        %v1386 = vadd.f32 0.0, %v1385
        %v1387 = vpop.f32.mrf.mxu0
        %v1388 = vadd.f32 0.0, %v1387
        %1389 = vdwg.mxu0
        %v1390 = vadd.f32 %v749, %v1232
        %v1391 = vadd.f32 %v750, %v1234
        %v1392 = vadd.f32 %v751, %v1236
        %v1393 = vadd.f32 %v752, %v1238
        %v1394 = vadd.f32 %v753, %v1242
        %v1395 = vadd.f32 %v754, %v1244
        %v1396 = vadd.f32 %v755, %v1246
        %v1397 = vadd.f32 %v756, %v1248
        %v1398 = vadd.f32 %v757, %v1252
        %v1399 = vadd.f32 %v758, %v1254
        %v1400 = vadd.f32 %v759, %v1256
        %v1401 = vadd.f32 %v760, %v1258
        %v1402 = vadd.f32 %v761, %v1262
        %v1403 = vadd.f32 %v762, %v1264
        %v1404 = vadd.f32 %v763, %v1266
        %v1405 = vadd.f32 %v764, %v1268
        %v1406 = vadd.f32 %v765, %v1272
        %v1407 = vadd.f32 %v766, %v1274
        %v1408 = vadd.f32 %v767, %v1276
        %v1409 = vadd.f32 %v768, %v1278
        %v1410 = vadd.f32 %v769, %v1282
        %v1411 = vadd.f32 %v770, %v1284
        %v1412 = vadd.f32 %v771, %v1286
        %v1413 = vadd.f32 %v772, %v1288
        %v1414 = vadd.f32 %v773, %v1292
        %v1415 = vadd.f32 %v774, %v1294
        %v1416 = vadd.f32 %v775, %v1296
        %v1417 = vadd.f32 %v776, %v1298
        %v1418 = vadd.f32 %v777, %v1302
        %v1419 = vadd.f32 %v778, %v1304
        %v1420 = vadd.f32 %v779, %v1306
        %v1421 = vadd.f32 %v780, %v1308
        %v1422 = vadd.f32 %v781, %v1312
        %v1423 = vadd.f32 %v782, %v1314
        %v1424 = vadd.f32 %v783, %v1316
        %v1425 = vadd.f32 %v784, %v1318
        %v1426 = vadd.f32 %v785, %v1322
        %v1427 = vadd.f32 %v786, %v1324
        %v1428 = vadd.f32 %v787, %v1326
        %v1429 = vadd.f32 %v788, %v1328
        %v1430 = vadd.f32 %v789, %v1332
        %v1431 = vadd.f32 %v790, %v1334
        %v1432 = vadd.f32 %v791, %v1336
        %v1433 = vadd.f32 %v792, %v1338
        %v1434 = vadd.f32 %v793, %v1342
        %v1435 = vadd.f32 %v794, %v1344
        %v1436 = vadd.f32 %v795, %v1346
        %v1437 = vadd.f32 %v796, %v1348
        %v1438 = vadd.f32 %v797, %v1352
        %v1439 = vadd.f32 %v798, %v1354
        %v1440 = vadd.f32 %v799, %v1356
        %v1441 = vadd.f32 %v800, %v1358
        %v1442 = vadd.f32 %v801, %v1362
        %v1443 = vadd.f32 %v802, %v1364
        %v1444 = vadd.f32 %v803, %v1366
        %v1445 = vadd.f32 %v804, %v1368
        %v1446 = vadd.f32 %v805, %v1372
        %v1447 = vadd.f32 %v806, %v1374
        %v1448 = vadd.f32 %v807, %v1376
        %v1449 = vadd.f32 %v808, %v1378
        %v1450 = vadd.f32 %v809, %v1382
        %v1451 = vadd.f32 %v810, %v1384
        %v1452 = vadd.f32 %v811, %v1386
        %v1453 = vadd.f32 %v812, %v1388
        %1454 = vst [vmem:[#allocation2] sm:$0xff] %v1390
        %1455 = vst [vmem:[#allocation2 + $0x8] sm:$0xff] %v1391
        %1456 = vst [vmem:[#allocation2 + $0x20] sm:$0xff] %v1392
        %1457 = vst [vmem:[#allocation2 + $0x28] sm:$0xff] %v1393
        %1458 = vst [vmem:[#allocation2 + $0x40] sm:$0xff] %v1394
        %1459 = vst [vmem:[#allocation2 + $0x48] sm:$0xff] %v1395
        %1460 = vst [vmem:[#allocation2 + $0x60] sm:$0xff] %v1396
        %1461 = vst [vmem:[#allocation2 + $0x68] sm:$0xff] %v1397
        %1462 = vst [vmem:[#allocation2 + $0x80] sm:$0xff] %v1398
        %1463 = vst [vmem:[#allocation2 + $0x88] sm:$0xff] %v1399
        %1464 = vst [vmem:[#allocation2 + $0xa0] sm:$0xff] %v1400
        %1465 = vst [vmem:[#allocation2 + $0xa8] sm:$0xff] %v1401
        %1466 = vst [vmem:[#allocation2 + $0xc0] sm:$0xff] %v1402
        %1467 = vst [vmem:[#allocation2 + $0xc8] sm:$0xff] %v1403
        %1468 = vst [vmem:[#allocation2 + $0xe0] sm:$0xff] %v1404
        %1469 = vst [vmem:[#allocation2 + $0xe8] sm:$0xff] %v1405
        %1470 = vst [vmem:[#allocation2 + $0x100] sm:$0xff] %v1406
        %1471 = vst [vmem:[#allocation2 + $0x108] sm:$0xff] %v1407
        %1472 = vst [vmem:[#allocation2 + $0x120] sm:$0xff] %v1408
        %1473 = vst [vmem:[#allocation2 + $0x128] sm:$0xff] %v1409
        %1474 = vst [vmem:[#allocation2 + $0x140] sm:$0xff] %v1410
        %1475 = vst [vmem:[#allocation2 + $0x148] sm:$0xff] %v1411
        %1476 = vst [vmem:[#allocation2 + $0x160] sm:$0xff] %v1412
        %1477 = vst [vmem:[#allocation2 + $0x168] sm:$0xff] %v1413
        %1478 = vst [vmem:[#allocation2 + $0x180] sm:$0xff] %v1414
        %1479 = vst [vmem:[#allocation2 + $0x188] sm:$0xff] %v1415
        %1480 = vst [vmem:[#allocation2 + $0x1a0] sm:$0xff] %v1416
        %1481 = vst [vmem:[#allocation2 + $0x1a8] sm:$0xff] %v1417
        %1482 = vst [vmem:[#allocation2 + $0x1c0] sm:$0xff] %v1418
        %1483 = vst [vmem:[#allocation2 + $0x1c8] sm:$0xff] %v1419
        %1484 = vst [vmem:[#allocation2 + $0x1e0] sm:$0xff] %v1420
        %1485 = vst [vmem:[#allocation2 + $0x1e8] sm:$0xff] %v1421
        %1486 = vst [vmem:[#allocation2 + $0x200] sm:$0xff] %v1422
        %1487 = vst [vmem:[#allocation2 + $0x208] sm:$0xff] %v1423
        %1488 = vst [vmem:[#allocation2 + $0x220] sm:$0xff] %v1424
        %1489 = vst [vmem:[#allocation2 + $0x228] sm:$0xff] %v1425
        %1490 = vst [vmem:[#allocation2 + $0x240] sm:$0xff] %v1426
        %1491 = vst [vmem:[#allocation2 + $0x248] sm:$0xff] %v1427
        %1492 = vst [vmem:[#allocation2 + $0x260] sm:$0xff] %v1428
        %1493 = vst [vmem:[#allocation2 + $0x268] sm:$0xff] %v1429
        %1494 = vst [vmem:[#allocation2 + $0x280] sm:$0xff] %v1430
        %1495 = vst [vmem:[#allocation2 + $0x288] sm:$0xff] %v1431
        %1496 = vst [vmem:[#allocation2 + $0x2a0] sm:$0xff] %v1432
        %1497 = vst [vmem:[#allocation2 + $0x2a8] sm:$0xff] %v1433
        %1498 = vst [vmem:[#allocation2 + $0x2c0] sm:$0xff] %v1434
        %1499 = vst [vmem:[#allocation2 + $0x2c8] sm:$0xff] %v1435
        %1500 = vst [vmem:[#allocation2 + $0x2e0] sm:$0xff] %v1436
        %1501 = vst [vmem:[#allocation2 + $0x2e8] sm:$0xff] %v1437
        %1502 = vst [vmem:[#allocation2 + $0x300] sm:$0xff] %v1438
        %1503 = vst [vmem:[#allocation2 + $0x308] sm:$0xff] %v1439
        %1504 = vst [vmem:[#allocation2 + $0x320] sm:$0xff] %v1440
        %1505 = vst [vmem:[#allocation2 + $0x328] sm:$0xff] %v1441
        %1506 = vst [vmem:[#allocation2 + $0x340] sm:$0xff] %v1442
        %1507 = vst [vmem:[#allocation2 + $0x348] sm:$0xff] %v1443
        %1508 = vst [vmem:[#allocation2 + $0x360] sm:$0xff] %v1444
        %1509 = vst [vmem:[#allocation2 + $0x368] sm:$0xff] %v1445
        %1510 = vst [vmem:[#allocation2 + $0x380] sm:$0xff] %v1446
        %1511 = vst [vmem:[#allocation2 + $0x388] sm:$0xff] %v1447
        %1512 = vst [vmem:[#allocation2 + $0x3a0] sm:$0xff] %v1448
        %1513 = vst [vmem:[#allocation2 + $0x3a8] sm:$0xff] %v1449
        %1514 = vst [vmem:[#allocation2 + $0x3c0] sm:$0xff] %v1450
        %1515 = vst [vmem:[#allocation2 + $0x3c8] sm:$0xff] %v1451
        %1516 = vst [vmem:[#allocation2 + $0x3e0] sm:$0xff] %v1452
        %1517 = vst [vmem:[#allocation2 + $0x3e8] sm:$0xff] %v1453
        %p1518 = scmp.eq.s32.totalorder %s21, 1
        // Predicated region
        $region83: #{node_classifier_forward.2} parent=73 // pred_check
          %p1519 = pneg %p1518
        $region84: #{node_classifier_forward.2} parent=73 // pred_check_branch
          %1521 = sbr.rel (%p1519) target = $region86
        $region85: #{node_classifier_forward.2} parent=73 // pred_region
          %v1522 = vld [vmem:[#allocation2] sm:$0xff]
          %v1523 = vld [vmem:[#allocation2 + $0x8] sm:$0xff]
          %v1524 = vld [vmem:[#allocation2 + $0x10] sm:$0xff]
          %v1525 = vld [vmem:[#allocation2 + $0x18] sm:$0xff]
          %v1526 = vld [vmem:[#allocation2 + $0x20] sm:$0xff]
          %v1527 = vld [vmem:[#allocation2 + $0x28] sm:$0xff]
          %v1528 = vld [vmem:[#allocation2 + $0x30] sm:$0xff]
          %v1529 = vld [vmem:[#allocation2 + $0x38] sm:$0xff]
          %v1530 = vld [vmem:[#allocation2 + $0x40] sm:$0xff]
          %v1531 = vld [vmem:[#allocation2 + $0x48] sm:$0xff]
          %v1532 = vld [vmem:[#allocation2 + $0x50] sm:$0xff]
          %v1533 = vld [vmem:[#allocation2 + $0x58] sm:$0xff]
          %v1534 = vld [vmem:[#allocation2 + $0x60] sm:$0xff]
          %v1535 = vld [vmem:[#allocation2 + $0x68] sm:$0xff]
          %v1536 = vld [vmem:[#allocation2 + $0x70] sm:$0xff]
          %v1537 = vld [vmem:[#allocation2 + $0x78] sm:$0xff]
          %v1538 = vld [vmem:[#allocation2 + $0x80] sm:$0xff]
          %v1539 = vld [vmem:[#allocation2 + $0x88] sm:$0xff]
          %v1540 = vld [vmem:[#allocation2 + $0x90] sm:$0xff]
          %v1541 = vld [vmem:[#allocation2 + $0x98] sm:$0xff]
          %v1542 = vld [vmem:[#allocation2 + $0xa0] sm:$0xff]
          %v1543 = vld [vmem:[#allocation2 + $0xa8] sm:$0xff]
          %v1544 = vld [vmem:[#allocation2 + $0xb0] sm:$0xff]
          %v1545 = vld [vmem:[#allocation2 + $0xb8] sm:$0xff]
          %v1546 = vld [vmem:[#allocation2 + $0xc0] sm:$0xff]
          %v1547 = vld [vmem:[#allocation2 + $0xc8] sm:$0xff]
          %v1548 = vld [vmem:[#allocation2 + $0xd0] sm:$0xff]
          %v1549 = vld [vmem:[#allocation2 + $0xd8] sm:$0xff]
          %v1550 = vld [vmem:[#allocation2 + $0xe0] sm:$0xff]
          %v1551 = vld [vmem:[#allocation2 + $0xe8] sm:$0xff]
          %v1552 = vld [vmem:[#allocation2 + $0xf0] sm:$0xff]
          %v1553 = vld [vmem:[#allocation2 + $0xf8] sm:$0xff]
          %v1554 = vld [vmem:[#allocation2 + $0x100] sm:$0xff]
          %v1555 = vld [vmem:[#allocation2 + $0x108] sm:$0xff]
          %v1556 = vld [vmem:[#allocation2 + $0x110] sm:$0xff]
          %v1557 = vld [vmem:[#allocation2 + $0x118] sm:$0xff]
          %v1558 = vld [vmem:[#allocation2 + $0x120] sm:$0xff]
          %v1559 = vld [vmem:[#allocation2 + $0x128] sm:$0xff]
          %v1560 = vld [vmem:[#allocation2 + $0x130] sm:$0xff]
          %v1561 = vld [vmem:[#allocation2 + $0x138] sm:$0xff]
          %v1562 = vld [vmem:[#allocation2 + $0x140] sm:$0xff]
          %v1563 = vld [vmem:[#allocation2 + $0x148] sm:$0xff]
          %v1564 = vld [vmem:[#allocation2 + $0x150] sm:$0xff]
          %v1565 = vld [vmem:[#allocation2 + $0x158] sm:$0xff]
          %v1566 = vld [vmem:[#allocation2 + $0x160] sm:$0xff]
          %v1567 = vld [vmem:[#allocation2 + $0x168] sm:$0xff]
          %v1568 = vld [vmem:[#allocation2 + $0x170] sm:$0xff]
          %v1569 = vld [vmem:[#allocation2 + $0x178] sm:$0xff]
          %v1570 = vld [vmem:[#allocation2 + $0x180] sm:$0xff]
          %v1571 = vld [vmem:[#allocation2 + $0x188] sm:$0xff]
          %v1572 = vld [vmem:[#allocation2 + $0x190] sm:$0xff]
          %v1573 = vld [vmem:[#allocation2 + $0x198] sm:$0xff]
          %v1574 = vld [vmem:[#allocation2 + $0x1a0] sm:$0xff]
          %v1575 = vld [vmem:[#allocation2 + $0x1a8] sm:$0xff]
          %v1576 = vld [vmem:[#allocation2 + $0x1b0] sm:$0xff]
          %v1577 = vld [vmem:[#allocation2 + $0x1b8] sm:$0xff]
          %v1578 = vld [vmem:[#allocation2 + $0x1c0] sm:$0xff]
          %v1579 = vld [vmem:[#allocation2 + $0x1c8] sm:$0xff]
          %v1580 = vld [vmem:[#allocation2 + $0x1d0] sm:$0xff]
          %v1581 = vld [vmem:[#allocation2 + $0x1d8] sm:$0xff]
          %v1582 = vld [vmem:[#allocation2 + $0x1e0] sm:$0xff]
          %v1583 = vld [vmem:[#allocation2 + $0x1e8] sm:$0xff]
          %v1584 = vld [vmem:[#allocation2 + $0x1f0] sm:$0xff]
          %v1585 = vld [vmem:[#allocation2 + $0x1f8] sm:$0xff]
          %v1586 = vld [vmem:[#allocation2 + $0x200] sm:$0xff]
          %v1587 = vld [vmem:[#allocation2 + $0x208] sm:$0xff]
          %v1588 = vld [vmem:[#allocation2 + $0x210] sm:$0xff]
          %v1589 = vld [vmem:[#allocation2 + $0x218] sm:$0xff]
          %v1590 = vld [vmem:[#allocation2 + $0x220] sm:$0xff]
          %v1591 = vld [vmem:[#allocation2 + $0x228] sm:$0xff]
          %v1592 = vld [vmem:[#allocation2 + $0x230] sm:$0xff]
          %v1593 = vld [vmem:[#allocation2 + $0x238] sm:$0xff]
          %v1594 = vld [vmem:[#allocation2 + $0x240] sm:$0xff]
          %v1595 = vld [vmem:[#allocation2 + $0x248] sm:$0xff]
          %v1596 = vld [vmem:[#allocation2 + $0x250] sm:$0xff]
          %v1597 = vld [vmem:[#allocation2 + $0x258] sm:$0xff]
          %v1598 = vld [vmem:[#allocation2 + $0x260] sm:$0xff]
          %v1599 = vld [vmem:[#allocation2 + $0x268] sm:$0xff]
          %v1600 = vld [vmem:[#allocation2 + $0x270] sm:$0xff]
          %v1601 = vld [vmem:[#allocation2 + $0x278] sm:$0xff]
          %v1602 = vld [vmem:[#allocation2 + $0x280] sm:$0xff]
          %v1603 = vld [vmem:[#allocation2 + $0x288] sm:$0xff]
          %v1604 = vld [vmem:[#allocation2 + $0x290] sm:$0xff]
          %v1605 = vld [vmem:[#allocation2 + $0x298] sm:$0xff]
          %v1606 = vld [vmem:[#allocation2 + $0x2a0] sm:$0xff]
          %v1607 = vld [vmem:[#allocation2 + $0x2a8] sm:$0xff]
          %v1608 = vld [vmem:[#allocation2 + $0x2b0] sm:$0xff]
          %v1609 = vld [vmem:[#allocation2 + $0x2b8] sm:$0xff]
          %v1610 = vld [vmem:[#allocation2 + $0x2c0] sm:$0xff]
          %v1611 = vld [vmem:[#allocation2 + $0x2c8] sm:$0xff]
          %v1612 = vld [vmem:[#allocation2 + $0x2d0] sm:$0xff]
          %v1613 = vld [vmem:[#allocation2 + $0x2d8] sm:$0xff]
          %v1614 = vld [vmem:[#allocation2 + $0x2e0] sm:$0xff]
          %v1615 = vld [vmem:[#allocation2 + $0x2e8] sm:$0xff]
          %v1616 = vld [vmem:[#allocation2 + $0x2f0] sm:$0xff]
          %v1617 = vld [vmem:[#allocation2 + $0x2f8] sm:$0xff]
          %v1618 = vld [vmem:[#allocation2 + $0x300] sm:$0xff]
          %v1619 = vld [vmem:[#allocation2 + $0x308] sm:$0xff]
          %v1620 = vld [vmem:[#allocation2 + $0x310] sm:$0xff]
          %v1621 = vld [vmem:[#allocation2 + $0x318] sm:$0xff]
          %v1622 = vld [vmem:[#allocation2 + $0x320] sm:$0xff]
          %v1623 = vld [vmem:[#allocation2 + $0x328] sm:$0xff]
          %v1624 = vld [vmem:[#allocation2 + $0x330] sm:$0xff]
          %v1625 = vld [vmem:[#allocation2 + $0x338] sm:$0xff]
          %v1626 = vld [vmem:[#allocation2 + $0x340] sm:$0xff]
          %v1627 = vld [vmem:[#allocation2 + $0x348] sm:$0xff]
          %v1628 = vld [vmem:[#allocation2 + $0x350] sm:$0xff]
          %v1629 = vld [vmem:[#allocation2 + $0x358] sm:$0xff]
          %v1630 = vld [vmem:[#allocation2 + $0x360] sm:$0xff]
          %v1631 = vld [vmem:[#allocation2 + $0x368] sm:$0xff]
          %v1632 = vld [vmem:[#allocation2 + $0x370] sm:$0xff]
          %v1633 = vld [vmem:[#allocation2 + $0x378] sm:$0xff]
          %v1634 = vld [vmem:[#allocation2 + $0x380] sm:$0xff]
          %v1635 = vld [vmem:[#allocation2 + $0x388] sm:$0xff]
          %v1636 = vld [vmem:[#allocation2 + $0x390] sm:$0xff]
          %v1637 = vld [vmem:[#allocation2 + $0x398] sm:$0xff]
          %v1638 = vld [vmem:[#allocation2 + $0x3a0] sm:$0xff]
          %v1639 = vld [vmem:[#allocation2 + $0x3a8] sm:$0xff]
          %v1640 = vld [vmem:[#allocation2 + $0x3b0] sm:$0xff]
          %v1641 = vld [vmem:[#allocation2 + $0x3b8] sm:$0xff]
          %v1642 = vld [vmem:[#allocation2 + $0x3c0] sm:$0xff]
          %v1643 = vld [vmem:[#allocation2 + $0x3c8] sm:$0xff]
          %v1644 = vld [vmem:[#allocation2 + $0x3d0] sm:$0xff]
          %v1645 = vld [vmem:[#allocation2 + $0x3d8] sm:$0xff]
          %v1646 = vld [vmem:[#allocation2 + $0x3e0] sm:$0xff]
          %v1647 = vld [vmem:[#allocation2 + $0x3e8] sm:$0xff]
          %v1648 = vld [vmem:[#allocation2 + $0x3f0] sm:$0xff]
          %v1649 = vld [vmem:[#allocation2 + $0x3f8] sm:$0xff]
          %v1650 = vpack.c.bf16 %v1526, %v1522
          %v1651 = vpack.c.bf16 %v1527, %v1523
          %v1652 = vpack.c.bf16 %v1528, %v1524
          %v1653 = vpack.c.bf16 %v1529, %v1525
          %v1654 = vpack.c.bf16 %v1534, %v1530
          %v1655 = vpack.c.bf16 %v1535, %v1531
          %v1656 = vpack.c.bf16 %v1536, %v1532
          %v1657 = vpack.c.bf16 %v1537, %v1533
          %v1658 = vpack.c.bf16 %v1542, %v1538
          %v1659 = vpack.c.bf16 %v1543, %v1539
          %v1660 = vpack.c.bf16 %v1544, %v1540
          %v1661 = vpack.c.bf16 %v1545, %v1541
          %v1662 = vpack.c.bf16 %v1550, %v1546
          %v1663 = vpack.c.bf16 %v1551, %v1547
          %v1664 = vpack.c.bf16 %v1552, %v1548
          %v1665 = vpack.c.bf16 %v1553, %v1549
          %v1666 = vpack.c.bf16 %v1558, %v1554
          %v1667 = vpack.c.bf16 %v1559, %v1555
          %v1668 = vpack.c.bf16 %v1560, %v1556
          %v1669 = vpack.c.bf16 %v1561, %v1557
          %v1670 = vpack.c.bf16 %v1566, %v1562
          %v1671 = vpack.c.bf16 %v1567, %v1563
          %v1672 = vpack.c.bf16 %v1568, %v1564
          %v1673 = vpack.c.bf16 %v1569, %v1565
          %v1674 = vpack.c.bf16 %v1574, %v1570
          %v1675 = vpack.c.bf16 %v1575, %v1571
          %v1676 = vpack.c.bf16 %v1576, %v1572
          %v1677 = vpack.c.bf16 %v1577, %v1573
          %v1678 = vpack.c.bf16 %v1582, %v1578
          %v1679 = vpack.c.bf16 %v1583, %v1579
          %v1680 = vpack.c.bf16 %v1584, %v1580
          %v1681 = vpack.c.bf16 %v1585, %v1581
          %v1682 = vpack.c.bf16 %v1590, %v1586
          %v1683 = vpack.c.bf16 %v1591, %v1587
          %v1684 = vpack.c.bf16 %v1592, %v1588
          %v1685 = vpack.c.bf16 %v1593, %v1589
          %v1686 = vpack.c.bf16 %v1598, %v1594
          %v1687 = vpack.c.bf16 %v1599, %v1595
          %v1688 = vpack.c.bf16 %v1600, %v1596
          %v1689 = vpack.c.bf16 %v1601, %v1597
          %v1690 = vpack.c.bf16 %v1606, %v1602
          %v1691 = vpack.c.bf16 %v1607, %v1603
          %v1692 = vpack.c.bf16 %v1608, %v1604
          %v1693 = vpack.c.bf16 %v1609, %v1605
          %v1694 = vpack.c.bf16 %v1614, %v1610
          %v1695 = vpack.c.bf16 %v1615, %v1611
          %v1696 = vpack.c.bf16 %v1616, %v1612
          %v1697 = vpack.c.bf16 %v1617, %v1613
          %v1698 = vpack.c.bf16 %v1622, %v1618
          %v1699 = vpack.c.bf16 %v1623, %v1619
          %v1700 = vpack.c.bf16 %v1624, %v1620
          %v1701 = vpack.c.bf16 %v1625, %v1621
          %v1702 = vpack.c.bf16 %v1630, %v1626
          %v1703 = vpack.c.bf16 %v1631, %v1627
          %v1704 = vpack.c.bf16 %v1632, %v1628
          %v1705 = vpack.c.bf16 %v1633, %v1629
          %v1706 = vpack.c.bf16 %v1638, %v1634
          %v1707 = vpack.c.bf16 %v1639, %v1635
          %v1708 = vpack.c.bf16 %v1640, %v1636
          %v1709 = vpack.c.bf16 %v1641, %v1637
          %v1710 = vpack.c.bf16 %v1646, %v1642
          %v1711 = vpack.c.bf16 %v1647, %v1643
          %v1712 = vpack.c.bf16 %v1648, %v1644
          %v1713 = vpack.c.bf16 %v1649, %v1645
          %v1714 = vld [vmem:[%s3] sm:$0xff]
          %v1715 = vld [vmem:[%s3 + $0x8] sm:$0xff]
          %v1716 = vld [vmem:[%s3 + $0x10] sm:$0xff]
          %v1717 = vld [vmem:[%s3 + $0x18] sm:$0xff]
          %v1718 = vld [vmem:[%s3 + $0x20] sm:$0xff]
          %v1719 = vld [vmem:[%s3 + $0x28] sm:$0xff]
          %v1720 = vld [vmem:[%s3 + $0x30] sm:$0xff]
          %v1721 = vld [vmem:[%s3 + $0x38] sm:$0xff]
          %v1722 = vld [vmem:[%s3 + $0x40] sm:$0xff]
          %v1723 = vld [vmem:[%s3 + $0x48] sm:$0xff]
          %v1724 = vld [vmem:[%s3 + $0x50] sm:$0xff]
          %v1725 = vld [vmem:[%s3 + $0x58] sm:$0xff]
          %v1726 = vld [vmem:[%s3 + $0x60] sm:$0xff]
          %v1727 = vld [vmem:[%s3 + $0x68] sm:$0xff]
          %v1728 = vld [vmem:[%s3 + $0x70] sm:$0xff]
          %v1729 = vld [vmem:[%s3 + $0x78] sm:$0xff]
          %v1730 = vld [vmem:[%s3 + $0x80] sm:$0xff]
          %v1731 = vld [vmem:[%s3 + $0x88] sm:$0xff]
          %v1732 = vld [vmem:[%s3 + $0x90] sm:$0xff]
          %v1733 = vld [vmem:[%s3 + $0x98] sm:$0xff]
          %v1734 = vld [vmem:[%s3 + $0xa0] sm:$0xff]
          %v1735 = vld [vmem:[%s3 + $0xa8] sm:$0xff]
          %v1736 = vld [vmem:[%s3 + $0xb0] sm:$0xff]
          %v1737 = vld [vmem:[%s3 + $0xb8] sm:$0xff]
          %v1738 = vld [vmem:[%s3 + $0xc0] sm:$0xff]
          %v1739 = vld [vmem:[%s3 + $0xc8] sm:$0xff]
          %v1740 = vld [vmem:[%s3 + $0xd0] sm:$0xff]
          %v1741 = vld [vmem:[%s3 + $0xd8] sm:$0xff]
          %v1742 = vld [vmem:[%s3 + $0xe0] sm:$0xff]
          %v1743 = vld [vmem:[%s3 + $0xe8] sm:$0xff]
          %v1744 = vld [vmem:[%s3 + $0xf0] sm:$0xff]
          %v1745 = vld [vmem:[%s3 + $0xf8] sm:$0xff]
          %v1746 = vld [vmem:[%s3 + $0x100] sm:$0xff]
          %v1747 = vld [vmem:[%s3 + $0x108] sm:$0xff]
          %v1748 = vld [vmem:[%s3 + $0x110] sm:$0xff]
          %v1749 = vld [vmem:[%s3 + $0x118] sm:$0xff]
          %v1750 = vld [vmem:[%s3 + $0x120] sm:$0xff]
          %v1751 = vld [vmem:[%s3 + $0x128] sm:$0xff]
          %v1752 = vld [vmem:[%s3 + $0x130] sm:$0xff]
          %v1753 = vld [vmem:[%s3 + $0x138] sm:$0xff]
          %v1754 = vld [vmem:[%s3 + $0x140] sm:$0xff]
          %v1755 = vld [vmem:[%s3 + $0x148] sm:$0xff]
          %v1756 = vld [vmem:[%s3 + $0x150] sm:$0xff]
          %v1757 = vld [vmem:[%s3 + $0x158] sm:$0xff]
          %v1758 = vld [vmem:[%s3 + $0x160] sm:$0xff]
          %v1759 = vld [vmem:[%s3 + $0x168] sm:$0xff]
          %v1760 = vld [vmem:[%s3 + $0x170] sm:$0xff]
          %v1761 = vld [vmem:[%s3 + $0x178] sm:$0xff]
          %v1762 = vld [vmem:[%s3 + $0x180] sm:$0xff]
          %v1763 = vld [vmem:[%s3 + $0x188] sm:$0xff]
          %v1764 = vld [vmem:[%s3 + $0x190] sm:$0xff]
          %v1765 = vld [vmem:[%s3 + $0x198] sm:$0xff]
          %v1766 = vld [vmem:[%s3 + $0x1a0] sm:$0xff]
          %v1767 = vld [vmem:[%s3 + $0x1a8] sm:$0xff]
          %v1768 = vld [vmem:[%s3 + $0x1b0] sm:$0xff]
          %v1769 = vld [vmem:[%s3 + $0x1b8] sm:$0xff]
          %v1770 = vld [vmem:[%s3 + $0x1c0] sm:$0xff]
          %v1771 = vld [vmem:[%s3 + $0x1c8] sm:$0xff]
          %v1772 = vld [vmem:[%s3 + $0x1d0] sm:$0xff]
          %v1773 = vld [vmem:[%s3 + $0x1d8] sm:$0xff]
          %v1774 = vld [vmem:[%s3 + $0x1e0] sm:$0xff]
          %v1775 = vld [vmem:[%s3 + $0x1e8] sm:$0xff]
          %v1776 = vld [vmem:[%s3 + $0x1f0] sm:$0xff]
          %v1777 = vld [vmem:[%s3 + $0x1f8] sm:$0xff]
          %v1778 = vld [vmem:[%s4] sm:$0x3]
          %v1780 = vlaneseq
          %v1781 = vshrl.u32 %v1780, 7
          %v1782 = vsub.s32 0, %v1781
          %v1783 = vrot.slane %v1778, %v1782
          %v1784 = vlaneseq
          %v1785 = vshrl.u32 %v1784, 7
          %v1786 = vsub.s32 1, %v1785
          %v1787 = vrot.slane %v1778, %v1786
          %v1854 = vunpack.c.l.b16 %v1714
          %v1855 = vunpack.c.h.b16 %v1714
          %v1856 = vunpack.c.l.b16 %v1715
          %v1857 = vunpack.c.h.b16 %v1715
          %v1858 = vunpack.c.l.b16 %v1716
          %v1859 = vunpack.c.h.b16 %v1716
          %v1860 = vunpack.c.l.b16 %v1717
          %v1861 = vunpack.c.h.b16 %v1717
          %v1862 = vunpack.c.l.b16 %v1718
          %v1863 = vunpack.c.h.b16 %v1718
          %v1864 = vunpack.c.l.b16 %v1719
          %v1865 = vunpack.c.h.b16 %v1719
          %v1866 = vunpack.c.l.b16 %v1720
          %v1867 = vunpack.c.h.b16 %v1720
          %v1868 = vunpack.c.l.b16 %v1721
          %v1869 = vunpack.c.h.b16 %v1721
          %v1870 = vunpack.c.l.b16 %v1722
          %v1871 = vunpack.c.h.b16 %v1722
          %v1872 = vunpack.c.l.b16 %v1723
          %v1873 = vunpack.c.h.b16 %v1723
          %v1874 = vunpack.c.l.b16 %v1724
          %v1875 = vunpack.c.h.b16 %v1724
          %v1876 = vunpack.c.l.b16 %v1725
          %v1877 = vunpack.c.h.b16 %v1725
          %v1878 = vunpack.c.l.b16 %v1726
          %v1879 = vunpack.c.h.b16 %v1726
          %v1880 = vunpack.c.l.b16 %v1727
          %v1881 = vunpack.c.h.b16 %v1727
          %v1882 = vunpack.c.l.b16 %v1728
          %v1883 = vunpack.c.h.b16 %v1728
          %v1884 = vunpack.c.l.b16 %v1729
          %v1885 = vunpack.c.h.b16 %v1729
          %v1886 = vunpack.c.l.b16 %v1730
          %v1887 = vunpack.c.h.b16 %v1730
          %v1888 = vunpack.c.l.b16 %v1731
          %v1889 = vunpack.c.h.b16 %v1731
          %v1890 = vunpack.c.l.b16 %v1732
          %v1891 = vunpack.c.h.b16 %v1732
          %v1892 = vunpack.c.l.b16 %v1733
          %v1893 = vunpack.c.h.b16 %v1733
          %v1894 = vunpack.c.l.b16 %v1734
          %v1895 = vunpack.c.h.b16 %v1734
          %v1896 = vunpack.c.l.b16 %v1735
          %v1897 = vunpack.c.h.b16 %v1735
          %v1898 = vunpack.c.l.b16 %v1736
          %v1899 = vunpack.c.h.b16 %v1736
          %v1900 = vunpack.c.l.b16 %v1737
          %v1901 = vunpack.c.h.b16 %v1737
          %v1902 = vunpack.c.l.b16 %v1738
          %v1903 = vunpack.c.h.b16 %v1738
          %v1904 = vunpack.c.l.b16 %v1739
          %v1905 = vunpack.c.h.b16 %v1739
          %v1906 = vunpack.c.l.b16 %v1740
          %v1907 = vunpack.c.h.b16 %v1740
          %v1908 = vunpack.c.l.b16 %v1741
          %v1909 = vunpack.c.h.b16 %v1741
          %v1910 = vunpack.c.l.b16 %v1742
          %v1911 = vunpack.c.h.b16 %v1742
          %v1912 = vunpack.c.l.b16 %v1743
          %v1913 = vunpack.c.h.b16 %v1743
          %v1914 = vunpack.c.l.b16 %v1744
          %v1915 = vunpack.c.h.b16 %v1744
          %v1916 = vunpack.c.l.b16 %v1745
          %v1917 = vunpack.c.h.b16 %v1745
          %v1918 = vunpack.c.l.b16 %v1746
          %v1919 = vunpack.c.h.b16 %v1746
          %v1920 = vunpack.c.l.b16 %v1747
          %v1921 = vunpack.c.h.b16 %v1747
          %v1922 = vunpack.c.l.b16 %v1748
          %v1923 = vunpack.c.h.b16 %v1748
          %v1924 = vunpack.c.l.b16 %v1749
          %v1925 = vunpack.c.h.b16 %v1749
          %v1926 = vunpack.c.l.b16 %v1750
          %v1927 = vunpack.c.h.b16 %v1750
          %v1928 = vunpack.c.l.b16 %v1751
          %v1929 = vunpack.c.h.b16 %v1751
          %v1930 = vunpack.c.l.b16 %v1752
          %v1931 = vunpack.c.h.b16 %v1752
          %v1932 = vunpack.c.l.b16 %v1753
          %v1933 = vunpack.c.h.b16 %v1753
          %v1934 = vunpack.c.l.b16 %v1754
          %v1935 = vunpack.c.h.b16 %v1754
          %v1936 = vunpack.c.l.b16 %v1755
          %v1937 = vunpack.c.h.b16 %v1755
          %v1938 = vunpack.c.l.b16 %v1756
          %v1939 = vunpack.c.h.b16 %v1756
          %v1940 = vunpack.c.l.b16 %v1757
          %v1941 = vunpack.c.h.b16 %v1757
          %v1942 = vunpack.c.l.b16 %v1758
          %v1943 = vunpack.c.h.b16 %v1758
          %v1944 = vunpack.c.l.b16 %v1759
          %v1945 = vunpack.c.h.b16 %v1759
          %v1946 = vunpack.c.l.b16 %v1760
          %v1947 = vunpack.c.h.b16 %v1760
          %v1948 = vunpack.c.l.b16 %v1761
          %v1949 = vunpack.c.h.b16 %v1761
          %v1950 = vunpack.c.l.b16 %v1762
          %v1951 = vunpack.c.h.b16 %v1762
          %v1952 = vunpack.c.l.b16 %v1763
          %v1953 = vunpack.c.h.b16 %v1763
          %v1954 = vunpack.c.l.b16 %v1764
          %v1955 = vunpack.c.h.b16 %v1764
          %v1956 = vunpack.c.l.b16 %v1765
          %v1957 = vunpack.c.h.b16 %v1765
          %v1958 = vunpack.c.l.b16 %v1766
          %v1959 = vunpack.c.h.b16 %v1766
          %v1960 = vunpack.c.l.b16 %v1767
          %v1961 = vunpack.c.h.b16 %v1767
          %v1962 = vunpack.c.l.b16 %v1768
          %v1963 = vunpack.c.h.b16 %v1768
          %v1964 = vunpack.c.l.b16 %v1769
          %v1965 = vunpack.c.h.b16 %v1769
          %v1966 = vunpack.c.l.b16 %v1770
          %v1967 = vunpack.c.h.b16 %v1770
          %v1968 = vunpack.c.l.b16 %v1771
          %v1969 = vunpack.c.h.b16 %v1771
          %v1970 = vunpack.c.l.b16 %v1772
          %v1971 = vunpack.c.h.b16 %v1772
          %v1972 = vunpack.c.l.b16 %v1773
          %v1973 = vunpack.c.h.b16 %v1773
          %v1974 = vunpack.c.l.b16 %v1774
          %v1975 = vunpack.c.h.b16 %v1774
          %v1976 = vunpack.c.l.b16 %v1775
          %v1977 = vunpack.c.h.b16 %v1775
          %v1978 = vunpack.c.l.b16 %v1776
          %v1979 = vunpack.c.h.b16 %v1776
          %v1980 = vunpack.c.l.b16 %v1777
          %v1981 = vunpack.c.h.b16 %v1777
          %v1982 = vpack.c.b16 %v1856, %v1854
          %v1983 = vpack.c.b16 %v1857, %v1855
          %v1984 = vpack.c.b16 %v1860, %v1858
          %v1985 = vpack.c.b16 %v1861, %v1859
          %v1986 = vpack.c.b16 %v1864, %v1862
          %v1987 = vpack.c.b16 %v1865, %v1863
          %v1988 = vpack.c.b16 %v1868, %v1866
          %v1989 = vpack.c.b16 %v1869, %v1867
          %v1990 = vpack.c.b16 %v1872, %v1870
          %v1991 = vpack.c.b16 %v1873, %v1871
          %v1992 = vpack.c.b16 %v1876, %v1874
          %v1993 = vpack.c.b16 %v1877, %v1875
          %v1994 = vpack.c.b16 %v1880, %v1878
          %v1995 = vpack.c.b16 %v1881, %v1879
          %v1996 = vpack.c.b16 %v1884, %v1882
          %v1997 = vpack.c.b16 %v1885, %v1883
          %v1998 = vpack.c.b16 %v1888, %v1886
          %v1999 = vpack.c.b16 %v1889, %v1887
          %v2000 = vpack.c.b16 %v1892, %v1890
          %v2001 = vpack.c.b16 %v1893, %v1891
          %v2002 = vpack.c.b16 %v1896, %v1894
          %v2003 = vpack.c.b16 %v1897, %v1895
          %v2004 = vpack.c.b16 %v1900, %v1898
          %v2005 = vpack.c.b16 %v1901, %v1899
          %v2006 = vpack.c.b16 %v1904, %v1902
          %v2007 = vpack.c.b16 %v1905, %v1903
          %v2008 = vpack.c.b16 %v1908, %v1906
          %v2009 = vpack.c.b16 %v1909, %v1907
          %v2010 = vpack.c.b16 %v1912, %v1910
          %v2011 = vpack.c.b16 %v1913, %v1911
          %v2012 = vpack.c.b16 %v1916, %v1914
          %v2013 = vpack.c.b16 %v1917, %v1915
          %v2014 = vpack.c.b16 %v1920, %v1918
          %v2015 = vpack.c.b16 %v1921, %v1919
          %v2016 = vpack.c.b16 %v1924, %v1922
          %v2017 = vpack.c.b16 %v1925, %v1923
          %v2018 = vpack.c.b16 %v1928, %v1926
          %v2019 = vpack.c.b16 %v1929, %v1927
          %v2020 = vpack.c.b16 %v1932, %v1930
          %v2021 = vpack.c.b16 %v1933, %v1931
          %v2022 = vpack.c.b16 %v1936, %v1934
          %v2023 = vpack.c.b16 %v1937, %v1935
          %v2024 = vpack.c.b16 %v1940, %v1938
          %v2025 = vpack.c.b16 %v1941, %v1939
          %v2026 = vpack.c.b16 %v1944, %v1942
          %v2027 = vpack.c.b16 %v1945, %v1943
          %v2028 = vpack.c.b16 %v1948, %v1946
          %v2029 = vpack.c.b16 %v1949, %v1947
          %v2030 = vpack.c.b16 %v1952, %v1950
          %v2031 = vpack.c.b16 %v1953, %v1951
          %v2032 = vpack.c.b16 %v1956, %v1954
          %v2033 = vpack.c.b16 %v1957, %v1955
          %v2034 = vpack.c.b16 %v1960, %v1958
          %v2035 = vpack.c.b16 %v1961, %v1959
          %v2036 = vpack.c.b16 %v1964, %v1962
          %v2037 = vpack.c.b16 %v1965, %v1963
          %v2038 = vpack.c.b16 %v1968, %v1966
          %v2039 = vpack.c.b16 %v1969, %v1967
          %v2040 = vpack.c.b16 %v1972, %v1970
          %v2041 = vpack.c.b16 %v1973, %v1971
          %v2042 = vpack.c.b16 %v1976, %v1974
          %v2043 = vpack.c.b16 %v1977, %v1975
          %v2044 = vpack.c.b16 %v1980, %v1978
          %v2045 = vpack.c.b16 %v1981, %v1979
          %2110 = vmatprep.subr.bf16.mxu0 %v1997
          %2111 = vmatpush1.bf16.msra.mxu0 %v1996
          %2112 = vmatprep.subr.bf16.mxu0 %v1995
          %2113 = vmatpush1.bf16.msra.mxu0 %v1994
          %2114 = vmatprep.subr.bf16.mxu0 %v1993
          %2115 = vmatpush1.bf16.msra.mxu0 %v1992
          %2116 = vmatprep.subr.bf16.mxu0 %v1991
          %2117 = vmatpush1.bf16.msra.mxu0 %v1990
          %2118 = vmatprep.subr.bf16.mxu0 %v1989
          %2119 = vmatpush1.bf16.msra.mxu0 %v1988
          %2120 = vmatprep.subr.bf16.mxu0 %v1987
          %2121 = vmatpush1.bf16.msra.mxu0 %v1986
          %2122 = vmatprep.subr.bf16.mxu0 %v1985
          %2123 = vmatpush1.bf16.msra.mxu0 %v1984
          %2124 = vmatprep.subr.bf16.mxu0 %v1983
          %2125 = vmatpush1.bf16.msra.mxu0 %v1982
          %2126 = vmatprep.subr.bf16.mxu0 %v2013
          %2127 = vmatpush2.bf16.msra.mxu0 %v2012
          %2128 = vmatprep.subr.bf16.mxu0 %v2011
          %2129 = vmatpush2.bf16.msra.mxu0 %v2010
          %2130 = vmatprep.subr.bf16.mxu0 %v2009
          %2131 = vmatpush2.bf16.msra.mxu0 %v2008
          %2132 = vmatprep.subr.bf16.mxu0 %v2007
          %2133 = vmatpush2.bf16.msra.mxu0 %v2006
          %2134 = vmatprep.subr.bf16.mxu0 %v2005
          %2135 = vmatpush2.bf16.msra.mxu0 %v2004
          %2136 = vmatprep.subr.bf16.mxu0 %v2003
          %2137 = vmatpush2.bf16.msra.mxu0 %v2002
          %2138 = vmatprep.subr.bf16.mxu0 %v2001
          %2139 = vmatpush2.bf16.msra.mxu0 %v2000
          %2140 = vmatprep.subr.bf16.mxu0 %v1999
          %2141 = vmatpush2.bf16.msra.mxu0 %v1998
          %2142 = vmatprep.mubr.bf16.mxu0 %v1651
          %2143 = vmatmul.mubr.bf16.gmra.mxu0 %v1650
          %v2144 = vpop.f32.mrf.mxu0
          %v2145 = vadd.f32 %v1783, %v2144
          %v2146 = vpop.f32.mrf.mxu0
          %v2147 = vadd.f32 %v1787, %v2146
          %v2148 = vpop.f32.mrf.mxu0
          %v2149 = vadd.f32 %v1783, %v2148
          %v2150 = vpop.f32.mrf.mxu0
          %v2151 = vadd.f32 %v1787, %v2150
          %2152 = vmatprep.mubr.bf16.mxu0 %v1655
          %2153 = vmatmul.mubr.bf16.gmra.mxu0 %v1654
          %v2154 = vpop.f32.mrf.mxu0
          %v2155 = vadd.f32 %v1783, %v2154
          %v2156 = vpop.f32.mrf.mxu0
          %v2157 = vadd.f32 %v1787, %v2156
          %v2158 = vpop.f32.mrf.mxu0
          %v2159 = vadd.f32 %v1783, %v2158
          %v2160 = vpop.f32.mrf.mxu0
          %v2161 = vadd.f32 %v1787, %v2160
          %2162 = vmatprep.mubr.bf16.mxu0 %v1659
          %2163 = vmatmul.mubr.bf16.gmra.mxu0 %v1658
          %v2164 = vpop.f32.mrf.mxu0
          %v2165 = vadd.f32 %v1783, %v2164
          %v2166 = vpop.f32.mrf.mxu0
          %v2167 = vadd.f32 %v1787, %v2166
          %v2168 = vpop.f32.mrf.mxu0
          %v2169 = vadd.f32 %v1783, %v2168
          %v2170 = vpop.f32.mrf.mxu0
          %v2171 = vadd.f32 %v1787, %v2170
          %2172 = vmatprep.mubr.bf16.mxu0 %v1663
          %2173 = vmatmul.mubr.bf16.gmra.mxu0 %v1662
          %v2174 = vpop.f32.mrf.mxu0
          %v2175 = vadd.f32 %v1783, %v2174
          %v2176 = vpop.f32.mrf.mxu0
          %v2177 = vadd.f32 %v1787, %v2176
          %v2178 = vpop.f32.mrf.mxu0
          %v2179 = vadd.f32 %v1783, %v2178
          %v2180 = vpop.f32.mrf.mxu0
          %v2181 = vadd.f32 %v1787, %v2180
          %2182 = vmatprep.mubr.bf16.mxu0 %v1667
          %2183 = vmatmul.mubr.bf16.gmra.mxu0 %v1666
          %v2184 = vpop.f32.mrf.mxu0
          %v2185 = vadd.f32 %v1783, %v2184
          %v2186 = vpop.f32.mrf.mxu0
          %v2187 = vadd.f32 %v1787, %v2186
          %v2188 = vpop.f32.mrf.mxu0
          %v2189 = vadd.f32 %v1783, %v2188
          %v2190 = vpop.f32.mrf.mxu0
          %v2191 = vadd.f32 %v1787, %v2190
          %2192 = vmatprep.mubr.bf16.mxu0 %v1671
          %2193 = vmatmul.mubr.bf16.gmra.mxu0 %v1670
          %v2194 = vpop.f32.mrf.mxu0
          %v2195 = vadd.f32 %v1783, %v2194
          %v2196 = vpop.f32.mrf.mxu0
          %v2197 = vadd.f32 %v1787, %v2196
          %v2198 = vpop.f32.mrf.mxu0
          %v2199 = vadd.f32 %v1783, %v2198
          %v2200 = vpop.f32.mrf.mxu0
          %v2201 = vadd.f32 %v1787, %v2200
          %2202 = vmatprep.mubr.bf16.mxu0 %v1675
          %2203 = vmatmul.mubr.bf16.gmra.mxu0 %v1674
          %v2204 = vpop.f32.mrf.mxu0
          %v2205 = vadd.f32 %v1783, %v2204
          %v2206 = vpop.f32.mrf.mxu0
          %v2207 = vadd.f32 %v1787, %v2206
          %v2208 = vpop.f32.mrf.mxu0
          %v2209 = vadd.f32 %v1783, %v2208
          %v2210 = vpop.f32.mrf.mxu0
          %v2211 = vadd.f32 %v1787, %v2210
          %2212 = vmatprep.mubr.bf16.mxu0 %v1679
          %2213 = vmatmul.mubr.bf16.gmra.mxu0 %v1678
          %v2214 = vpop.f32.mrf.mxu0
          %v2215 = vadd.f32 %v1783, %v2214
          %v2216 = vpop.f32.mrf.mxu0
          %v2217 = vadd.f32 %v1787, %v2216
          %v2218 = vpop.f32.mrf.mxu0
          %v2219 = vadd.f32 %v1783, %v2218
          %v2220 = vpop.f32.mrf.mxu0
          %v2221 = vadd.f32 %v1787, %v2220
          %2222 = vmatprep.mubr.bf16.mxu0 %v1683
          %2223 = vmatmul.mubr.bf16.gmra.mxu0 %v1682
          %v2224 = vpop.f32.mrf.mxu0
          %v2225 = vadd.f32 %v1783, %v2224
          %v2226 = vpop.f32.mrf.mxu0
          %v2227 = vadd.f32 %v1787, %v2226
          %v2228 = vpop.f32.mrf.mxu0
          %v2229 = vadd.f32 %v1783, %v2228
          %v2230 = vpop.f32.mrf.mxu0
          %v2231 = vadd.f32 %v1787, %v2230
          %2232 = vmatprep.mubr.bf16.mxu0 %v1687
          %2233 = vmatmul.mubr.bf16.gmra.mxu0 %v1686
          %v2234 = vpop.f32.mrf.mxu0
          %v2235 = vadd.f32 %v1783, %v2234
          %v2236 = vpop.f32.mrf.mxu0
          %v2237 = vadd.f32 %v1787, %v2236
          %v2238 = vpop.f32.mrf.mxu0
          %v2239 = vadd.f32 %v1783, %v2238
          %v2240 = vpop.f32.mrf.mxu0
          %v2241 = vadd.f32 %v1787, %v2240
          %2242 = vmatprep.mubr.bf16.mxu0 %v1691
          %2243 = vmatmul.mubr.bf16.gmra.mxu0 %v1690
          %v2244 = vpop.f32.mrf.mxu0
          %v2245 = vadd.f32 %v1783, %v2244
          %v2246 = vpop.f32.mrf.mxu0
          %v2247 = vadd.f32 %v1787, %v2246
          %v2248 = vpop.f32.mrf.mxu0
          %v2249 = vadd.f32 %v1783, %v2248
          %v2250 = vpop.f32.mrf.mxu0
          %v2251 = vadd.f32 %v1787, %v2250
          %2252 = vmatprep.mubr.bf16.mxu0 %v1695
          %2253 = vmatmul.mubr.bf16.gmra.mxu0 %v1694
          %v2254 = vpop.f32.mrf.mxu0
          %v2255 = vadd.f32 %v1783, %v2254
          %v2256 = vpop.f32.mrf.mxu0
          %v2257 = vadd.f32 %v1787, %v2256
          %v2258 = vpop.f32.mrf.mxu0
          %v2259 = vadd.f32 %v1783, %v2258
          %v2260 = vpop.f32.mrf.mxu0
          %v2261 = vadd.f32 %v1787, %v2260
          %2262 = vmatprep.mubr.bf16.mxu0 %v1699
          %2263 = vmatmul.mubr.bf16.gmra.mxu0 %v1698
          %v2264 = vpop.f32.mrf.mxu0
          %v2265 = vadd.f32 %v1783, %v2264
          %v2266 = vpop.f32.mrf.mxu0
          %v2267 = vadd.f32 %v1787, %v2266
          %v2268 = vpop.f32.mrf.mxu0
          %v2269 = vadd.f32 %v1783, %v2268
          %v2270 = vpop.f32.mrf.mxu0
          %v2271 = vadd.f32 %v1787, %v2270
          %2272 = vmatprep.mubr.bf16.mxu0 %v1703
          %2273 = vmatmul.mubr.bf16.gmra.mxu0 %v1702
          %v2274 = vpop.f32.mrf.mxu0
          %v2275 = vadd.f32 %v1783, %v2274
          %v2276 = vpop.f32.mrf.mxu0
          %v2277 = vadd.f32 %v1787, %v2276
          %v2278 = vpop.f32.mrf.mxu0
          %v2279 = vadd.f32 %v1783, %v2278
          %v2280 = vpop.f32.mrf.mxu0
          %v2281 = vadd.f32 %v1787, %v2280
          %2282 = vmatprep.mubr.bf16.mxu0 %v1707
          %2283 = vmatmul.mubr.bf16.gmra.mxu0 %v1706
          %v2284 = vpop.f32.mrf.mxu0
          %v2285 = vadd.f32 %v1783, %v2284
          %v2286 = vpop.f32.mrf.mxu0
          %v2287 = vadd.f32 %v1787, %v2286
          %v2288 = vpop.f32.mrf.mxu0
          %v2289 = vadd.f32 %v1783, %v2288
          %v2290 = vpop.f32.mrf.mxu0
          %v2291 = vadd.f32 %v1787, %v2290
          %2292 = vmatprep.mubr.bf16.mxu0 %v1711
          %2293 = vmatmul.mubr.bf16.gmra.mxu0 %v1710
          %v2294 = vpop.f32.mrf.mxu0
          %v2295 = vadd.f32 %v1783, %v2294
          %v2296 = vpop.f32.mrf.mxu0
          %v2297 = vadd.f32 %v1787, %v2296
          %v2298 = vpop.f32.mrf.mxu0
          %v2299 = vadd.f32 %v1783, %v2298
          %v2300 = vpop.f32.mrf.mxu0
          %v2301 = vadd.f32 %v1787, %v2300
          %2302 = vdwg.mxu0
          %2303 = vmatprep.subr.bf16.mxu0 %v2029
          %2304 = vmatpush1.bf16.msra.mxu0 %v2028
          %2305 = vmatprep.subr.bf16.mxu0 %v2027
          %2306 = vmatpush1.bf16.msra.mxu0 %v2026
          %2307 = vmatprep.subr.bf16.mxu0 %v2025
          %2308 = vmatpush1.bf16.msra.mxu0 %v2024
          %2309 = vmatprep.subr.bf16.mxu0 %v2023
          %2310 = vmatpush1.bf16.msra.mxu0 %v2022
          %2311 = vmatprep.subr.bf16.mxu0 %v2021
          %2312 = vmatpush1.bf16.msra.mxu0 %v2020
          %2313 = vmatprep.subr.bf16.mxu0 %v2019
          %2314 = vmatpush1.bf16.msra.mxu0 %v2018
          %2315 = vmatprep.subr.bf16.mxu0 %v2017
          %2316 = vmatpush1.bf16.msra.mxu0 %v2016
          %2317 = vmatprep.subr.bf16.mxu0 %v2015
          %2318 = vmatpush1.bf16.msra.mxu0 %v2014
          %2319 = vmatprep.subr.bf16.mxu0 %v2045
          %2320 = vmatpush2.bf16.msra.mxu0 %v2044
          %2321 = vmatprep.subr.bf16.mxu0 %v2043
          %2322 = vmatpush2.bf16.msra.mxu0 %v2042
          %2323 = vmatprep.subr.bf16.mxu0 %v2041
          %2324 = vmatpush2.bf16.msra.mxu0 %v2040
          %2325 = vmatprep.subr.bf16.mxu0 %v2039
          %2326 = vmatpush2.bf16.msra.mxu0 %v2038
          %2327 = vmatprep.subr.bf16.mxu0 %v2037
          %2328 = vmatpush2.bf16.msra.mxu0 %v2036
          %2329 = vmatprep.subr.bf16.mxu0 %v2035
          %2330 = vmatpush2.bf16.msra.mxu0 %v2034
          %2331 = vmatprep.subr.bf16.mxu0 %v2033
          %2332 = vmatpush2.bf16.msra.mxu0 %v2032
          %2333 = vmatprep.subr.bf16.mxu0 %v2031
          %2334 = vmatpush2.bf16.msra.mxu0 %v2030
          %2335 = vmatprep.mubr.bf16.mxu0 %v1653
          %2336 = vmatmul.mubr.bf16.gmra.mxu0 %v1652
          %v2337 = vpop.f32.mrf.mxu0
          %v2338 = vadd.f32 %v2145, %v2337
          %v2339 = vpop.f32.mrf.mxu0
          %v2340 = vadd.f32 %v2147, %v2339
          %v2341 = vpop.f32.mrf.mxu0
          %v2342 = vadd.f32 %v2149, %v2341
          %v2343 = vpop.f32.mrf.mxu0
          %v2344 = vadd.f32 %v2151, %v2343
          %2345 = vmatprep.mubr.bf16.mxu0 %v1657
          %2346 = vmatmul.mubr.bf16.gmra.mxu0 %v1656
          %v2347 = vpop.f32.mrf.mxu0
          %v2348 = vadd.f32 %v2155, %v2347
          %v2349 = vpop.f32.mrf.mxu0
          %v2350 = vadd.f32 %v2157, %v2349
          %v2351 = vpop.f32.mrf.mxu0
          %v2352 = vadd.f32 %v2159, %v2351
          %v2353 = vpop.f32.mrf.mxu0
          %v2354 = vadd.f32 %v2161, %v2353
          %2355 = vmatprep.mubr.bf16.mxu0 %v1661
          %2356 = vmatmul.mubr.bf16.gmra.mxu0 %v1660
          %v2357 = vpop.f32.mrf.mxu0
          %v2358 = vadd.f32 %v2165, %v2357
          %v2359 = vpop.f32.mrf.mxu0
          %v2360 = vadd.f32 %v2167, %v2359
          %v2361 = vpop.f32.mrf.mxu0
          %v2362 = vadd.f32 %v2169, %v2361
          %v2363 = vpop.f32.mrf.mxu0
          %v2364 = vadd.f32 %v2171, %v2363
          %2365 = vmatprep.mubr.bf16.mxu0 %v1665
          %2366 = vmatmul.mubr.bf16.gmra.mxu0 %v1664
          %v2367 = vpop.f32.mrf.mxu0
          %v2368 = vadd.f32 %v2175, %v2367
          %v2369 = vpop.f32.mrf.mxu0
          %v2370 = vadd.f32 %v2177, %v2369
          %v2371 = vpop.f32.mrf.mxu0
          %v2372 = vadd.f32 %v2179, %v2371
          %v2373 = vpop.f32.mrf.mxu0
          %v2374 = vadd.f32 %v2181, %v2373
          %2375 = vmatprep.mubr.bf16.mxu0 %v1669
          %2376 = vmatmul.mubr.bf16.gmra.mxu0 %v1668
          %v2377 = vpop.f32.mrf.mxu0
          %v2378 = vadd.f32 %v2185, %v2377
          %v2379 = vpop.f32.mrf.mxu0
          %v2380 = vadd.f32 %v2187, %v2379
          %v2381 = vpop.f32.mrf.mxu0
          %v2382 = vadd.f32 %v2189, %v2381
          %v2383 = vpop.f32.mrf.mxu0
          %v2384 = vadd.f32 %v2191, %v2383
          %2385 = vmatprep.mubr.bf16.mxu0 %v1673
          %2386 = vmatmul.mubr.bf16.gmra.mxu0 %v1672
          %v2387 = vpop.f32.mrf.mxu0
          %v2388 = vadd.f32 %v2195, %v2387
          %v2389 = vpop.f32.mrf.mxu0
          %v2390 = vadd.f32 %v2197, %v2389
          %v2391 = vpop.f32.mrf.mxu0
          %v2392 = vadd.f32 %v2199, %v2391
          %v2393 = vpop.f32.mrf.mxu0
          %v2394 = vadd.f32 %v2201, %v2393
          %2395 = vmatprep.mubr.bf16.mxu0 %v1677
          %2396 = vmatmul.mubr.bf16.gmra.mxu0 %v1676
          %v2397 = vpop.f32.mrf.mxu0
          %v2398 = vadd.f32 %v2205, %v2397
          %v2399 = vpop.f32.mrf.mxu0
          %v2400 = vadd.f32 %v2207, %v2399
          %v2401 = vpop.f32.mrf.mxu0
          %v2402 = vadd.f32 %v2209, %v2401
          %v2403 = vpop.f32.mrf.mxu0
          %v2404 = vadd.f32 %v2211, %v2403
          %2405 = vmatprep.mubr.bf16.mxu0 %v1681
          %2406 = vmatmul.mubr.bf16.gmra.mxu0 %v1680
          %v2407 = vpop.f32.mrf.mxu0
          %v2408 = vadd.f32 %v2215, %v2407
          %v2409 = vpop.f32.mrf.mxu0
          %v2410 = vadd.f32 %v2217, %v2409
          %v2411 = vpop.f32.mrf.mxu0
          %v2412 = vadd.f32 %v2219, %v2411
          %v2413 = vpop.f32.mrf.mxu0
          %v2414 = vadd.f32 %v2221, %v2413
          %2415 = vmatprep.mubr.bf16.mxu0 %v1685
          %2416 = vmatmul.mubr.bf16.gmra.mxu0 %v1684
          %v2417 = vpop.f32.mrf.mxu0
          %v2418 = vadd.f32 %v2225, %v2417
          %v2419 = vpop.f32.mrf.mxu0
          %v2420 = vadd.f32 %v2227, %v2419
          %v2421 = vpop.f32.mrf.mxu0
          %v2422 = vadd.f32 %v2229, %v2421
          %v2423 = vpop.f32.mrf.mxu0
          %v2424 = vadd.f32 %v2231, %v2423
          %2425 = vmatprep.mubr.bf16.mxu0 %v1689
          %2426 = vmatmul.mubr.bf16.gmra.mxu0 %v1688
          %v2427 = vpop.f32.mrf.mxu0
          %v2428 = vadd.f32 %v2235, %v2427
          %v2429 = vpop.f32.mrf.mxu0
          %v2430 = vadd.f32 %v2237, %v2429
          %v2431 = vpop.f32.mrf.mxu0
          %v2432 = vadd.f32 %v2239, %v2431
          %v2433 = vpop.f32.mrf.mxu0
          %v2434 = vadd.f32 %v2241, %v2433
          %2435 = vmatprep.mubr.bf16.mxu0 %v1693
          %2436 = vmatmul.mubr.bf16.gmra.mxu0 %v1692
          %v2437 = vpop.f32.mrf.mxu0
          %v2438 = vadd.f32 %v2245, %v2437
          %v2439 = vpop.f32.mrf.mxu0
          %v2440 = vadd.f32 %v2247, %v2439
          %v2441 = vpop.f32.mrf.mxu0
          %v2442 = vadd.f32 %v2249, %v2441
          %v2443 = vpop.f32.mrf.mxu0
          %v2444 = vadd.f32 %v2251, %v2443
          %2445 = vmatprep.mubr.bf16.mxu0 %v1697
          %2446 = vmatmul.mubr.bf16.gmra.mxu0 %v1696
          %v2447 = vpop.f32.mrf.mxu0
          %v2448 = vadd.f32 %v2255, %v2447
          %v2449 = vpop.f32.mrf.mxu0
          %v2450 = vadd.f32 %v2257, %v2449
          %v2451 = vpop.f32.mrf.mxu0
          %v2452 = vadd.f32 %v2259, %v2451
          %v2453 = vpop.f32.mrf.mxu0
          %v2454 = vadd.f32 %v2261, %v2453
          %2455 = vmatprep.mubr.bf16.mxu0 %v1701
          %2456 = vmatmul.mubr.bf16.gmra.mxu0 %v1700
          %v2457 = vpop.f32.mrf.mxu0
          %v2458 = vadd.f32 %v2265, %v2457
          %v2459 = vpop.f32.mrf.mxu0
          %v2460 = vadd.f32 %v2267, %v2459
          %v2461 = vpop.f32.mrf.mxu0
          %v2462 = vadd.f32 %v2269, %v2461
          %v2463 = vpop.f32.mrf.mxu0
          %v2464 = vadd.f32 %v2271, %v2463
          %2465 = vmatprep.mubr.bf16.mxu0 %v1705
          %2466 = vmatmul.mubr.bf16.gmra.mxu0 %v1704
          %v2467 = vpop.f32.mrf.mxu0
          %v2468 = vadd.f32 %v2275, %v2467
          %v2469 = vpop.f32.mrf.mxu0
          %v2470 = vadd.f32 %v2277, %v2469
          %v2471 = vpop.f32.mrf.mxu0
          %v2472 = vadd.f32 %v2279, %v2471
          %v2473 = vpop.f32.mrf.mxu0
          %v2474 = vadd.f32 %v2281, %v2473
          %2475 = vmatprep.mubr.bf16.mxu0 %v1709
          %2476 = vmatmul.mubr.bf16.gmra.mxu0 %v1708
          %v2477 = vpop.f32.mrf.mxu0
          %v2478 = vadd.f32 %v2285, %v2477
          %v2479 = vpop.f32.mrf.mxu0
          %v2480 = vadd.f32 %v2287, %v2479
          %v2481 = vpop.f32.mrf.mxu0
          %v2482 = vadd.f32 %v2289, %v2481
          %v2483 = vpop.f32.mrf.mxu0
          %v2484 = vadd.f32 %v2291, %v2483
          %2485 = vmatprep.mubr.bf16.mxu0 %v1713
          %2486 = vmatmul.mubr.bf16.gmra.mxu0 %v1712
          %v2487 = vpop.f32.mrf.mxu0
          %v2488 = vadd.f32 %v2295, %v2487
          %v2489 = vpop.f32.mrf.mxu0
          %v2490 = vadd.f32 %v2297, %v2489
          %v2491 = vpop.f32.mrf.mxu0
          %v2492 = vadd.f32 %v2299, %v2491
          %v2493 = vpop.f32.mrf.mxu0
          %v2494 = vadd.f32 %v2301, %v2493
          %2495 = vdwg.mxu0
          %v2496 = vmax.f32 %v2338, 0.0
          %v2497 = vmax.f32 %v2340, 0.0
          %v2498 = vmax.f32 %v2342, 0.0
          %v2499 = vmax.f32 %v2344, 0.0
          %v2500 = vmax.f32 %v2348, 0.0
          %v2501 = vmax.f32 %v2350, 0.0
          %v2502 = vmax.f32 %v2352, 0.0
          %v2503 = vmax.f32 %v2354, 0.0
          %v2504 = vmax.f32 %v2358, 0.0
          %v2505 = vmax.f32 %v2360, 0.0
          %v2506 = vmax.f32 %v2362, 0.0
          %v2507 = vmax.f32 %v2364, 0.0
          %v2508 = vmax.f32 %v2368, 0.0
          %v2509 = vmax.f32 %v2370, 0.0
          %v2510 = vmax.f32 %v2372, 0.0
          %v2511 = vmax.f32 %v2374, 0.0
          %v2512 = vmax.f32 %v2378, 0.0
          %v2513 = vmax.f32 %v2380, 0.0
          %v2514 = vmax.f32 %v2382, 0.0
          %v2515 = vmax.f32 %v2384, 0.0
          %v2516 = vmax.f32 %v2388, 0.0
          %v2517 = vmax.f32 %v2390, 0.0
          %v2518 = vmax.f32 %v2392, 0.0
          %v2519 = vmax.f32 %v2394, 0.0
          %v2520 = vmax.f32 %v2398, 0.0
          %v2521 = vmax.f32 %v2400, 0.0
          %v2522 = vmax.f32 %v2402, 0.0
          %v2523 = vmax.f32 %v2404, 0.0
          %v2524 = vmax.f32 %v2408, 0.0
          %v2525 = vmax.f32 %v2410, 0.0
          %v2526 = vmax.f32 %v2412, 0.0
          %v2527 = vmax.f32 %v2414, 0.0
          %v2528 = vmax.f32 %v2418, 0.0
          %v2529 = vmax.f32 %v2420, 0.0
          %v2530 = vmax.f32 %v2422, 0.0
          %v2531 = vmax.f32 %v2424, 0.0
          %v2532 = vmax.f32 %v2428, 0.0
          %v2533 = vmax.f32 %v2430, 0.0
          %v2534 = vmax.f32 %v2432, 0.0
          %v2535 = vmax.f32 %v2434, 0.0
          %v2536 = vmax.f32 %v2438, 0.0
          %v2537 = vmax.f32 %v2440, 0.0
          %v2538 = vmax.f32 %v2442, 0.0
          %v2539 = vmax.f32 %v2444, 0.0
          %v2540 = vmax.f32 %v2448, 0.0
          %v2541 = vmax.f32 %v2450, 0.0
          %v2542 = vmax.f32 %v2452, 0.0
          %v2543 = vmax.f32 %v2454, 0.0
          %v2544 = vmax.f32 %v2458, 0.0
          %v2545 = vmax.f32 %v2460, 0.0
          %v2546 = vmax.f32 %v2462, 0.0
          %v2547 = vmax.f32 %v2464, 0.0
          %v2548 = vmax.f32 %v2468, 0.0
          %v2549 = vmax.f32 %v2470, 0.0
          %v2550 = vmax.f32 %v2472, 0.0
          %v2551 = vmax.f32 %v2474, 0.0
          %v2552 = vmax.f32 %v2478, 0.0
          %v2553 = vmax.f32 %v2480, 0.0
          %v2554 = vmax.f32 %v2482, 0.0
          %v2555 = vmax.f32 %v2484, 0.0
          %v2556 = vmax.f32 %v2488, 0.0
          %v2557 = vmax.f32 %v2490, 0.0
          %v2558 = vmax.f32 %v2492, 0.0
          %v2559 = vmax.f32 %v2494, 0.0
          %v2560 = vpack.c.bf16 %v2498, %v2496
          %v2561 = vpack.c.bf16 %v2499, %v2497
          %v2562 = vpack.c.bf16 %v2502, %v2500
          %v2563 = vpack.c.bf16 %v2503, %v2501
          %v2564 = vpack.c.bf16 %v2506, %v2504
          %v2565 = vpack.c.bf16 %v2507, %v2505
          %v2566 = vpack.c.bf16 %v2510, %v2508
          %v2567 = vpack.c.bf16 %v2511, %v2509
          %v2568 = vpack.c.bf16 %v2514, %v2512
          %v2569 = vpack.c.bf16 %v2515, %v2513
          %v2570 = vpack.c.bf16 %v2518, %v2516
          %v2571 = vpack.c.bf16 %v2519, %v2517
          %v2572 = vpack.c.bf16 %v2522, %v2520
          %v2573 = vpack.c.bf16 %v2523, %v2521
          %v2574 = vpack.c.bf16 %v2526, %v2524
          %v2575 = vpack.c.bf16 %v2527, %v2525
          %v2576 = vpack.c.bf16 %v2530, %v2528
          %v2577 = vpack.c.bf16 %v2531, %v2529
          %v2578 = vpack.c.bf16 %v2534, %v2532
          %v2579 = vpack.c.bf16 %v2535, %v2533
          %v2580 = vpack.c.bf16 %v2538, %v2536
          %v2581 = vpack.c.bf16 %v2539, %v2537
          %v2582 = vpack.c.bf16 %v2542, %v2540
          %v2583 = vpack.c.bf16 %v2543, %v2541
          %v2584 = vpack.c.bf16 %v2546, %v2544
          %v2585 = vpack.c.bf16 %v2547, %v2545
          %v2586 = vpack.c.bf16 %v2550, %v2548
          %v2587 = vpack.c.bf16 %v2551, %v2549
          %v2588 = vpack.c.bf16 %v2554, %v2552
          %v2589 = vpack.c.bf16 %v2555, %v2553
          %v2590 = vpack.c.bf16 %v2558, %v2556
          %v2591 = vpack.c.bf16 %v2559, %v2557
          %v2624 = vunpack.c.l.b16 %v2560
          %v2625 = vunpack.c.l.b16 %v2561
          %v2626 = vunpack.c.h.b16 %v2560
          %v2627 = vunpack.c.h.b16 %v2561
          %v2628 = vunpack.c.l.b16 %v2562
          %v2629 = vunpack.c.l.b16 %v2563
          %v2630 = vunpack.c.h.b16 %v2562
          %v2631 = vunpack.c.h.b16 %v2563
          %v2632 = vunpack.c.l.b16 %v2564
          %v2633 = vunpack.c.l.b16 %v2565
          %v2634 = vunpack.c.h.b16 %v2564
          %v2635 = vunpack.c.h.b16 %v2565
          %v2636 = vunpack.c.l.b16 %v2566
          %v2637 = vunpack.c.l.b16 %v2567
          %v2638 = vunpack.c.h.b16 %v2566
          %v2639 = vunpack.c.h.b16 %v2567
          %v2640 = vunpack.c.l.b16 %v2568
          %v2641 = vunpack.c.l.b16 %v2569
          %v2642 = vunpack.c.h.b16 %v2568
          %v2643 = vunpack.c.h.b16 %v2569
          %v2644 = vunpack.c.l.b16 %v2570
          %v2645 = vunpack.c.l.b16 %v2571
          %v2646 = vunpack.c.h.b16 %v2570
          %v2647 = vunpack.c.h.b16 %v2571
          %v2648 = vunpack.c.l.b16 %v2572
          %v2649 = vunpack.c.l.b16 %v2573
          %v2650 = vunpack.c.h.b16 %v2572
          %v2651 = vunpack.c.h.b16 %v2573
          %v2652 = vunpack.c.l.b16 %v2574
          %v2653 = vunpack.c.l.b16 %v2575
          %v2654 = vunpack.c.h.b16 %v2574
          %v2655 = vunpack.c.h.b16 %v2575
          %v2656 = vunpack.c.l.b16 %v2576
          %v2657 = vunpack.c.l.b16 %v2577
          %v2658 = vunpack.c.h.b16 %v2576
          %v2659 = vunpack.c.h.b16 %v2577
          %v2660 = vunpack.c.l.b16 %v2578
          %v2661 = vunpack.c.l.b16 %v2579
          %v2662 = vunpack.c.h.b16 %v2578
          %v2663 = vunpack.c.h.b16 %v2579
          %v2664 = vunpack.c.l.b16 %v2580
          %v2665 = vunpack.c.l.b16 %v2581
          %v2666 = vunpack.c.h.b16 %v2580
          %v2667 = vunpack.c.h.b16 %v2581
          %v2668 = vunpack.c.l.b16 %v2582
          %v2669 = vunpack.c.l.b16 %v2583
          %v2670 = vunpack.c.h.b16 %v2582
          %v2671 = vunpack.c.h.b16 %v2583
          %v2672 = vunpack.c.l.b16 %v2584
          %v2673 = vunpack.c.l.b16 %v2585
          %v2674 = vunpack.c.h.b16 %v2584
          %v2675 = vunpack.c.h.b16 %v2585
          %v2676 = vunpack.c.l.b16 %v2586
          %v2677 = vunpack.c.l.b16 %v2587
          %v2678 = vunpack.c.h.b16 %v2586
          %v2679 = vunpack.c.h.b16 %v2587
          %v2680 = vunpack.c.l.b16 %v2588
          %v2681 = vunpack.c.l.b16 %v2589
          %v2682 = vunpack.c.h.b16 %v2588
          %v2683 = vunpack.c.h.b16 %v2589
          %v2684 = vunpack.c.l.b16 %v2590
          %v2685 = vunpack.c.l.b16 %v2591
          %v2686 = vunpack.c.h.b16 %v2590
          %v2687 = vunpack.c.h.b16 %v2591
          %v2688 = vpack.c.b16 %v2625, %v2624
          %v2689 = vpack.c.b16 %v2627, %v2626
          %v2690 = vpack.c.b16 %v2629, %v2628
          %v2691 = vpack.c.b16 %v2631, %v2630
          %v2692 = vpack.c.b16 %v2633, %v2632
          %v2693 = vpack.c.b16 %v2635, %v2634
          %v2694 = vpack.c.b16 %v2637, %v2636
          %v2695 = vpack.c.b16 %v2639, %v2638
          %v2696 = vpack.c.b16 %v2641, %v2640
          %v2697 = vpack.c.b16 %v2643, %v2642
          %v2698 = vpack.c.b16 %v2645, %v2644
          %v2699 = vpack.c.b16 %v2647, %v2646
          %v2700 = vpack.c.b16 %v2649, %v2648
          %v2701 = vpack.c.b16 %v2651, %v2650
          %v2702 = vpack.c.b16 %v2653, %v2652
          %v2703 = vpack.c.b16 %v2655, %v2654
          %v2704 = vpack.c.b16 %v2657, %v2656
          %v2705 = vpack.c.b16 %v2659, %v2658
          %v2706 = vpack.c.b16 %v2661, %v2660
          %v2707 = vpack.c.b16 %v2663, %v2662
          %v2708 = vpack.c.b16 %v2665, %v2664
          %v2709 = vpack.c.b16 %v2667, %v2666
          %v2710 = vpack.c.b16 %v2669, %v2668
          %v2711 = vpack.c.b16 %v2671, %v2670
          %v2712 = vpack.c.b16 %v2673, %v2672
          %v2713 = vpack.c.b16 %v2675, %v2674
          %v2714 = vpack.c.b16 %v2677, %v2676
          %v2715 = vpack.c.b16 %v2679, %v2678
          %v2716 = vpack.c.b16 %v2681, %v2680
          %v2717 = vpack.c.b16 %v2683, %v2682
          %v2718 = vpack.c.b16 %v2685, %v2684
          %v2719 = vpack.c.b16 %v2687, %v2686
          %2752 = vst [vmem:[%s455] sm:$0xff] %v2688
          %2753 = vst [vmem:[%s455 + $0x8] sm:$0xff] %v2689
          %2754 = vst [vmem:[%s455 + $0x10] sm:$0xff] %v2690
          %2755 = vst [vmem:[%s455 + $0x18] sm:$0xff] %v2691
          %2756 = vst [vmem:[%s455 + $0x20] sm:$0xff] %v2692
          %2757 = vst [vmem:[%s455 + $0x28] sm:$0xff] %v2693
          %2758 = vst [vmem:[%s455 + $0x30] sm:$0xff] %v2694
          %2759 = vst [vmem:[%s455 + $0x38] sm:$0xff] %v2695
          %2760 = vst [vmem:[%s455 + $0x40] sm:$0xff] %v2696
          %2761 = vst [vmem:[%s455 + $0x48] sm:$0xff] %v2697
          %2762 = vst [vmem:[%s455 + $0x50] sm:$0xff] %v2698
          %2763 = vst [vmem:[%s455 + $0x58] sm:$0xff] %v2699
          %2764 = vst [vmem:[%s455 + $0x60] sm:$0xff] %v2700
          %2765 = vst [vmem:[%s455 + $0x68] sm:$0xff] %v2701
          %2766 = vst [vmem:[%s455 + $0x70] sm:$0xff] %v2702
          %2767 = vst [vmem:[%s455 + $0x78] sm:$0xff] %v2703
          %2768 = vst [vmem:[%s455 + $0x80] sm:$0xff] %v2704
          %2769 = vst [vmem:[%s455 + $0x88] sm:$0xff] %v2705
          %2770 = vst [vmem:[%s455 + $0x90] sm:$0xff] %v2706
          %2771 = vst [vmem:[%s455 + $0x98] sm:$0xff] %v2707
          %2772 = vst [vmem:[%s455 + $0xa0] sm:$0xff] %v2708
          %2773 = vst [vmem:[%s455 + $0xa8] sm:$0xff] %v2709
          %2774 = vst [vmem:[%s455 + $0xb0] sm:$0xff] %v2710
          %2775 = vst [vmem:[%s455 + $0xb8] sm:$0xff] %v2711
          %2776 = vst [vmem:[%s455 + $0xc0] sm:$0xff] %v2712
          %2777 = vst [vmem:[%s455 + $0xc8] sm:$0xff] %v2713
          %2778 = vst [vmem:[%s455 + $0xd0] sm:$0xff] %v2714
          %2779 = vst [vmem:[%s455 + $0xd8] sm:$0xff] %v2715
          %2780 = vst [vmem:[%s455 + $0xe0] sm:$0xff] %v2716
          %2781 = vst [vmem:[%s455 + $0xe8] sm:$0xff] %v2717
          %2782 = vst [vmem:[%s455 + $0xf0] sm:$0xff] %v2718
          %2783 = vst [vmem:[%s455 + $0xf8] sm:$0xff] %v2719
        $region86: #{node_classifier_forward.2} parent=73 // pred_fallthru
          _
        %s2784 = smul.u32 32, %s20
        %p2785 = scmp.lt.s32.totalorder %s2784, 63
        %s2786 = scalar_select %p2785, %s2784, 63
        %s2787 = smul.addr %s2786, 2
        %s2788 = smul.addr %s2787, 4
        %s2789 = scalar_lea.vmem %s5, %s2788
        // Predicated region
        $region87: #{node_classifier_forward.2} parent=73 // pred_check
          %p2790 = pneg %p168
        $region88: #{node_classifier_forward.2} parent=73 // pred_check_branch
          %2792 = sbr.rel (%p2790) target = $region90
        $region89: #{node_classifier_forward.2} parent=73 // pred_region
          %s2793 = smul.u32 32, %s20
        $region90: #{node_classifier_forward.2} parent=73 // pred_fallthru
          _
      $region74: #{node_classifier_forward.2} parent=5 // pred_fallthru
        _
      %p2794 = scmp.le.s32.totalorder 2, %s11
      // Predicated region
      $region91: #{node_classifier_forward.2} parent=5 // pred_check
        %p2795 = pneg %p2794
      $region92: #{node_classifier_forward.2} parent=5 // pred_check_branch
        %2797 = sbr.rel (%p2795) target = $region94
      $region93: #{node_classifier_forward.2} parent=5 // pred_region
        %s2798 = ssub.s32 %s11, 2
        // Predicated region
        $region95: #{node_classifier_forward.2} parent=93 // pred_check
          %p2799 = pneg %p174
        $region96: #{node_classifier_forward.2} parent=93 // pred_check_branch
          %2801 = sbr.rel (%p2799) target = $region98
        $region97: #{node_classifier_forward.2} parent=93 // pred_region
          %s2802 = smul.u32 32, %s22
          %p2803 = scmp.lt.s32.totalorder %s2802, 63
          %s2804 = scalar_select %p2803, %s2802, 63
          %s2805 = smul.addr %s2804, 2
          %s2806 = smul.addr %s2805, 4
          %s2807 = scalar_lea.vmem %s5, %s2806
        $region98: #{node_classifier_forward.2} parent=93 // pred_fallthru
          _
      $region94: #{node_classifier_forward.2} parent=5 // pred_fallthru
        _
    $region6: #{node_classifier_forward.2} parent=1 // loop_footer
      %s15 = sadd.s32 1, %s11
    $region7: #{node_classifier_forward.2} parent=1 // loop_footer_branch
      %10 = sbr.rel target = $region3
    $region8: #{node_classifier_forward.2} parent=1 // loop_exit
      _

// kernel: node_classifier_forward.3
$region0: #{node_classifier_forward.3}
  #allocation0 [shape = 'u32[]', space=smem, size = 0x4, offset = 0x4, fixed_abs, tag = 'smem constant byte address 0x4 - core index']
  #allocation1 [shape = 'u32[144,128]{1,0:T(1,128)}', space=vmem, size = 0x12000, scoped, tag = 'internal scratch']
  #allocation2 [shape = 'f32[256,512]{1,0:T(8,128)}', space=vmem, size = 0x80000, scoped, tag = 'scratch operand']
  %s0 = inlined_call_operand.vmem [shape: bf16[512,512], index: 0, kind: input, shape index: {}]
  %s1 = inlined_call_operand.vmem [shape: bf16[512,256], index: 1, kind: input, shape index: {}, may-alias: {1,2}]
  %s2 = inlined_call_operand.vmem [shape: bf16[512,256], index: 2, kind: input, shape index: {}, may-alias: {1,2}]
  %s3 = inlined_call_operand.vmem [shape: bf16[512,128], index: 3, kind: input, shape index: {}]
  %s4 = inlined_call_operand.vmem [shape: f32[1,128], index: 4, kind: input, shape index: {}]
  %s5 = inlined_call_operand.vmem [shape: f32[512,128], index: 5, kind: output, shape index: {}]
  %s6 = sld [smem:[#allocation0]]
  $region99: #{node_classifier_forward.3} parent=0
    _
  %s8 = ssub.s32 1, %s6
  %s9 = scalar_select 0, %s8, %s6
  $region1: #{node_classifier_forward.3} parent=0
    #allocation3 [shape = 'u8[262144]{0}', space=vmem, size = 0x40000, scoped, tag = 'input window, operand 0']
    loop: start=0, step=1, limit=6
    $region2: #{node_classifier_forward.3} parent=1 // loop_pre_header
      _
    $region3: #{node_classifier_forward.3} parent=1 // loop_header
      %s11 = sphi 0, %s15
      %p12 = scmp.ge.s32.totalorder %s11, 6
      %s18 = sphi 0, %s30
      %s19 = sphi 0, %s26
      %s20 = sphi 0, %s18
      %s21 = sphi 0, %s19
      %s22 = sphi 0, %s20
      %s23 = sphi 0, %s21
      %s35 = sphi 0, %s37
      %s38 = sphi 0, %s35
      %s39 = sphi 0, %s38
      %s55 = sphi 0, %s39
      %s61 = sphi 0, %s63
      %s64 = sphi 0, %s61
      %s65 = sphi 0, %s64
      %s81 = sphi 0, %s65
      %s87 = sphi 0, %s89
      %s90 = sphi 0, %s87
      %s91 = sphi 0, %s90
      %s107 = sphi 0, %s91
      %s111 = sphi 0, %s111
      %s113 = sphi 0, %s111
      %s114 = sphi 0, %s113
      %s128 = sphi 0, %s114
      %s132 = sphi 0, %s132
      %s134 = sphi 0, %s132
      %s135 = sphi 0, %s134
      %s149 = sphi 0, %s135
      %s155 = sphi 0, %s157
      %s158 = sphi 0, %s155
      %s159 = sphi 0, %s158
      %s175 = sphi 0, %s159
    $region4: #{node_classifier_forward.3} parent=1 // loop_header_branch
      %14 = sbr.rel (%p12) target = $region8
    $region5: #{node_classifier_forward.3} parent=1 // loop_body
      %s16 = ssub.s32 %s11, 1
      %s17 = ssub.s32 %s11, 2
      %s24 = sadd.s32 1, %s19
      %p25 = scmp.ge.s32.totalorder %s24, 2
      %s26 = scalar_select %p25, 0, %s24
      %s27 = sadd.s32 1, %s18
      %s28 = scalar_select %p25, %s27, %s18
      %p29 = scmp.ge.s32.totalorder %s28, 2
      %s30 = scalar_select %p29, 0, %s28
      %s31 = ssub.s32 %s18, %s30
      %s32 = ssub.s32 %s19, %s26
      %s33 = sor.u32 %s31, %s32
      %p34 = scmp.eq.s32.totalorder %s33, 0
      %s36 = sadd.s32 %s35, 1
      %s37 = scalar_select %p34, %s35, %s36
      %p40 = pneg %p34
      %p41 = scmp.eq.s32.totalorder %s11, 3
      %p42 = por %p40, %p41
      %p43 = scmp.ne.s32.totalorder %s35, %s38
      %p44 = scmp.eq.s32.totalorder %s11, 0
      %p45 = por %p43, %p44
      %p46 = scmp.ne.s32.totalorder %s35, %s38
      %p47 = scmp.eq.s32.totalorder %s16, 3
      %p48 = por %p46, %p47
      %p49 = scmp.ne.s32.totalorder %s38, %s39
      %p50 = scmp.eq.s32.totalorder %s16, 0
      %p51 = por %p49, %p50
      %p52 = scmp.ne.s32.totalorder %s38, %s39
      %p53 = scmp.eq.s32.totalorder %s17, 3
      %p54 = por %p52, %p53
      %p56 = scmp.ne.s32.totalorder %s39, %s55
      %p57 = scmp.eq.s32.totalorder %s17, 0
      %p58 = por %p56, %p57
      %s59 = ssub.s32 %s19, %s26
      %p60 = scmp.eq.s32.totalorder %s59, 0
      %s62 = sadd.s32 %s61, 1
      %s63 = scalar_select %p60, %s61, %s62
      %p66 = pneg %p60
      %p67 = scmp.eq.s32.totalorder %s11, 3
      %p68 = por %p66, %p67
      %p69 = scmp.ne.s32.totalorder %s61, %s64
      %p70 = scmp.eq.s32.totalorder %s11, 0
      %p71 = por %p69, %p70
      %p72 = scmp.ne.s32.totalorder %s61, %s64
      %p73 = scmp.eq.s32.totalorder %s16, 3
      %p74 = por %p72, %p73
      %p75 = scmp.ne.s32.totalorder %s64, %s65
      %p76 = scmp.eq.s32.totalorder %s16, 0
      %p77 = por %p75, %p76
      %p78 = scmp.ne.s32.totalorder %s64, %s65
      %p79 = scmp.eq.s32.totalorder %s17, 3
      %p80 = por %p78, %p79
      %p82 = scmp.ne.s32.totalorder %s65, %s81
      %p83 = scmp.eq.s32.totalorder %s17, 0
      %p84 = por %p82, %p83
      %s85 = ssub.s32 %s18, %s30
      %p86 = scmp.eq.s32.totalorder %s85, 0
      %s88 = sadd.s32 %s87, 1
      %s89 = scalar_select %p86, %s87, %s88
      %p92 = pneg %p86
      %p93 = scmp.eq.s32.totalorder %s11, 3
      %p94 = por %p92, %p93
      %p95 = scmp.ne.s32.totalorder %s87, %s90
      %p96 = scmp.eq.s32.totalorder %s11, 0
      %p97 = por %p95, %p96
      %p98 = scmp.ne.s32.totalorder %s87, %s90
      %p99 = scmp.eq.s32.totalorder %s16, 3
      %p100 = por %p98, %p99
      %p101 = scmp.ne.s32.totalorder %s90, %s91
      %p102 = scmp.eq.s32.totalorder %s16, 0
      %p103 = por %p101, %p102
      %p104 = scmp.ne.s32.totalorder %s90, %s91
      %p105 = scmp.eq.s32.totalorder %s17, 3
      %p106 = por %p104, %p105
      %p108 = scmp.ne.s32.totalorder %s91, %s107
      %p109 = scmp.eq.s32.totalorder %s17, 0
      %p110 = por %p108, %p109
      %s112 = sadd.s32 %s111, 1
      %p115 = scmp.eq.s32.totalorder %s11, 3
      %p116 = scmp.ne.s32.totalorder %s111, %s113
      %p117 = scmp.eq.s32.totalorder %s11, 0
      %p118 = por %p116, %p117
      %p119 = scmp.ne.s32.totalorder %s111, %s113
      %p120 = scmp.eq.s32.totalorder %s16, 3
      %p121 = por %p119, %p120
      %p122 = scmp.ne.s32.totalorder %s113, %s114
      %p123 = scmp.eq.s32.totalorder %s16, 0
      %p124 = por %p122, %p123
      %p125 = scmp.ne.s32.totalorder %s113, %s114
      %p126 = scmp.eq.s32.totalorder %s17, 3
      %p127 = por %p125, %p126
      %p129 = scmp.ne.s32.totalorder %s114, %s128
      %p130 = scmp.eq.s32.totalorder %s17, 0
      %p131 = por %p129, %p130
      %s133 = sadd.s32 %s132, 1
      %p136 = scmp.eq.s32.totalorder %s11, 3
      %p137 = scmp.ne.s32.totalorder %s132, %s134
      %p138 = scmp.eq.s32.totalorder %s11, 0
      %p139 = por %p137, %p138
      %p140 = scmp.ne.s32.totalorder %s132, %s134
      %p141 = scmp.eq.s32.totalorder %s16, 3
      %p142 = por %p140, %p141
      %p143 = scmp.ne.s32.totalorder %s134, %s135
      %p144 = scmp.eq.s32.totalorder %s16, 0
      %p145 = por %p143, %p144
      %p146 = scmp.ne.s32.totalorder %s134, %s135
      %p147 = scmp.eq.s32.totalorder %s17, 3
      %p148 = por %p146, %p147
      %p150 = scmp.ne.s32.totalorder %s135, %s149
      %p151 = scmp.eq.s32.totalorder %s17, 0
      %p152 = por %p150, %p151
      %s153 = ssub.s32 %s18, %s30
      %p154 = scmp.eq.s32.totalorder %s153, 0
      %s156 = sadd.s32 %s155, 1
      %s157 = scalar_select %p154, %s155, %s156
      %p160 = pneg %p154
      %p161 = scmp.eq.s32.totalorder %s11, 3
      %p162 = por %p160, %p161
      %p163 = scmp.ne.s32.totalorder %s155, %s158
      %p164 = scmp.eq.s32.totalorder %s11, 0
      %p165 = por %p163, %p164
      %p166 = scmp.ne.s32.totalorder %s155, %s158
      %p167 = scmp.eq.s32.totalorder %s16, 3
      %p168 = por %p166, %p167
      %p169 = scmp.ne.s32.totalorder %s158, %s159
      %p170 = scmp.eq.s32.totalorder %s16, 0
      %p171 = por %p169, %p170
      %p172 = scmp.ne.s32.totalorder %s158, %s159
      %p173 = scmp.eq.s32.totalorder %s17, 3
      %p174 = por %p172, %p173
      %p176 = scmp.ne.s32.totalorder %s159, %s175
      %p177 = scmp.eq.s32.totalorder %s17, 0
      %p178 = por %p176, %p177
      %p179 = scmp.le.s32.totalorder 1, %s11
      %p180 = scmp.lt.s32.totalorder %s11, 5
      %p181 = pnand %p179, %p180
      %p182 = pneg %p181
      // Predicated region
      $region9: #{node_classifier_forward.3} parent=5 // pred_check
        _
      $region10: #{node_classifier_forward.3} parent=5 // pred_check_branch
        %184 = sbr.rel (%p181) target = $region12
      $region11: #{node_classifier_forward.3} parent=5 // pred_region
        %s185 = ssub.s32 %s11, 1
        // Predicated region
        $region13: #{node_classifier_forward.3} parent=11 // pred_check
          %p186 = pneg %p124
        $region14: #{node_classifier_forward.3} parent=11 // pred_check_branch
          %188 = sbr.rel (%p186) target = $region16
        $region15: #{node_classifier_forward.3} parent=11 // pred_region
          _
        $region16: #{node_classifier_forward.3} parent=11 // pred_fallthru
          _
        // Predicated region
        $region17: #{node_classifier_forward.3} parent=11 // pred_check
          %p189 = pneg %p145
        $region18: #{node_classifier_forward.3} parent=11 // pred_check_branch
          %191 = sbr.rel (%p189) target = $region20
        $region19: #{node_classifier_forward.3} parent=11 // pred_region
          _
        $region20: #{node_classifier_forward.3} parent=11 // pred_fallthru
          _
      $region12: #{node_classifier_forward.3} parent=5 // pred_fallthru
        _
      %p192 = scmp.lt.s32.totalorder %s11, 4
      // Predicated region
      $region21: #{node_classifier_forward.3} parent=5 // pred_check
        %p193 = pneg %p192
      $region22: #{node_classifier_forward.3} parent=5 // pred_check_branch
        %195 = sbr.rel (%p193) target = $region24
      $region23: #{node_classifier_forward.3} parent=5 // pred_region
        // Predicated region
        $region25: #{node_classifier_forward.3} parent=23 // pred_check
          %p196 = pneg %p45
        $region26: #{node_classifier_forward.3} parent=23 // pred_check_branch
          %198 = sbr.rel (%p196) target = $region28
        $region27: #{node_classifier_forward.3} parent=23 // pred_region
          %s199 = sand.u32 %s35, 1
          %s200 = sand.u32 %s35, 1
          %s201 = smul.addr %s200, 256
          %s202 = scalar_lea.vmem [#allocation3], %s201
          %s203 = smul.u32 32, %s18
          %s204 = smul.u32 2, %s19
          %s205 = smul.addr %s203, 4
          %s206 = sadd.s32 %s204, %s205
          %s207 = smul.addr %s206, 4
          %s208 = scalar_lea.vmem %s0, %s207
          // Predicated region
          $region29: #{node_classifier_forward.3} parent=27 // pred_check
            _
          $region30: #{node_classifier_forward.3} parent=27 // pred_check_branch
            %210 = sbr.rel (0) target = $region32
          $region31: #{node_classifier_forward.3} parent=27 // pred_region
            // Predicated region
            $region33: #{node_classifier_forward.3} parent=31 // pred_check
              _
            $region34: #{node_classifier_forward.3} parent=31 // pred_check_branch
              %212 = sbr.rel (0) target = $region36
            $region35: #{node_classifier_forward.3} parent=31 // pred_region
              // Predicated region
              $region48: #{node_classifier_forward.3} parent=35 // pred_check
                _
              $region49: #{node_classifier_forward.3} parent=35 // pred_check_branch
                %290 = sbr.rel (0) target = $region51
              $region50: #{node_classifier_forward.3} parent=35 // pred_region
                loop: start=0, step=1, limit=1
                $region52: #{node_classifier_forward.3} parent=50 // loop_pre_header
                  _
                $region53: #{node_classifier_forward.3} parent=50 // loop_header
                  %s292 = sphi 0, %s296
                  %p293 = scmp.ge.s32.totalorder %s292, 1
                  %s297 = sphi %s208, %s208
                  %s298 = sphi %s202, %s202
                $region54: #{node_classifier_forward.3} parent=50 // loop_header_branch
                  %295 = sbr.rel (%p293) target = $region58
                $region55: #{node_classifier_forward.3} parent=50 // loop_body
                  %v299 = vld [vmem:[%s297] sm:$0xff]
                  %300 = vst [vmem:[%s298] sm:$0xff] %v299
                  %v301 = vld [vmem:[%s297 + $0x10] sm:$0xff]
                  %302 = vst [vmem:[%s298 + $0x8] sm:$0xff] %v301
                  %v303 = vld [vmem:[%s297 + $0x20] sm:$0xff]
                  %304 = vst [vmem:[%s298 + $0x10] sm:$0xff] %v303
                  %v305 = vld [vmem:[%s297 + $0x30] sm:$0xff]
                  %306 = vst [vmem:[%s298 + $0x18] sm:$0xff] %v305
                  %v307 = vld [vmem:[%s297 + $0x40] sm:$0xff]
                  %308 = vst [vmem:[%s298 + $0x20] sm:$0xff] %v307
                  %v309 = vld [vmem:[%s297 + $0x50] sm:$0xff]
                  %310 = vst [vmem:[%s298 + $0x28] sm:$0xff] %v309
                  %v311 = vld [vmem:[%s297 + $0x60] sm:$0xff]
                  %312 = vst [vmem:[%s298 + $0x30] sm:$0xff] %v311
                  %v313 = vld [vmem:[%s297 + $0x70] sm:$0xff]
                  %314 = vst [vmem:[%s298 + $0x38] sm:$0xff] %v313
                  %v315 = vld [vmem:[%s297 + $0x80] sm:$0xff]
                  %316 = vst [vmem:[%s298 + $0x40] sm:$0xff] %v315
                  %v317 = vld [vmem:[%s297 + $0x90] sm:$0xff]
                  %318 = vst [vmem:[%s298 + $0x48] sm:$0xff] %v317
                  %v319 = vld [vmem:[%s297 + $0xa0] sm:$0xff]
                  %320 = vst [vmem:[%s298 + $0x50] sm:$0xff] %v319
                  %v321 = vld [vmem:[%s297 + $0xb0] sm:$0xff]
                  %322 = vst [vmem:[%s298 + $0x58] sm:$0xff] %v321
                  %v323 = vld [vmem:[%s297 + $0xc0] sm:$0xff]
                  %324 = vst [vmem:[%s298 + $0x60] sm:$0xff] %v323
                  %v325 = vld [vmem:[%s297 + $0xd0] sm:$0xff]
                  %326 = vst [vmem:[%s298 + $0x68] sm:$0xff] %v325
                  %v327 = vld [vmem:[%s297 + $0xe0] sm:$0xff]
                  %328 = vst [vmem:[%s298 + $0x70] sm:$0xff] %v327
                  %v329 = vld [vmem:[%s297 + $0xf0] sm:$0xff]
                  %330 = vst [vmem:[%s298 + $0x78] sm:$0xff] %v329
                  %v331 = vld [vmem:[%s297 + $0x100] sm:$0xff]
                  %332 = vst [vmem:[%s298 + $0x80] sm:$0xff] %v331
                  %v333 = vld [vmem:[%s297 + $0x110] sm:$0xff]
                  %334 = vst [vmem:[%s298 + $0x88] sm:$0xff] %v333
                  %v335 = vld [vmem:[%s297 + $0x120] sm:$0xff]
                  %336 = vst [vmem:[%s298 + $0x90] sm:$0xff] %v335
                  %v337 = vld [vmem:[%s297 + $0x130] sm:$0xff]
                  %338 = vst [vmem:[%s298 + $0x98] sm:$0xff] %v337
                  %v339 = vld [vmem:[%s297 + $0x140] sm:$0xff]
                  %340 = vst [vmem:[%s298 + $0xa0] sm:$0xff] %v339
                  %v341 = vld [vmem:[%s297 + $0x150] sm:$0xff]
                  %342 = vst [vmem:[%s298 + $0xa8] sm:$0xff] %v341
                  %v343 = vld [vmem:[%s297 + $0x160] sm:$0xff]
                  %344 = vst [vmem:[%s298 + $0xb0] sm:$0xff] %v343
                  %v345 = vld [vmem:[%s297 + $0x170] sm:$0xff]
                  %346 = vst [vmem:[%s298 + $0xb8] sm:$0xff] %v345
                  %v347 = vld [vmem:[%s297 + $0x180] sm:$0xff]
                  %348 = vst [vmem:[%s298 + $0xc0] sm:$0xff] %v347
                  %v349 = vld [vmem:[%s297 + $0x190] sm:$0xff]
                  %350 = vst [vmem:[%s298 + $0xc8] sm:$0xff] %v349
                  %v351 = vld [vmem:[%s297 + $0x1a0] sm:$0xff]
                  %352 = vst [vmem:[%s298 + $0xd0] sm:$0xff] %v351
                  %v353 = vld [vmem:[%s297 + $0x1b0] sm:$0xff]
                  %354 = vst [vmem:[%s298 + $0xd8] sm:$0xff] %v353
                  %v355 = vld [vmem:[%s297 + $0x1c0] sm:$0xff]
                  %356 = vst [vmem:[%s298 + $0xe0] sm:$0xff] %v355
                  %v357 = vld [vmem:[%s297 + $0x1d0] sm:$0xff]
                  %358 = vst [vmem:[%s298 + $0xe8] sm:$0xff] %v357
                  %v359 = vld [vmem:[%s297 + $0x1e0] sm:$0xff]
                  %360 = vst [vmem:[%s298 + $0xf0] sm:$0xff] %v359
                  %v361 = vld [vmem:[%s297 + $0x1f0] sm:$0xff]
                  %362 = vst [vmem:[%s298 + $0xf8] sm:$0xff] %v361
                $region56: #{node_classifier_forward.3} parent=50 // loop_footer
                  %s296 = sadd.s32 1, %s292
                $region57: #{node_classifier_forward.3} parent=50 // loop_footer_branch
                  %291 = sbr.rel target = $region53
                $region58: #{node_classifier_forward.3} parent=50 // loop_exit
                  _
              $region51: #{node_classifier_forward.3} parent=35 // pred_fallthru
                _
              // Predicated region
              $region59: #{node_classifier_forward.3} parent=35 // pred_check
                _
              $region60: #{node_classifier_forward.3} parent=35 // pred_check_branch
                %364 = sbr.rel target = $region62
              $region61: #{node_classifier_forward.3} parent=35 // pred_region
                _
              $region62: #{node_classifier_forward.3} parent=35 // pred_fallthru
                _
            $region36: #{node_classifier_forward.3} parent=31 // pred_fallthru
              _
            // Predicated region
            $region37: #{node_classifier_forward.3} parent=31 // pred_check
              _
            $region38: #{node_classifier_forward.3} parent=31 // pred_check_branch
              %214 = sbr.rel target = $region40
            $region39: #{node_classifier_forward.3} parent=31 // pred_region
              %s216 = ssub.s32 256, 1
              loop: start=0, step=1, limit=1
              $region41: #{node_classifier_forward.3} parent=39 // loop_pre_header
                _
              $region42: #{node_classifier_forward.3} parent=39 // loop_header
                %s218 = sphi 0, %s222
                %p219 = scmp.ge.s32.totalorder %s218, 1
                %s223 = sphi %s208, %s208
                %s224 = sphi %s202, %s202
              $region43: #{node_classifier_forward.3} parent=39 // loop_header_branch
                %221 = sbr.rel (%p219) target = $region47
              $region44: #{node_classifier_forward.3} parent=39 // loop_body
                %v225 = vld [vmem:[%s223] sm:%s216]
                %226 = vst [vmem:[%s224] sm:%s216] %v225
                %v227 = vld [vmem:[%s223 + $0x10] sm:%s216]
                %228 = vst [vmem:[%s224 + $0x8] sm:%s216] %v227
                %v229 = vld [vmem:[%s223 + $0x20] sm:%s216]
                %230 = vst [vmem:[%s224 + $0x10] sm:%s216] %v229
                %v231 = vld [vmem:[%s223 + $0x30] sm:%s216]
                %232 = vst [vmem:[%s224 + $0x18] sm:%s216] %v231
                %v233 = vld [vmem:[%s223 + $0x40] sm:%s216]
                %234 = vst [vmem:[%s224 + $0x20] sm:%s216] %v233
                %v235 = vld [vmem:[%s223 + $0x50] sm:%s216]
                %236 = vst [vmem:[%s224 + $0x28] sm:%s216] %v235
                %v237 = vld [vmem:[%s223 + $0x60] sm:%s216]
                %238 = vst [vmem:[%s224 + $0x30] sm:%s216] %v237
                %v239 = vld [vmem:[%s223 + $0x70] sm:%s216]
                %240 = vst [vmem:[%s224 + $0x38] sm:%s216] %v239
                %v241 = vld [vmem:[%s223 + $0x80] sm:%s216]
                %242 = vst [vmem:[%s224 + $0x40] sm:%s216] %v241
                %v243 = vld [vmem:[%s223 + $0x90] sm:%s216]
                %244 = vst [vmem:[%s224 + $0x48] sm:%s216] %v243
                %v245 = vld [vmem:[%s223 + $0xa0] sm:%s216]
                %246 = vst [vmem:[%s224 + $0x50] sm:%s216] %v245
                %v247 = vld [vmem:[%s223 + $0xb0] sm:%s216]
                %248 = vst [vmem:[%s224 + $0x58] sm:%s216] %v247
                %v249 = vld [vmem:[%s223 + $0xc0] sm:%s216]
                %250 = vst [vmem:[%s224 + $0x60] sm:%s216] %v249
                %v251 = vld [vmem:[%s223 + $0xd0] sm:%s216]
                %252 = vst [vmem:[%s224 + $0x68] sm:%s216] %v251
                %v253 = vld [vmem:[%s223 + $0xe0] sm:%s216]
                %254 = vst [vmem:[%s224 + $0x70] sm:%s216] %v253
                %v255 = vld [vmem:[%s223 + $0xf0] sm:%s216]
                %256 = vst [vmem:[%s224 + $0x78] sm:%s216] %v255
                %v257 = vld [vmem:[%s223 + $0x100] sm:%s216]
                %258 = vst [vmem:[%s224 + $0x80] sm:%s216] %v257
                %v259 = vld [vmem:[%s223 + $0x110] sm:%s216]
                %260 = vst [vmem:[%s224 + $0x88] sm:%s216] %v259
                %v261 = vld [vmem:[%s223 + $0x120] sm:%s216]
                %262 = vst [vmem:[%s224 + $0x90] sm:%s216] %v261
                %v263 = vld [vmem:[%s223 + $0x130] sm:%s216]
                %264 = vst [vmem:[%s224 + $0x98] sm:%s216] %v263
                %v265 = vld [vmem:[%s223 + $0x140] sm:%s216]
                %266 = vst [vmem:[%s224 + $0xa0] sm:%s216] %v265
                %v267 = vld [vmem:[%s223 + $0x150] sm:%s216]
                %268 = vst [vmem:[%s224 + $0xa8] sm:%s216] %v267
                %v269 = vld [vmem:[%s223 + $0x160] sm:%s216]
                %270 = vst [vmem:[%s224 + $0xb0] sm:%s216] %v269
                %v271 = vld [vmem:[%s223 + $0x170] sm:%s216]
                %272 = vst [vmem:[%s224 + $0xb8] sm:%s216] %v271
                %v273 = vld [vmem:[%s223 + $0x180] sm:%s216]
                %274 = vst [vmem:[%s224 + $0xc0] sm:%s216] %v273
                %v275 = vld [vmem:[%s223 + $0x190] sm:%s216]
                %276 = vst [vmem:[%s224 + $0xc8] sm:%s216] %v275
                %v277 = vld [vmem:[%s223 + $0x1a0] sm:%s216]
                %278 = vst [vmem:[%s224 + $0xd0] sm:%s216] %v277
                %v279 = vld [vmem:[%s223 + $0x1b0] sm:%s216]
                %280 = vst [vmem:[%s224 + $0xd8] sm:%s216] %v279
                %v281 = vld [vmem:[%s223 + $0x1c0] sm:%s216]
                %282 = vst [vmem:[%s224 + $0xe0] sm:%s216] %v281
                %v283 = vld [vmem:[%s223 + $0x1d0] sm:%s216]
                %284 = vst [vmem:[%s224 + $0xe8] sm:%s216] %v283
                %v285 = vld [vmem:[%s223 + $0x1e0] sm:%s216]
                %286 = vst [vmem:[%s224 + $0xf0] sm:%s216] %v285
                %v287 = vld [vmem:[%s223 + $0x1f0] sm:%s216]
                %288 = vst [vmem:[%s224 + $0xf8] sm:%s216] %v287
              $region45: #{node_classifier_forward.3} parent=39 // loop_footer
                %s222 = sadd.s32 1, %s218
              $region46: #{node_classifier_forward.3} parent=39 // loop_footer_branch
                %217 = sbr.rel target = $region42
              $region47: #{node_classifier_forward.3} parent=39 // loop_exit
                _
            $region40: #{node_classifier_forward.3} parent=31 // pred_fallthru
              _
          $region32: #{node_classifier_forward.3} parent=27 // pred_fallthru
            _
          %365 = vnop
        $region28: #{node_classifier_forward.3} parent=23 // pred_fallthru
          _
        // Predicated region
        $region63: #{node_classifier_forward.3} parent=23 // pred_check
          %p366 = pneg %p71
        $region64: #{node_classifier_forward.3} parent=23 // pred_check_branch
          %368 = sbr.rel (%p366) target = $region66
        $region65: #{node_classifier_forward.3} parent=23 // pred_region
          %s369 = smul.u32 32, %s19
          %p370 = scmp.lt.s32.totalorder %s369, 63
          %s371 = scalar_select %p370, %s369, 63
          %s372 = smul.addr %s371, 2
          %s373 = smul.addr %s372, 4
          %s374 = scalar_lea.vmem %s1, %s373
          %s375 = smul.u32 32, %s19
        $region66: #{node_classifier_forward.3} parent=23 // pred_fallthru
          _
        // Predicated region
        $region67: #{node_classifier_forward.3} parent=23 // pred_check
          %p376 = pneg %p97
        $region68: #{node_classifier_forward.3} parent=23 // pred_check_branch
          %378 = sbr.rel (%p376) target = $region70
        $region69: #{node_classifier_forward.3} parent=23 // pred_region
          %s379 = smul.u32 32, %s18
          %p380 = scmp.lt.s32.totalorder %s379, 63
          %s381 = scalar_select %p380, %s379, 63
          %s382 = smul.addr %s381, 2
          %s383 = smul.addr %s382, 4
          %s384 = scalar_lea.vmem %s2, %s383
          %s385 = smul.u32 32, %s18
        $region70: #{node_classifier_forward.3} parent=23 // pred_fallthru
          _
      $region24: #{node_classifier_forward.3} parent=5 // pred_fallthru
        _
      %p386 = scmp.le.s32.totalorder 1, %s11
      %p387 = scmp.lt.s32.totalorder %s11, 5
      %p388 = pnand %p386, %p387
      %p389 = pneg %p388
      // Predicated region
      $region71: #{node_classifier_forward.3} parent=5 // pred_check
        _
      $region72: #{node_classifier_forward.3} parent=5 // pred_check_branch
        %391 = sbr.rel (%p388) target = $region74
      $region73: #{node_classifier_forward.3} parent=5 // pred_region
        %s392 = ssub.s32 %s11, 1
        %s393 = sand.u32 %s38, 1
        %s394 = sand.u32 %s38, 1
        %s395 = smul.addr %s394, 256
        %s396 = scalar_lea.vmem [#allocation3], %s395
        // Predicated region
        $region75: #{node_classifier_forward.3} parent=73 // pred_check
          %p397 = pneg %p51
        $region76: #{node_classifier_forward.3} parent=73 // pred_check_branch
          %399 = sbr.rel (%p397) target = $region78
        $region77: #{node_classifier_forward.3} parent=73 // pred_region
          _
        $region78: #{node_classifier_forward.3} parent=73 // pred_fallthru
          _
        %s400 = sand.u32 %s38, 1
        %s401 = sand.u32 %s38, 1
        %s402 = smul.addr %s401, 256
        %s403 = scalar_lea.vmem [#allocation3], %s402
        %p404 = pneg %p51
        %p405 = pneg %p48
        %s406 = smul.u32 32, %s21
        %p407 = scmp.lt.s32.totalorder %s406, 63
        %s408 = scalar_select %p407, %s406, 63
        %s409 = smul.addr %s408, 2
        %s410 = smul.addr %s409, 4
        %s411 = scalar_lea.vmem %s1, %s410
        %p412 = pneg %p77
        %p413 = pneg %p74
        %s414 = smul.u32 32, %s20
        %p415 = scmp.lt.s32.totalorder %s414, 63
        %s416 = scalar_select %p415, %s414, 63
        %s417 = smul.addr %s416, 2
        %s418 = smul.addr %s417, 4
        %s419 = scalar_lea.vmem %s2, %s418
        %p420 = pneg %p103
        %p421 = pneg %p100
        %p422 = pneg %p124
        %p423 = pneg %p121
        %p424 = pneg %p145
        %p425 = pneg %p142
        %p426 = pneg %p171
        %p427 = pneg %p168
        %s428 = smul.u32 32, %s20
        %p429 = scmp.lt.s32.totalorder %s428, 63
        %s430 = scalar_select %p429, %s428, 63
        %s431 = smul.addr %s430, 8
        %s432 = scalar_lea.vmem %s5, %s431
        %s433 = smul.u32 32, %s20
        %s434 = smul.u32 2, %s21
        %s435 = smul.u32 32, %s21
        %p436 = scmp.lt.s32.totalorder %s435, 63
        %s437 = scalar_select %p436, %s435, 63
        %s438 = smul.addr %s437, 2
        %s439 = smul.addr %s438, 4
        %s440 = scalar_lea.vmem %s1, %s439
        %s441 = smul.u32 32, %s21
        %s442 = smul.u32 32, %s20
        %p443 = scmp.lt.s32.totalorder %s442, 63
        %s444 = scalar_select %p443, %s442, 63
        %s445 = smul.addr %s444, 2
        %s446 = smul.addr %s445, 4
        %s447 = scalar_lea.vmem %s2, %s446
        %s448 = smul.u32 32, %s20
        %s449 = smul.u32 32, %s20
        %p450 = scmp.lt.s32.totalorder %s449, 63
        %s451 = scalar_select %p450, %s449, 63
        %s452 = smul.addr %s451, 8
        %s453 = scalar_lea.vmem %s5, %s452
        %s454 = smul.u32 32, %s20
        %p456 = scmp.eq.s32.totalorder %s21, 0
        // Predicated region
        $region79: #{node_classifier_forward.3} parent=73 // pred_check
          %p457 = pneg %p456
        $region80: #{node_classifier_forward.3} parent=73 // pred_check_branch
          %459 = sbr.rel (%p457) target = $region82
        $region81: #{node_classifier_forward.3} parent=73 // pred_region
          %460 = vst [vmem:[#allocation2] sm:$0xff] 0.0
          %461 = vst [vmem:[#allocation2 + $0x8] sm:$0xff] 0.0
          %462 = vst [vmem:[#allocation2 + $0x10] sm:$0xff] 0.0
          %463 = vst [vmem:[#allocation2 + $0x18] sm:$0xff] 0.0
          %464 = vst [vmem:[#allocation2 + $0x20] sm:$0xff] 0.0
          %465 = vst [vmem:[#allocation2 + $0x28] sm:$0xff] 0.0
          %466 = vst [vmem:[#allocation2 + $0x30] sm:$0xff] 0.0
          %467 = vst [vmem:[#allocation2 + $0x38] sm:$0xff] 0.0
          %468 = vst [vmem:[#allocation2 + $0x40] sm:$0xff] 0.0
          %469 = vst [vmem:[#allocation2 + $0x48] sm:$0xff] 0.0
          %470 = vst [vmem:[#allocation2 + $0x50] sm:$0xff] 0.0
          %471 = vst [vmem:[#allocation2 + $0x58] sm:$0xff] 0.0
          %472 = vst [vmem:[#allocation2 + $0x60] sm:$0xff] 0.0
          %473 = vst [vmem:[#allocation2 + $0x68] sm:$0xff] 0.0
          %474 = vst [vmem:[#allocation2 + $0x70] sm:$0xff] 0.0
          %475 = vst [vmem:[#allocation2 + $0x78] sm:$0xff] 0.0
          %476 = vst [vmem:[#allocation2 + $0x80] sm:$0xff] 0.0
          %477 = vst [vmem:[#allocation2 + $0x88] sm:$0xff] 0.0
          %478 = vst [vmem:[#allocation2 + $0x90] sm:$0xff] 0.0
          %479 = vst [vmem:[#allocation2 + $0x98] sm:$0xff] 0.0
          %480 = vst [vmem:[#allocation2 + $0xa0] sm:$0xff] 0.0
          %481 = vst [vmem:[#allocation2 + $0xa8] sm:$0xff] 0.0
          %482 = vst [vmem:[#allocation2 + $0xb0] sm:$0xff] 0.0
          %483 = vst [vmem:[#allocation2 + $0xb8] sm:$0xff] 0.0
          %484 = vst [vmem:[#allocation2 + $0xc0] sm:$0xff] 0.0
          %485 = vst [vmem:[#allocation2 + $0xc8] sm:$0xff] 0.0
          %486 = vst [vmem:[#allocation2 + $0xd0] sm:$0xff] 0.0
          %487 = vst [vmem:[#allocation2 + $0xd8] sm:$0xff] 0.0
          %488 = vst [vmem:[#allocation2 + $0xe0] sm:$0xff] 0.0
          %489 = vst [vmem:[#allocation2 + $0xe8] sm:$0xff] 0.0
          %490 = vst [vmem:[#allocation2 + $0xf0] sm:$0xff] 0.0
          %491 = vst [vmem:[#allocation2 + $0xf8] sm:$0xff] 0.0
          %492 = vst [vmem:[#allocation2 + $0x100] sm:$0xff] 0.0
          %493 = vst [vmem:[#allocation2 + $0x108] sm:$0xff] 0.0
          %494 = vst [vmem:[#allocation2 + $0x110] sm:$0xff] 0.0
          %495 = vst [vmem:[#allocation2 + $0x118] sm:$0xff] 0.0
          %496 = vst [vmem:[#allocation2 + $0x120] sm:$0xff] 0.0
          %497 = vst [vmem:[#allocation2 + $0x128] sm:$0xff] 0.0
          %498 = vst [vmem:[#allocation2 + $0x130] sm:$0xff] 0.0
          %499 = vst [vmem:[#allocation2 + $0x138] sm:$0xff] 0.0
          %500 = vst [vmem:[#allocation2 + $0x140] sm:$0xff] 0.0
          %501 = vst [vmem:[#allocation2 + $0x148] sm:$0xff] 0.0
          %502 = vst [vmem:[#allocation2 + $0x150] sm:$0xff] 0.0
          %503 = vst [vmem:[#allocation2 + $0x158] sm:$0xff] 0.0
          %504 = vst [vmem:[#allocation2 + $0x160] sm:$0xff] 0.0
          %505 = vst [vmem:[#allocation2 + $0x168] sm:$0xff] 0.0
          %506 = vst [vmem:[#allocation2 + $0x170] sm:$0xff] 0.0
          %507 = vst [vmem:[#allocation2 + $0x178] sm:$0xff] 0.0
          %508 = vst [vmem:[#allocation2 + $0x180] sm:$0xff] 0.0
          %509 = vst [vmem:[#allocation2 + $0x188] sm:$0xff] 0.0
          %510 = vst [vmem:[#allocation2 + $0x190] sm:$0xff] 0.0
          %511 = vst [vmem:[#allocation2 + $0x198] sm:$0xff] 0.0
          %512 = vst [vmem:[#allocation2 + $0x1a0] sm:$0xff] 0.0
          %513 = vst [vmem:[#allocation2 + $0x1a8] sm:$0xff] 0.0
          %514 = vst [vmem:[#allocation2 + $0x1b0] sm:$0xff] 0.0
          %515 = vst [vmem:[#allocation2 + $0x1b8] sm:$0xff] 0.0
          %516 = vst [vmem:[#allocation2 + $0x1c0] sm:$0xff] 0.0
          %517 = vst [vmem:[#allocation2 + $0x1c8] sm:$0xff] 0.0
          %518 = vst [vmem:[#allocation2 + $0x1d0] sm:$0xff] 0.0
          %519 = vst [vmem:[#allocation2 + $0x1d8] sm:$0xff] 0.0
          %520 = vst [vmem:[#allocation2 + $0x1e0] sm:$0xff] 0.0
          %521 = vst [vmem:[#allocation2 + $0x1e8] sm:$0xff] 0.0
          %522 = vst [vmem:[#allocation2 + $0x1f0] sm:$0xff] 0.0
          %523 = vst [vmem:[#allocation2 + $0x1f8] sm:$0xff] 0.0
          %524 = vst [vmem:[#allocation2 + $0x200] sm:$0xff] 0.0
          %525 = vst [vmem:[#allocation2 + $0x208] sm:$0xff] 0.0
          %526 = vst [vmem:[#allocation2 + $0x210] sm:$0xff] 0.0
          %527 = vst [vmem:[#allocation2 + $0x218] sm:$0xff] 0.0
          %528 = vst [vmem:[#allocation2 + $0x220] sm:$0xff] 0.0
          %529 = vst [vmem:[#allocation2 + $0x228] sm:$0xff] 0.0
          %530 = vst [vmem:[#allocation2 + $0x230] sm:$0xff] 0.0
          %531 = vst [vmem:[#allocation2 + $0x238] sm:$0xff] 0.0
          %532 = vst [vmem:[#allocation2 + $0x240] sm:$0xff] 0.0
          %533 = vst [vmem:[#allocation2 + $0x248] sm:$0xff] 0.0
          %534 = vst [vmem:[#allocation2 + $0x250] sm:$0xff] 0.0
          %535 = vst [vmem:[#allocation2 + $0x258] sm:$0xff] 0.0
          %536 = vst [vmem:[#allocation2 + $0x260] sm:$0xff] 0.0
          %537 = vst [vmem:[#allocation2 + $0x268] sm:$0xff] 0.0
          %538 = vst [vmem:[#allocation2 + $0x270] sm:$0xff] 0.0
          %539 = vst [vmem:[#allocation2 + $0x278] sm:$0xff] 0.0
          %540 = vst [vmem:[#allocation2 + $0x280] sm:$0xff] 0.0
          %541 = vst [vmem:[#allocation2 + $0x288] sm:$0xff] 0.0
          %542 = vst [vmem:[#allocation2 + $0x290] sm:$0xff] 0.0
          %543 = vst [vmem:[#allocation2 + $0x298] sm:$0xff] 0.0
          %544 = vst [vmem:[#allocation2 + $0x2a0] sm:$0xff] 0.0
          %545 = vst [vmem:[#allocation2 + $0x2a8] sm:$0xff] 0.0
          %546 = vst [vmem:[#allocation2 + $0x2b0] sm:$0xff] 0.0
          %547 = vst [vmem:[#allocation2 + $0x2b8] sm:$0xff] 0.0
          %548 = vst [vmem:[#allocation2 + $0x2c0] sm:$0xff] 0.0
          %549 = vst [vmem:[#allocation2 + $0x2c8] sm:$0xff] 0.0
          %550 = vst [vmem:[#allocation2 + $0x2d0] sm:$0xff] 0.0
          %551 = vst [vmem:[#allocation2 + $0x2d8] sm:$0xff] 0.0
          %552 = vst [vmem:[#allocation2 + $0x2e0] sm:$0xff] 0.0
          %553 = vst [vmem:[#allocation2 + $0x2e8] sm:$0xff] 0.0
          %554 = vst [vmem:[#allocation2 + $0x2f0] sm:$0xff] 0.0
          %555 = vst [vmem:[#allocation2 + $0x2f8] sm:$0xff] 0.0
          %556 = vst [vmem:[#allocation2 + $0x300] sm:$0xff] 0.0
          %557 = vst [vmem:[#allocation2 + $0x308] sm:$0xff] 0.0
          %558 = vst [vmem:[#allocation2 + $0x310] sm:$0xff] 0.0
          %559 = vst [vmem:[#allocation2 + $0x318] sm:$0xff] 0.0
          %560 = vst [vmem:[#allocation2 + $0x320] sm:$0xff] 0.0
          %561 = vst [vmem:[#allocation2 + $0x328] sm:$0xff] 0.0
          %562 = vst [vmem:[#allocation2 + $0x330] sm:$0xff] 0.0
          %563 = vst [vmem:[#allocation2 + $0x338] sm:$0xff] 0.0
          %564 = vst [vmem:[#allocation2 + $0x340] sm:$0xff] 0.0
          %565 = vst [vmem:[#allocation2 + $0x348] sm:$0xff] 0.0
          %566 = vst [vmem:[#allocation2 + $0x350] sm:$0xff] 0.0
          %567 = vst [vmem:[#allocation2 + $0x358] sm:$0xff] 0.0
          %568 = vst [vmem:[#allocation2 + $0x360] sm:$0xff] 0.0
          %569 = vst [vmem:[#allocation2 + $0x368] sm:$0xff] 0.0
          %570 = vst [vmem:[#allocation2 + $0x370] sm:$0xff] 0.0
          %571 = vst [vmem:[#allocation2 + $0x378] sm:$0xff] 0.0
          %572 = vst [vmem:[#allocation2 + $0x380] sm:$0xff] 0.0
          %573 = vst [vmem:[#allocation2 + $0x388] sm:$0xff] 0.0
          %574 = vst [vmem:[#allocation2 + $0x390] sm:$0xff] 0.0
          %575 = vst [vmem:[#allocation2 + $0x398] sm:$0xff] 0.0
          %576 = vst [vmem:[#allocation2 + $0x3a0] sm:$0xff] 0.0
          %577 = vst [vmem:[#allocation2 + $0x3a8] sm:$0xff] 0.0
          %578 = vst [vmem:[#allocation2 + $0x3b0] sm:$0xff] 0.0
          %579 = vst [vmem:[#allocation2 + $0x3b8] sm:$0xff] 0.0
          %580 = vst [vmem:[#allocation2 + $0x3c0] sm:$0xff] 0.0
          %581 = vst [vmem:[#allocation2 + $0x3c8] sm:$0xff] 0.0
          %582 = vst [vmem:[#allocation2 + $0x3d0] sm:$0xff] 0.0
          %583 = vst [vmem:[#allocation2 + $0x3d8] sm:$0xff] 0.0
          %584 = vst [vmem:[#allocation2 + $0x3e0] sm:$0xff] 0.0
          %585 = vst [vmem:[#allocation2 + $0x3e8] sm:$0xff] 0.0
          %586 = vst [vmem:[#allocation2 + $0x3f0] sm:$0xff] 0.0
          %587 = vst [vmem:[#allocation2 + $0x3f8] sm:$0xff] 0.0
          %v588 = vld [vmem:[%s447] sm:$0xff]
          %v589 = vld [vmem:[%s447 + $0x8] sm:$0xff]
          %v590 = vld [vmem:[%s447 + $0x10] sm:$0xff]
          %v591 = vld [vmem:[%s447 + $0x18] sm:$0xff]
          %v592 = vld [vmem:[%s447 + $0x20] sm:$0xff]
          %v593 = vld [vmem:[%s447 + $0x28] sm:$0xff]
          %v594 = vld [vmem:[%s447 + $0x30] sm:$0xff]
          %v595 = vld [vmem:[%s447 + $0x38] sm:$0xff]
          %v596 = vld [vmem:[%s447 + $0x40] sm:$0xff]
          %v597 = vld [vmem:[%s447 + $0x48] sm:$0xff]
          %v598 = vld [vmem:[%s447 + $0x50] sm:$0xff]
          %v599 = vld [vmem:[%s447 + $0x58] sm:$0xff]
          %v600 = vld [vmem:[%s447 + $0x60] sm:$0xff]
          %v601 = vld [vmem:[%s447 + $0x68] sm:$0xff]
          %v602 = vld [vmem:[%s447 + $0x70] sm:$0xff]
          %v603 = vld [vmem:[%s447 + $0x78] sm:$0xff]
          %v604 = vld [vmem:[%s447 + $0x80] sm:$0xff]
          %v605 = vld [vmem:[%s447 + $0x88] sm:$0xff]
          %v606 = vld [vmem:[%s447 + $0x90] sm:$0xff]
          %v607 = vld [vmem:[%s447 + $0x98] sm:$0xff]
          %v608 = vld [vmem:[%s447 + $0xa0] sm:$0xff]
          %v609 = vld [vmem:[%s447 + $0xa8] sm:$0xff]
          %v610 = vld [vmem:[%s447 + $0xb0] sm:$0xff]
          %v611 = vld [vmem:[%s447 + $0xb8] sm:$0xff]
          %v612 = vld [vmem:[%s447 + $0xc0] sm:$0xff]
          %v613 = vld [vmem:[%s447 + $0xc8] sm:$0xff]
          %v614 = vld [vmem:[%s447 + $0xd0] sm:$0xff]
          %v615 = vld [vmem:[%s447 + $0xd8] sm:$0xff]
          %v616 = vld [vmem:[%s447 + $0xe0] sm:$0xff]
          %v617 = vld [vmem:[%s447 + $0xe8] sm:$0xff]
          %v618 = vld [vmem:[%s447 + $0xf0] sm:$0xff]
          %v619 = vld [vmem:[%s447 + $0xf8] sm:$0xff]
          %v620 = vunpack.c.l.bf16 %v588
          %v621 = vunpack.c.h.bf16 %v588
          %v622 = vunpack.c.l.bf16 %v589
          %v623 = vunpack.c.h.bf16 %v589
          %v624 = vunpack.c.l.bf16 %v590
          %v625 = vunpack.c.h.bf16 %v590
          %v626 = vunpack.c.l.bf16 %v591
          %v627 = vunpack.c.h.bf16 %v591
          %v628 = vunpack.c.l.bf16 %v592
          %v629 = vunpack.c.h.bf16 %v592
          %v630 = vunpack.c.l.bf16 %v593
          %v631 = vunpack.c.h.bf16 %v593
          %v632 = vunpack.c.l.bf16 %v594
          %v633 = vunpack.c.h.bf16 %v594
          %v634 = vunpack.c.l.bf16 %v595
          %v635 = vunpack.c.h.bf16 %v595
          %v636 = vunpack.c.l.bf16 %v596
          %v637 = vunpack.c.h.bf16 %v596
          %v638 = vunpack.c.l.bf16 %v597
          %v639 = vunpack.c.h.bf16 %v597
          %v640 = vunpack.c.l.bf16 %v598
          %v641 = vunpack.c.h.bf16 %v598
          %v642 = vunpack.c.l.bf16 %v599
          %v643 = vunpack.c.h.bf16 %v599
          %v644 = vunpack.c.l.bf16 %v600
          %v645 = vunpack.c.h.bf16 %v600
          %v646 = vunpack.c.l.bf16 %v601
          %v647 = vunpack.c.h.bf16 %v601
          %v648 = vunpack.c.l.bf16 %v602
          %v649 = vunpack.c.h.bf16 %v602
          %v650 = vunpack.c.l.bf16 %v603
          %v651 = vunpack.c.h.bf16 %v603
          %v652 = vunpack.c.l.bf16 %v604
          %v653 = vunpack.c.h.bf16 %v604
          %v654 = vunpack.c.l.bf16 %v605
          %v655 = vunpack.c.h.bf16 %v605
          %v656 = vunpack.c.l.bf16 %v606
          %v657 = vunpack.c.h.bf16 %v606
          %v658 = vunpack.c.l.bf16 %v607
          %v659 = vunpack.c.h.bf16 %v607
          %v660 = vunpack.c.l.bf16 %v608
          %v661 = vunpack.c.h.bf16 %v608
          %v662 = vunpack.c.l.bf16 %v609
          %v663 = vunpack.c.h.bf16 %v609
          %v664 = vunpack.c.l.bf16 %v610
          %v665 = vunpack.c.h.bf16 %v610
          %v666 = vunpack.c.l.bf16 %v611
          %v667 = vunpack.c.h.bf16 %v611
          %v668 = vunpack.c.l.bf16 %v612
          %v669 = vunpack.c.h.bf16 %v612
          %v670 = vunpack.c.l.bf16 %v613
          %v671 = vunpack.c.h.bf16 %v613
          %v672 = vunpack.c.l.bf16 %v614
          %v673 = vunpack.c.h.bf16 %v614
          %v674 = vunpack.c.l.bf16 %v615
          %v675 = vunpack.c.h.bf16 %v615
          %v676 = vunpack.c.l.bf16 %v616
          %v677 = vunpack.c.h.bf16 %v616
          %v678 = vunpack.c.l.bf16 %v617
          %v679 = vunpack.c.h.bf16 %v617
          %v680 = vunpack.c.l.bf16 %v618
          %v681 = vunpack.c.h.bf16 %v618
          %v682 = vunpack.c.l.bf16 %v619
          %v683 = vunpack.c.h.bf16 %v619
          %684 = vst [vmem:[#allocation2 + $0x10] sm:$0xff] %v620
          %685 = vst [vmem:[#allocation2 + $0x18] sm:$0xff] %v621
          %686 = vst [vmem:[#allocation2 + $0x30] sm:$0xff] %v622
          %687 = vst [vmem:[#allocation2 + $0x38] sm:$0xff] %v623
          %688 = vst [vmem:[#allocation2 + $0x50] sm:$0xff] %v624
          %689 = vst [vmem:[#allocation2 + $0x58] sm:$0xff] %v625
          %690 = vst [vmem:[#allocation2 + $0x70] sm:$0xff] %v626
          %691 = vst [vmem:[#allocation2 + $0x78] sm:$0xff] %v627
          %692 = vst [vmem:[#allocation2 + $0x90] sm:$0xff] %v628
          %693 = vst [vmem:[#allocation2 + $0x98] sm:$0xff] %v629
          %694 = vst [vmem:[#allocation2 + $0xb0] sm:$0xff] %v630
          %695 = vst [vmem:[#allocation2 + $0xb8] sm:$0xff] %v631
          %696 = vst [vmem:[#allocation2 + $0xd0] sm:$0xff] %v632
          %697 = vst [vmem:[#allocation2 + $0xd8] sm:$0xff] %v633
          %698 = vst [vmem:[#allocation2 + $0xf0] sm:$0xff] %v634
          %699 = vst [vmem:[#allocation2 + $0xf8] sm:$0xff] %v635
          %700 = vst [vmem:[#allocation2 + $0x110] sm:$0xff] %v636
          %701 = vst [vmem:[#allocation2 + $0x118] sm:$0xff] %v637
          %702 = vst [vmem:[#allocation2 + $0x130] sm:$0xff] %v638
          %703 = vst [vmem:[#allocation2 + $0x138] sm:$0xff] %v639
          %704 = vst [vmem:[#allocation2 + $0x150] sm:$0xff] %v640
          %705 = vst [vmem:[#allocation2 + $0x158] sm:$0xff] %v641
          %706 = vst [vmem:[#allocation2 + $0x170] sm:$0xff] %v642
          %707 = vst [vmem:[#allocation2 + $0x178] sm:$0xff] %v643
          %708 = vst [vmem:[#allocation2 + $0x190] sm:$0xff] %v644
          %709 = vst [vmem:[#allocation2 + $0x198] sm:$0xff] %v645
          %710 = vst [vmem:[#allocation2 + $0x1b0] sm:$0xff] %v646
          %711 = vst [vmem:[#allocation2 + $0x1b8] sm:$0xff] %v647
          %712 = vst [vmem:[#allocation2 + $0x1d0] sm:$0xff] %v648
          %713 = vst [vmem:[#allocation2 + $0x1d8] sm:$0xff] %v649
          %714 = vst [vmem:[#allocation2 + $0x1f0] sm:$0xff] %v650
          %715 = vst [vmem:[#allocation2 + $0x1f8] sm:$0xff] %v651
          %716 = vst [vmem:[#allocation2 + $0x210] sm:$0xff] %v652
          %717 = vst [vmem:[#allocation2 + $0x218] sm:$0xff] %v653
          %718 = vst [vmem:[#allocation2 + $0x230] sm:$0xff] %v654
          %719 = vst [vmem:[#allocation2 + $0x238] sm:$0xff] %v655
          %720 = vst [vmem:[#allocation2 + $0x250] sm:$0xff] %v656
          %721 = vst [vmem:[#allocation2 + $0x258] sm:$0xff] %v657
          %722 = vst [vmem:[#allocation2 + $0x270] sm:$0xff] %v658
          %723 = vst [vmem:[#allocation2 + $0x278] sm:$0xff] %v659
          %724 = vst [vmem:[#allocation2 + $0x290] sm:$0xff] %v660
          %725 = vst [vmem:[#allocation2 + $0x298] sm:$0xff] %v661
          %726 = vst [vmem:[#allocation2 + $0x2b0] sm:$0xff] %v662
          %727 = vst [vmem:[#allocation2 + $0x2b8] sm:$0xff] %v663
          %728 = vst [vmem:[#allocation2 + $0x2d0] sm:$0xff] %v664
          %729 = vst [vmem:[#allocation2 + $0x2d8] sm:$0xff] %v665
          %730 = vst [vmem:[#allocation2 + $0x2f0] sm:$0xff] %v666
          %731 = vst [vmem:[#allocation2 + $0x2f8] sm:$0xff] %v667
          %732 = vst [vmem:[#allocation2 + $0x310] sm:$0xff] %v668
          %733 = vst [vmem:[#allocation2 + $0x318] sm:$0xff] %v669
          %734 = vst [vmem:[#allocation2 + $0x330] sm:$0xff] %v670
          %735 = vst [vmem:[#allocation2 + $0x338] sm:$0xff] %v671
          %736 = vst [vmem:[#allocation2 + $0x350] sm:$0xff] %v672
          %737 = vst [vmem:[#allocation2 + $0x358] sm:$0xff] %v673
          %738 = vst [vmem:[#allocation2 + $0x370] sm:$0xff] %v674
          %739 = vst [vmem:[#allocation2 + $0x378] sm:$0xff] %v675
          %740 = vst [vmem:[#allocation2 + $0x390] sm:$0xff] %v676
          %741 = vst [vmem:[#allocation2 + $0x398] sm:$0xff] %v677
          %742 = vst [vmem:[#allocation2 + $0x3b0] sm:$0xff] %v678
          %743 = vst [vmem:[#allocation2 + $0x3b8] sm:$0xff] %v679
          %744 = vst [vmem:[#allocation2 + $0x3d0] sm:$0xff] %v680
          %745 = vst [vmem:[#allocation2 + $0x3d8] sm:$0xff] %v681
          %746 = vst [vmem:[#allocation2 + $0x3f0] sm:$0xff] %v682
          %747 = vst [vmem:[#allocation2 + $0x3f8] sm:$0xff] %v683
        $region82: #{node_classifier_forward.3} parent=73 // pred_fallthru
          _
        %v748 = vld [vmem:[#allocation2] sm:$0xff]
        %v749 = vld [vmem:[#allocation2 + $0x8] sm:$0xff]
        %v750 = vld [vmem:[#allocation2 + $0x20] sm:$0xff]
        %v751 = vld [vmem:[#allocation2 + $0x28] sm:$0xff]
        %v752 = vld [vmem:[#allocation2 + $0x40] sm:$0xff]
        %v753 = vld [vmem:[#allocation2 + $0x48] sm:$0xff]
        %v754 = vld [vmem:[#allocation2 + $0x60] sm:$0xff]
        %v755 = vld [vmem:[#allocation2 + $0x68] sm:$0xff]
        %v756 = vld [vmem:[#allocation2 + $0x80] sm:$0xff]
        %v757 = vld [vmem:[#allocation2 + $0x88] sm:$0xff]
        %v758 = vld [vmem:[#allocation2 + $0xa0] sm:$0xff]
        %v759 = vld [vmem:[#allocation2 + $0xa8] sm:$0xff]
        %v760 = vld [vmem:[#allocation2 + $0xc0] sm:$0xff]
        %v761 = vld [vmem:[#allocation2 + $0xc8] sm:$0xff]
        %v762 = vld [vmem:[#allocation2 + $0xe0] sm:$0xff]
        %v763 = vld [vmem:[#allocation2 + $0xe8] sm:$0xff]
        %v764 = vld [vmem:[#allocation2 + $0x100] sm:$0xff]
        %v765 = vld [vmem:[#allocation2 + $0x108] sm:$0xff]
        %v766 = vld [vmem:[#allocation2 + $0x120] sm:$0xff]
        %v767 = vld [vmem:[#allocation2 + $0x128] sm:$0xff]
        %v768 = vld [vmem:[#allocation2 + $0x140] sm:$0xff]
        %v769 = vld [vmem:[#allocation2 + $0x148] sm:$0xff]
        %v770 = vld [vmem:[#allocation2 + $0x160] sm:$0xff]
        %v771 = vld [vmem:[#allocation2 + $0x168] sm:$0xff]
        %v772 = vld [vmem:[#allocation2 + $0x180] sm:$0xff]
        %v773 = vld [vmem:[#allocation2 + $0x188] sm:$0xff]
        %v774 = vld [vmem:[#allocation2 + $0x1a0] sm:$0xff]
        %v775 = vld [vmem:[#allocation2 + $0x1a8] sm:$0xff]
        %v776 = vld [vmem:[#allocation2 + $0x1c0] sm:$0xff]
        %v777 = vld [vmem:[#allocation2 + $0x1c8] sm:$0xff]
        %v778 = vld [vmem:[#allocation2 + $0x1e0] sm:$0xff]
        %v779 = vld [vmem:[#allocation2 + $0x1e8] sm:$0xff]
        %v780 = vld [vmem:[#allocation2 + $0x200] sm:$0xff]
        %v781 = vld [vmem:[#allocation2 + $0x208] sm:$0xff]
        %v782 = vld [vmem:[#allocation2 + $0x220] sm:$0xff]
        %v783 = vld [vmem:[#allocation2 + $0x228] sm:$0xff]
        %v784 = vld [vmem:[#allocation2 + $0x240] sm:$0xff]
        %v785 = vld [vmem:[#allocation2 + $0x248] sm:$0xff]
        %v786 = vld [vmem:[#allocation2 + $0x260] sm:$0xff]
        %v787 = vld [vmem:[#allocation2 + $0x268] sm:$0xff]
        %v788 = vld [vmem:[#allocation2 + $0x280] sm:$0xff]
        %v789 = vld [vmem:[#allocation2 + $0x288] sm:$0xff]
        %v790 = vld [vmem:[#allocation2 + $0x2a0] sm:$0xff]
        %v791 = vld [vmem:[#allocation2 + $0x2a8] sm:$0xff]
        %v792 = vld [vmem:[#allocation2 + $0x2c0] sm:$0xff]
        %v793 = vld [vmem:[#allocation2 + $0x2c8] sm:$0xff]
        %v794 = vld [vmem:[#allocation2 + $0x2e0] sm:$0xff]
        %v795 = vld [vmem:[#allocation2 + $0x2e8] sm:$0xff]
        %v796 = vld [vmem:[#allocation2 + $0x300] sm:$0xff]
        %v797 = vld [vmem:[#allocation2 + $0x308] sm:$0xff]
        %v798 = vld [vmem:[#allocation2 + $0x320] sm:$0xff]
        %v799 = vld [vmem:[#allocation2 + $0x328] sm:$0xff]
        %v800 = vld [vmem:[#allocation2 + $0x340] sm:$0xff]
        %v801 = vld [vmem:[#allocation2 + $0x348] sm:$0xff]
        %v802 = vld [vmem:[#allocation2 + $0x360] sm:$0xff]
        %v803 = vld [vmem:[#allocation2 + $0x368] sm:$0xff]
        %v804 = vld [vmem:[#allocation2 + $0x380] sm:$0xff]
        %v805 = vld [vmem:[#allocation2 + $0x388] sm:$0xff]
        %v806 = vld [vmem:[#allocation2 + $0x3a0] sm:$0xff]
        %v807 = vld [vmem:[#allocation2 + $0x3a8] sm:$0xff]
        %v808 = vld [vmem:[#allocation2 + $0x3c0] sm:$0xff]
        %v809 = vld [vmem:[#allocation2 + $0x3c8] sm:$0xff]
        %v810 = vld [vmem:[#allocation2 + $0x3e0] sm:$0xff]
        %v811 = vld [vmem:[#allocation2 + $0x3e8] sm:$0xff]
        %v812 = vld [vmem:[%s396] sm:$0xff]
        %v813 = vld [vmem:[%s396 + $0x8] sm:$0xff]
        %v814 = vld [vmem:[%s396 + $0x10] sm:$0xff]
        %v815 = vld [vmem:[%s396 + $0x18] sm:$0xff]
        %v816 = vld [vmem:[%s396 + $0x20] sm:$0xff]
        %v817 = vld [vmem:[%s396 + $0x28] sm:$0xff]
        %v818 = vld [vmem:[%s396 + $0x30] sm:$0xff]
        %v819 = vld [vmem:[%s396 + $0x38] sm:$0xff]
        %v820 = vld [vmem:[%s396 + $0x40] sm:$0xff]
        %v821 = vld [vmem:[%s396 + $0x48] sm:$0xff]
        %v822 = vld [vmem:[%s396 + $0x50] sm:$0xff]
        %v823 = vld [vmem:[%s396 + $0x58] sm:$0xff]
        %v824 = vld [vmem:[%s396 + $0x60] sm:$0xff]
        %v825 = vld [vmem:[%s396 + $0x68] sm:$0xff]
        %v826 = vld [vmem:[%s396 + $0x70] sm:$0xff]
        %v827 = vld [vmem:[%s396 + $0x78] sm:$0xff]
        %v828 = vld [vmem:[%s396 + $0x80] sm:$0xff]
        %v829 = vld [vmem:[%s396 + $0x88] sm:$0xff]
        %v830 = vld [vmem:[%s396 + $0x90] sm:$0xff]
        %v831 = vld [vmem:[%s396 + $0x98] sm:$0xff]
        %v832 = vld [vmem:[%s396 + $0xa0] sm:$0xff]
        %v833 = vld [vmem:[%s396 + $0xa8] sm:$0xff]
        %v834 = vld [vmem:[%s396 + $0xb0] sm:$0xff]
        %v835 = vld [vmem:[%s396 + $0xb8] sm:$0xff]
        %v836 = vld [vmem:[%s396 + $0xc0] sm:$0xff]
        %v837 = vld [vmem:[%s396 + $0xc8] sm:$0xff]
        %v838 = vld [vmem:[%s396 + $0xd0] sm:$0xff]
        %v839 = vld [vmem:[%s396 + $0xd8] sm:$0xff]
        %v840 = vld [vmem:[%s396 + $0xe0] sm:$0xff]
        %v841 = vld [vmem:[%s396 + $0xe8] sm:$0xff]
        %v842 = vld [vmem:[%s396 + $0xf0] sm:$0xff]
        %v843 = vld [vmem:[%s396 + $0xf8] sm:$0xff]
        %v844 = vld [vmem:[%s440] sm:$0xff]
        %v845 = vld [vmem:[%s440 + $0x8] sm:$0xff]
        %v846 = vld [vmem:[%s440 + $0x10] sm:$0xff]
        %v847 = vld [vmem:[%s440 + $0x18] sm:$0xff]
        %v848 = vld [vmem:[%s440 + $0x20] sm:$0xff]
        %v849 = vld [vmem:[%s440 + $0x28] sm:$0xff]
        %v850 = vld [vmem:[%s440 + $0x30] sm:$0xff]
        %v851 = vld [vmem:[%s440 + $0x38] sm:$0xff]
        %v852 = vld [vmem:[%s440 + $0x40] sm:$0xff]
        %v853 = vld [vmem:[%s440 + $0x48] sm:$0xff]
        %v854 = vld [vmem:[%s440 + $0x50] sm:$0xff]
        %v855 = vld [vmem:[%s440 + $0x58] sm:$0xff]
        %v856 = vld [vmem:[%s440 + $0x60] sm:$0xff]
        %v857 = vld [vmem:[%s440 + $0x68] sm:$0xff]
        %v858 = vld [vmem:[%s440 + $0x70] sm:$0xff]
        %v859 = vld [vmem:[%s440 + $0x78] sm:$0xff]
        %v860 = vld [vmem:[%s440 + $0x80] sm:$0xff]
        %v861 = vld [vmem:[%s440 + $0x88] sm:$0xff]
        %v862 = vld [vmem:[%s440 + $0x90] sm:$0xff]
        %v863 = vld [vmem:[%s440 + $0x98] sm:$0xff]
        %v864 = vld [vmem:[%s440 + $0xa0] sm:$0xff]
        %v865 = vld [vmem:[%s440 + $0xa8] sm:$0xff]
        %v866 = vld [vmem:[%s440 + $0xb0] sm:$0xff]
        %v867 = vld [vmem:[%s440 + $0xb8] sm:$0xff]
        %v868 = vld [vmem:[%s440 + $0xc0] sm:$0xff]
        %v869 = vld [vmem:[%s440 + $0xc8] sm:$0xff]
        %v870 = vld [vmem:[%s440 + $0xd0] sm:$0xff]
        %v871 = vld [vmem:[%s440 + $0xd8] sm:$0xff]
        %v872 = vld [vmem:[%s440 + $0xe0] sm:$0xff]
        %v873 = vld [vmem:[%s440 + $0xe8] sm:$0xff]
        %v874 = vld [vmem:[%s440 + $0xf0] sm:$0xff]
        %v875 = vld [vmem:[%s440 + $0xf8] sm:$0xff]
        %v908 = vunpack.c.l.b16 %v812
        %v909 = vunpack.c.h.b16 %v812
        %v910 = vunpack.c.l.b16 %v813
        %v911 = vunpack.c.h.b16 %v813
        %v912 = vunpack.c.l.b16 %v814
        %v913 = vunpack.c.h.b16 %v814
        %v914 = vunpack.c.l.b16 %v815
        %v915 = vunpack.c.h.b16 %v815
        %v916 = vunpack.c.l.b16 %v816
        %v917 = vunpack.c.h.b16 %v816
        %v918 = vunpack.c.l.b16 %v817
        %v919 = vunpack.c.h.b16 %v817
        %v920 = vunpack.c.l.b16 %v818
        %v921 = vunpack.c.h.b16 %v818
        %v922 = vunpack.c.l.b16 %v819
        %v923 = vunpack.c.h.b16 %v819
        %v924 = vunpack.c.l.b16 %v820
        %v925 = vunpack.c.h.b16 %v820
        %v926 = vunpack.c.l.b16 %v821
        %v927 = vunpack.c.h.b16 %v821
        %v928 = vunpack.c.l.b16 %v822
        %v929 = vunpack.c.h.b16 %v822
        %v930 = vunpack.c.l.b16 %v823
        %v931 = vunpack.c.h.b16 %v823
        %v932 = vunpack.c.l.b16 %v824
        %v933 = vunpack.c.h.b16 %v824
        %v934 = vunpack.c.l.b16 %v825
        %v935 = vunpack.c.h.b16 %v825
        %v936 = vunpack.c.l.b16 %v826
        %v937 = vunpack.c.h.b16 %v826
        %v938 = vunpack.c.l.b16 %v827
        %v939 = vunpack.c.h.b16 %v827
        %v940 = vunpack.c.l.b16 %v828
        %v941 = vunpack.c.h.b16 %v828
        %v942 = vunpack.c.l.b16 %v829
        %v943 = vunpack.c.h.b16 %v829
        %v944 = vunpack.c.l.b16 %v830
        %v945 = vunpack.c.h.b16 %v830
        %v946 = vunpack.c.l.b16 %v831
        %v947 = vunpack.c.h.b16 %v831
        %v948 = vunpack.c.l.b16 %v832
        %v949 = vunpack.c.h.b16 %v832
        %v950 = vunpack.c.l.b16 %v833
        %v951 = vunpack.c.h.b16 %v833
        %v952 = vunpack.c.l.b16 %v834
        %v953 = vunpack.c.h.b16 %v834
        %v954 = vunpack.c.l.b16 %v835
        %v955 = vunpack.c.h.b16 %v835
        %v956 = vunpack.c.l.b16 %v836
        %v957 = vunpack.c.h.b16 %v836
        %v958 = vunpack.c.l.b16 %v837
        %v959 = vunpack.c.h.b16 %v837
        %v960 = vunpack.c.l.b16 %v838
        %v961 = vunpack.c.h.b16 %v838
        %v962 = vunpack.c.l.b16 %v839
        %v963 = vunpack.c.h.b16 %v839
        %v964 = vunpack.c.l.b16 %v840
        %v965 = vunpack.c.h.b16 %v840
        %v966 = vunpack.c.l.b16 %v841
        %v967 = vunpack.c.h.b16 %v841
        %v968 = vunpack.c.l.b16 %v842
        %v969 = vunpack.c.h.b16 %v842
        %v970 = vunpack.c.l.b16 %v843
        %v971 = vunpack.c.h.b16 %v843
        %v972 = vpack.c.b16 %v910, %v908
        %v973 = vpack.c.b16 %v911, %v909
        %v974 = vpack.c.b16 %v914, %v912
        %v975 = vpack.c.b16 %v915, %v913
        %v976 = vpack.c.b16 %v918, %v916
        %v977 = vpack.c.b16 %v919, %v917
        %v978 = vpack.c.b16 %v922, %v920
        %v979 = vpack.c.b16 %v923, %v921
        %v980 = vpack.c.b16 %v926, %v924
        %v981 = vpack.c.b16 %v927, %v925
        %v982 = vpack.c.b16 %v930, %v928
        %v983 = vpack.c.b16 %v931, %v929
        %v984 = vpack.c.b16 %v934, %v932
        %v985 = vpack.c.b16 %v935, %v933
        %v986 = vpack.c.b16 %v938, %v936
        %v987 = vpack.c.b16 %v939, %v937
        %v988 = vpack.c.b16 %v942, %v940
        %v989 = vpack.c.b16 %v943, %v941
        %v990 = vpack.c.b16 %v946, %v944
        %v991 = vpack.c.b16 %v947, %v945
        %v992 = vpack.c.b16 %v950, %v948
        %v993 = vpack.c.b16 %v951, %v949
        %v994 = vpack.c.b16 %v954, %v952
        %v995 = vpack.c.b16 %v955, %v953
        %v996 = vpack.c.b16 %v958, %v956
        %v997 = vpack.c.b16 %v959, %v957
        %v998 = vpack.c.b16 %v962, %v960
        %v999 = vpack.c.b16 %v963, %v961
        %v1000 = vpack.c.b16 %v966, %v964
        %v1001 = vpack.c.b16 %v967, %v965
        %v1002 = vpack.c.b16 %v970, %v968
        %v1003 = vpack.c.b16 %v971, %v969
        %v1068 = vunpack.c.l.b16 %v844
        %v1069 = vunpack.c.h.b16 %v844
        %v1070 = vunpack.c.l.b16 %v845
        %v1071 = vunpack.c.h.b16 %v845
        %v1072 = vunpack.c.l.b16 %v846
        %v1073 = vunpack.c.h.b16 %v846
        %v1074 = vunpack.c.l.b16 %v847
        %v1075 = vunpack.c.h.b16 %v847
        %v1076 = vunpack.c.l.b16 %v848
        %v1077 = vunpack.c.h.b16 %v848
        %v1078 = vunpack.c.l.b16 %v849
        %v1079 = vunpack.c.h.b16 %v849
        %v1080 = vunpack.c.l.b16 %v850
        %v1081 = vunpack.c.h.b16 %v850
        %v1082 = vunpack.c.l.b16 %v851
        %v1083 = vunpack.c.h.b16 %v851
        %v1084 = vunpack.c.l.b16 %v852
        %v1085 = vunpack.c.h.b16 %v852
        %v1086 = vunpack.c.l.b16 %v853
        %v1087 = vunpack.c.h.b16 %v853
        %v1088 = vunpack.c.l.b16 %v854
        %v1089 = vunpack.c.h.b16 %v854
        %v1090 = vunpack.c.l.b16 %v855
        %v1091 = vunpack.c.h.b16 %v855
        %v1092 = vunpack.c.l.b16 %v856
        %v1093 = vunpack.c.h.b16 %v856
        %v1094 = vunpack.c.l.b16 %v857
        %v1095 = vunpack.c.h.b16 %v857
        %v1096 = vunpack.c.l.b16 %v858
        %v1097 = vunpack.c.h.b16 %v858
        %v1098 = vunpack.c.l.b16 %v859
        %v1099 = vunpack.c.h.b16 %v859
        %v1100 = vunpack.c.l.b16 %v860
        %v1101 = vunpack.c.h.b16 %v860
        %v1102 = vunpack.c.l.b16 %v861
        %v1103 = vunpack.c.h.b16 %v861
        %v1104 = vunpack.c.l.b16 %v862
        %v1105 = vunpack.c.h.b16 %v862
        %v1106 = vunpack.c.l.b16 %v863
        %v1107 = vunpack.c.h.b16 %v863
        %v1108 = vunpack.c.l.b16 %v864
        %v1109 = vunpack.c.h.b16 %v864
        %v1110 = vunpack.c.l.b16 %v865
        %v1111 = vunpack.c.h.b16 %v865
        %v1112 = vunpack.c.l.b16 %v866
        %v1113 = vunpack.c.h.b16 %v866
        %v1114 = vunpack.c.l.b16 %v867
        %v1115 = vunpack.c.h.b16 %v867
        %v1116 = vunpack.c.l.b16 %v868
        %v1117 = vunpack.c.h.b16 %v868
        %v1118 = vunpack.c.l.b16 %v869
        %v1119 = vunpack.c.h.b16 %v869
        %v1120 = vunpack.c.l.b16 %v870
        %v1121 = vunpack.c.h.b16 %v870
        %v1122 = vunpack.c.l.b16 %v871
        %v1123 = vunpack.c.h.b16 %v871
        %v1124 = vunpack.c.l.b16 %v872
        %v1125 = vunpack.c.h.b16 %v872
        %v1126 = vunpack.c.l.b16 %v873
        %v1127 = vunpack.c.h.b16 %v873
        %v1128 = vunpack.c.l.b16 %v874
        %v1129 = vunpack.c.h.b16 %v874
        %v1130 = vunpack.c.l.b16 %v875
        %v1131 = vunpack.c.h.b16 %v875
        %v1132 = vpack.c.b16 %v1070, %v1068
        %v1133 = vpack.c.b16 %v1071, %v1069
        %v1134 = vpack.c.b16 %v1074, %v1072
        %v1135 = vpack.c.b16 %v1075, %v1073
        %v1136 = vpack.c.b16 %v1078, %v1076
        %v1137 = vpack.c.b16 %v1079, %v1077
        %v1138 = vpack.c.b16 %v1082, %v1080
        %v1139 = vpack.c.b16 %v1083, %v1081
        %v1140 = vpack.c.b16 %v1086, %v1084
        %v1141 = vpack.c.b16 %v1087, %v1085
        %v1142 = vpack.c.b16 %v1090, %v1088
        %v1143 = vpack.c.b16 %v1091, %v1089
        %v1144 = vpack.c.b16 %v1094, %v1092
        %v1145 = vpack.c.b16 %v1095, %v1093
        %v1146 = vpack.c.b16 %v1098, %v1096
        %v1147 = vpack.c.b16 %v1099, %v1097
        %v1148 = vpack.c.b16 %v1102, %v1100
        %v1149 = vpack.c.b16 %v1103, %v1101
        %v1150 = vpack.c.b16 %v1106, %v1104
        %v1151 = vpack.c.b16 %v1107, %v1105
        %v1152 = vpack.c.b16 %v1110, %v1108
        %v1153 = vpack.c.b16 %v1111, %v1109
        %v1154 = vpack.c.b16 %v1114, %v1112
        %v1155 = vpack.c.b16 %v1115, %v1113
        %v1156 = vpack.c.b16 %v1118, %v1116
        %v1157 = vpack.c.b16 %v1119, %v1117
        %v1158 = vpack.c.b16 %v1122, %v1120
        %v1159 = vpack.c.b16 %v1123, %v1121
        %v1160 = vpack.c.b16 %v1126, %v1124
        %v1161 = vpack.c.b16 %v1127, %v1125
        %v1162 = vpack.c.b16 %v1130, %v1128
        %v1163 = vpack.c.b16 %v1131, %v1129
        %1196 = vmatprep.subr.bf16.mxu0 %v1147
        %1197 = vmatpush1.bf16.msra.mxu0 %v1146
        %1198 = vmatprep.subr.bf16.mxu0 %v1145
        %1199 = vmatpush1.bf16.msra.mxu0 %v1144
        %1200 = vmatprep.subr.bf16.mxu0 %v1143
        %1201 = vmatpush1.bf16.msra.mxu0 %v1142
        %1202 = vmatprep.subr.bf16.mxu0 %v1141
        %1203 = vmatpush1.bf16.msra.mxu0 %v1140
        %1204 = vmatprep.subr.bf16.mxu0 %v1139
        %1205 = vmatpush1.bf16.msra.mxu0 %v1138
        %1206 = vmatprep.subr.bf16.mxu0 %v1137
        %1207 = vmatpush1.bf16.msra.mxu0 %v1136
        %1208 = vmatprep.subr.bf16.mxu0 %v1135
        %1209 = vmatpush1.bf16.msra.mxu0 %v1134
        %1210 = vmatprep.subr.bf16.mxu0 %v1133
        %1211 = vmatpush1.bf16.msra.mxu0 %v1132
        %1212 = vmatprep.subr.bf16.mxu0 %v1163
        %1213 = vmatpush2.bf16.msra.mxu0 %v1162
        %1214 = vmatprep.subr.bf16.mxu0 %v1161
        %1215 = vmatpush2.bf16.msra.mxu0 %v1160
        %1216 = vmatprep.subr.bf16.mxu0 %v1159
        %1217 = vmatpush2.bf16.msra.mxu0 %v1158
        %1218 = vmatprep.subr.bf16.mxu0 %v1157
        %1219 = vmatpush2.bf16.msra.mxu0 %v1156
        %1220 = vmatprep.subr.bf16.mxu0 %v1155
        %1221 = vmatpush2.bf16.msra.mxu0 %v1154
        %1222 = vmatprep.subr.bf16.mxu0 %v1153
        %1223 = vmatpush2.bf16.msra.mxu0 %v1152
        %1224 = vmatprep.subr.bf16.mxu0 %v1151
        %1225 = vmatpush2.bf16.msra.mxu0 %v1150
        %1226 = vmatprep.subr.bf16.mxu0 %v1149
        %1227 = vmatpush2.bf16.msra.mxu0 %v1148
        %1228 = vmatprep.mubr.bf16.mxu0 %v973
        %1229 = vmatmul.mubr.bf16.gmra.mxu0 %v972
        %v1230 = vpop.f32.mrf.mxu0
        %v1231 = vadd.f32 0.0, %v1230
        %v1232 = vpop.f32.mrf.mxu0
        %v1233 = vadd.f32 0.0, %v1232
        %v1234 = vpop.f32.mrf.mxu0
        %v1235 = vadd.f32 0.0, %v1234
        %v1236 = vpop.f32.mrf.mxu0
        %v1237 = vadd.f32 0.0, %v1236
        %1238 = vmatprep.mubr.bf16.mxu0 %v975
        %1239 = vmatmul.mubr.bf16.gmra.mxu0 %v974
        %v1240 = vpop.f32.mrf.mxu0
        %v1241 = vadd.f32 0.0, %v1240
        %v1242 = vpop.f32.mrf.mxu0
        %v1243 = vadd.f32 0.0, %v1242
        %v1244 = vpop.f32.mrf.mxu0
        %v1245 = vadd.f32 0.0, %v1244
        %v1246 = vpop.f32.mrf.mxu0
        %v1247 = vadd.f32 0.0, %v1246
        %1248 = vmatprep.mubr.bf16.mxu0 %v977
        %1249 = vmatmul.mubr.bf16.gmra.mxu0 %v976
        %v1250 = vpop.f32.mrf.mxu0
        %v1251 = vadd.f32 0.0, %v1250
        %v1252 = vpop.f32.mrf.mxu0
        %v1253 = vadd.f32 0.0, %v1252
        %v1254 = vpop.f32.mrf.mxu0
        %v1255 = vadd.f32 0.0, %v1254
        %v1256 = vpop.f32.mrf.mxu0
        %v1257 = vadd.f32 0.0, %v1256
        %1258 = vmatprep.mubr.bf16.mxu0 %v979
        %1259 = vmatmul.mubr.bf16.gmra.mxu0 %v978
        %v1260 = vpop.f32.mrf.mxu0
        %v1261 = vadd.f32 0.0, %v1260
        %v1262 = vpop.f32.mrf.mxu0
        %v1263 = vadd.f32 0.0, %v1262
        %v1264 = vpop.f32.mrf.mxu0
        %v1265 = vadd.f32 0.0, %v1264
        %v1266 = vpop.f32.mrf.mxu0
        %v1267 = vadd.f32 0.0, %v1266
        %1268 = vmatprep.mubr.bf16.mxu0 %v981
        %1269 = vmatmul.mubr.bf16.gmra.mxu0 %v980
        %v1270 = vpop.f32.mrf.mxu0
        %v1271 = vadd.f32 0.0, %v1270
        %v1272 = vpop.f32.mrf.mxu0
        %v1273 = vadd.f32 0.0, %v1272
        %v1274 = vpop.f32.mrf.mxu0
        %v1275 = vadd.f32 0.0, %v1274
        %v1276 = vpop.f32.mrf.mxu0
        %v1277 = vadd.f32 0.0, %v1276
        %1278 = vmatprep.mubr.bf16.mxu0 %v983
        %1279 = vmatmul.mubr.bf16.gmra.mxu0 %v982
        %v1280 = vpop.f32.mrf.mxu0
        %v1281 = vadd.f32 0.0, %v1280
        %v1282 = vpop.f32.mrf.mxu0
        %v1283 = vadd.f32 0.0, %v1282
        %v1284 = vpop.f32.mrf.mxu0
        %v1285 = vadd.f32 0.0, %v1284
        %v1286 = vpop.f32.mrf.mxu0
        %v1287 = vadd.f32 0.0, %v1286
        %1288 = vmatprep.mubr.bf16.mxu0 %v985
        %1289 = vmatmul.mubr.bf16.gmra.mxu0 %v984
        %v1290 = vpop.f32.mrf.mxu0
        %v1291 = vadd.f32 0.0, %v1290
        %v1292 = vpop.f32.mrf.mxu0
        %v1293 = vadd.f32 0.0, %v1292
        %v1294 = vpop.f32.mrf.mxu0
        %v1295 = vadd.f32 0.0, %v1294
        %v1296 = vpop.f32.mrf.mxu0
        %v1297 = vadd.f32 0.0, %v1296
        %1298 = vmatprep.mubr.bf16.mxu0 %v987
        %1299 = vmatmul.mubr.bf16.gmra.mxu0 %v986
        %v1300 = vpop.f32.mrf.mxu0
        %v1301 = vadd.f32 0.0, %v1300
        %v1302 = vpop.f32.mrf.mxu0
        %v1303 = vadd.f32 0.0, %v1302
        %v1304 = vpop.f32.mrf.mxu0
        %v1305 = vadd.f32 0.0, %v1304
        %v1306 = vpop.f32.mrf.mxu0
        %v1307 = vadd.f32 0.0, %v1306
        %1308 = vmatprep.mubr.bf16.mxu0 %v989
        %1309 = vmatmul.mubr.bf16.gmra.mxu0 %v988
        %v1310 = vpop.f32.mrf.mxu0
        %v1311 = vadd.f32 0.0, %v1310
        %v1312 = vpop.f32.mrf.mxu0
        %v1313 = vadd.f32 0.0, %v1312
        %v1314 = vpop.f32.mrf.mxu0
        %v1315 = vadd.f32 0.0, %v1314
        %v1316 = vpop.f32.mrf.mxu0
        %v1317 = vadd.f32 0.0, %v1316
        %1318 = vmatprep.mubr.bf16.mxu0 %v991
        %1319 = vmatmul.mubr.bf16.gmra.mxu0 %v990
        %v1320 = vpop.f32.mrf.mxu0
        %v1321 = vadd.f32 0.0, %v1320
        %v1322 = vpop.f32.mrf.mxu0
        %v1323 = vadd.f32 0.0, %v1322
        %v1324 = vpop.f32.mrf.mxu0
        %v1325 = vadd.f32 0.0, %v1324
        %v1326 = vpop.f32.mrf.mxu0
        %v1327 = vadd.f32 0.0, %v1326
        %1328 = vmatprep.mubr.bf16.mxu0 %v993
        %1329 = vmatmul.mubr.bf16.gmra.mxu0 %v992
        %v1330 = vpop.f32.mrf.mxu0
        %v1331 = vadd.f32 0.0, %v1330
        %v1332 = vpop.f32.mrf.mxu0
        %v1333 = vadd.f32 0.0, %v1332
        %v1334 = vpop.f32.mrf.mxu0
        %v1335 = vadd.f32 0.0, %v1334
        %v1336 = vpop.f32.mrf.mxu0
        %v1337 = vadd.f32 0.0, %v1336
        %1338 = vmatprep.mubr.bf16.mxu0 %v995
        %1339 = vmatmul.mubr.bf16.gmra.mxu0 %v994
        %v1340 = vpop.f32.mrf.mxu0
        %v1341 = vadd.f32 0.0, %v1340
        %v1342 = vpop.f32.mrf.mxu0
        %v1343 = vadd.f32 0.0, %v1342
        %v1344 = vpop.f32.mrf.mxu0
        %v1345 = vadd.f32 0.0, %v1344
        %v1346 = vpop.f32.mrf.mxu0
        %v1347 = vadd.f32 0.0, %v1346
        %1348 = vmatprep.mubr.bf16.mxu0 %v997
        %1349 = vmatmul.mubr.bf16.gmra.mxu0 %v996
        %v1350 = vpop.f32.mrf.mxu0
        %v1351 = vadd.f32 0.0, %v1350
        %v1352 = vpop.f32.mrf.mxu0
        %v1353 = vadd.f32 0.0, %v1352
        %v1354 = vpop.f32.mrf.mxu0
        %v1355 = vadd.f32 0.0, %v1354
        %v1356 = vpop.f32.mrf.mxu0
        %v1357 = vadd.f32 0.0, %v1356
        %1358 = vmatprep.mubr.bf16.mxu0 %v999
        %1359 = vmatmul.mubr.bf16.gmra.mxu0 %v998
        %v1360 = vpop.f32.mrf.mxu0
        %v1361 = vadd.f32 0.0, %v1360
        %v1362 = vpop.f32.mrf.mxu0
        %v1363 = vadd.f32 0.0, %v1362
        %v1364 = vpop.f32.mrf.mxu0
        %v1365 = vadd.f32 0.0, %v1364
        %v1366 = vpop.f32.mrf.mxu0
        %v1367 = vadd.f32 0.0, %v1366
        %1368 = vmatprep.mubr.bf16.mxu0 %v1001
        %1369 = vmatmul.mubr.bf16.gmra.mxu0 %v1000
        %v1370 = vpop.f32.mrf.mxu0
        %v1371 = vadd.f32 0.0, %v1370
        %v1372 = vpop.f32.mrf.mxu0
        %v1373 = vadd.f32 0.0, %v1372
        %v1374 = vpop.f32.mrf.mxu0
        %v1375 = vadd.f32 0.0, %v1374
        %v1376 = vpop.f32.mrf.mxu0
        %v1377 = vadd.f32 0.0, %v1376
        %1378 = vmatprep.mubr.bf16.mxu0 %v1003
        %1379 = vmatmul.mubr.bf16.gmra.mxu0 %v1002
        %v1380 = vpop.f32.mrf.mxu0
        %v1381 = vadd.f32 0.0, %v1380
        %v1382 = vpop.f32.mrf.mxu0
        %v1383 = vadd.f32 0.0, %v1382
        %v1384 = vpop.f32.mrf.mxu0
        %v1385 = vadd.f32 0.0, %v1384
        %v1386 = vpop.f32.mrf.mxu0
        %v1387 = vadd.f32 0.0, %v1386
        %1388 = vdwg.mxu0
        %v1389 = vadd.f32 %v748, %v1231
        %v1390 = vadd.f32 %v749, %v1233
        %v1391 = vadd.f32 %v750, %v1235
        %v1392 = vadd.f32 %v751, %v1237
        %v1393 = vadd.f32 %v752, %v1241
        %v1394 = vadd.f32 %v753, %v1243
        %v1395 = vadd.f32 %v754, %v1245
        %v1396 = vadd.f32 %v755, %v1247
        %v1397 = vadd.f32 %v756, %v1251
        %v1398 = vadd.f32 %v757, %v1253
        %v1399 = vadd.f32 %v758, %v1255
        %v1400 = vadd.f32 %v759, %v1257
        %v1401 = vadd.f32 %v760, %v1261
        %v1402 = vadd.f32 %v761, %v1263
        %v1403 = vadd.f32 %v762, %v1265
        %v1404 = vadd.f32 %v763, %v1267
        %v1405 = vadd.f32 %v764, %v1271
        %v1406 = vadd.f32 %v765, %v1273
        %v1407 = vadd.f32 %v766, %v1275
        %v1408 = vadd.f32 %v767, %v1277
        %v1409 = vadd.f32 %v768, %v1281
        %v1410 = vadd.f32 %v769, %v1283
        %v1411 = vadd.f32 %v770, %v1285
        %v1412 = vadd.f32 %v771, %v1287
        %v1413 = vadd.f32 %v772, %v1291
        %v1414 = vadd.f32 %v773, %v1293
        %v1415 = vadd.f32 %v774, %v1295
        %v1416 = vadd.f32 %v775, %v1297
        %v1417 = vadd.f32 %v776, %v1301
        %v1418 = vadd.f32 %v777, %v1303
        %v1419 = vadd.f32 %v778, %v1305
        %v1420 = vadd.f32 %v779, %v1307
        %v1421 = vadd.f32 %v780, %v1311
        %v1422 = vadd.f32 %v781, %v1313
        %v1423 = vadd.f32 %v782, %v1315
        %v1424 = vadd.f32 %v783, %v1317
        %v1425 = vadd.f32 %v784, %v1321
        %v1426 = vadd.f32 %v785, %v1323
        %v1427 = vadd.f32 %v786, %v1325
        %v1428 = vadd.f32 %v787, %v1327
        %v1429 = vadd.f32 %v788, %v1331
        %v1430 = vadd.f32 %v789, %v1333
        %v1431 = vadd.f32 %v790, %v1335
        %v1432 = vadd.f32 %v791, %v1337
        %v1433 = vadd.f32 %v792, %v1341
        %v1434 = vadd.f32 %v793, %v1343
        %v1435 = vadd.f32 %v794, %v1345
        %v1436 = vadd.f32 %v795, %v1347
        %v1437 = vadd.f32 %v796, %v1351
        %v1438 = vadd.f32 %v797, %v1353
        %v1439 = vadd.f32 %v798, %v1355
        %v1440 = vadd.f32 %v799, %v1357
        %v1441 = vadd.f32 %v800, %v1361
        %v1442 = vadd.f32 %v801, %v1363
        %v1443 = vadd.f32 %v802, %v1365
        %v1444 = vadd.f32 %v803, %v1367
        %v1445 = vadd.f32 %v804, %v1371
        %v1446 = vadd.f32 %v805, %v1373
        %v1447 = vadd.f32 %v806, %v1375
        %v1448 = vadd.f32 %v807, %v1377
        %v1449 = vadd.f32 %v808, %v1381
        %v1450 = vadd.f32 %v809, %v1383
        %v1451 = vadd.f32 %v810, %v1385
        %v1452 = vadd.f32 %v811, %v1387
        %1453 = vst [vmem:[#allocation2] sm:$0xff] %v1389
        %1454 = vst [vmem:[#allocation2 + $0x8] sm:$0xff] %v1390
        %1455 = vst [vmem:[#allocation2 + $0x20] sm:$0xff] %v1391
        %1456 = vst [vmem:[#allocation2 + $0x28] sm:$0xff] %v1392
        %1457 = vst [vmem:[#allocation2 + $0x40] sm:$0xff] %v1393
        %1458 = vst [vmem:[#allocation2 + $0x48] sm:$0xff] %v1394
        %1459 = vst [vmem:[#allocation2 + $0x60] sm:$0xff] %v1395
        %1460 = vst [vmem:[#allocation2 + $0x68] sm:$0xff] %v1396
        %1461 = vst [vmem:[#allocation2 + $0x80] sm:$0xff] %v1397
        %1462 = vst [vmem:[#allocation2 + $0x88] sm:$0xff] %v1398
        %1463 = vst [vmem:[#allocation2 + $0xa0] sm:$0xff] %v1399
        %1464 = vst [vmem:[#allocation2 + $0xa8] sm:$0xff] %v1400
        %1465 = vst [vmem:[#allocation2 + $0xc0] sm:$0xff] %v1401
        %1466 = vst [vmem:[#allocation2 + $0xc8] sm:$0xff] %v1402
        %1467 = vst [vmem:[#allocation2 + $0xe0] sm:$0xff] %v1403
        %1468 = vst [vmem:[#allocation2 + $0xe8] sm:$0xff] %v1404
        %1469 = vst [vmem:[#allocation2 + $0x100] sm:$0xff] %v1405
        %1470 = vst [vmem:[#allocation2 + $0x108] sm:$0xff] %v1406
        %1471 = vst [vmem:[#allocation2 + $0x120] sm:$0xff] %v1407
        %1472 = vst [vmem:[#allocation2 + $0x128] sm:$0xff] %v1408
        %1473 = vst [vmem:[#allocation2 + $0x140] sm:$0xff] %v1409
        %1474 = vst [vmem:[#allocation2 + $0x148] sm:$0xff] %v1410
        %1475 = vst [vmem:[#allocation2 + $0x160] sm:$0xff] %v1411
        %1476 = vst [vmem:[#allocation2 + $0x168] sm:$0xff] %v1412
        %1477 = vst [vmem:[#allocation2 + $0x180] sm:$0xff] %v1413
        %1478 = vst [vmem:[#allocation2 + $0x188] sm:$0xff] %v1414
        %1479 = vst [vmem:[#allocation2 + $0x1a0] sm:$0xff] %v1415
        %1480 = vst [vmem:[#allocation2 + $0x1a8] sm:$0xff] %v1416
        %1481 = vst [vmem:[#allocation2 + $0x1c0] sm:$0xff] %v1417
        %1482 = vst [vmem:[#allocation2 + $0x1c8] sm:$0xff] %v1418
        %1483 = vst [vmem:[#allocation2 + $0x1e0] sm:$0xff] %v1419
        %1484 = vst [vmem:[#allocation2 + $0x1e8] sm:$0xff] %v1420
        %1485 = vst [vmem:[#allocation2 + $0x200] sm:$0xff] %v1421
        %1486 = vst [vmem:[#allocation2 + $0x208] sm:$0xff] %v1422
        %1487 = vst [vmem:[#allocation2 + $0x220] sm:$0xff] %v1423
        %1488 = vst [vmem:[#allocation2 + $0x228] sm:$0xff] %v1424
        %1489 = vst [vmem:[#allocation2 + $0x240] sm:$0xff] %v1425
        %1490 = vst [vmem:[#allocation2 + $0x248] sm:$0xff] %v1426
        %1491 = vst [vmem:[#allocation2 + $0x260] sm:$0xff] %v1427
        %1492 = vst [vmem:[#allocation2 + $0x268] sm:$0xff] %v1428
        %1493 = vst [vmem:[#allocation2 + $0x280] sm:$0xff] %v1429
        %1494 = vst [vmem:[#allocation2 + $0x288] sm:$0xff] %v1430
        %1495 = vst [vmem:[#allocation2 + $0x2a0] sm:$0xff] %v1431
        %1496 = vst [vmem:[#allocation2 + $0x2a8] sm:$0xff] %v1432
        %1497 = vst [vmem:[#allocation2 + $0x2c0] sm:$0xff] %v1433
        %1498 = vst [vmem:[#allocation2 + $0x2c8] sm:$0xff] %v1434
        %1499 = vst [vmem:[#allocation2 + $0x2e0] sm:$0xff] %v1435
        %1500 = vst [vmem:[#allocation2 + $0x2e8] sm:$0xff] %v1436
        %1501 = vst [vmem:[#allocation2 + $0x300] sm:$0xff] %v1437
        %1502 = vst [vmem:[#allocation2 + $0x308] sm:$0xff] %v1438
        %1503 = vst [vmem:[#allocation2 + $0x320] sm:$0xff] %v1439
        %1504 = vst [vmem:[#allocation2 + $0x328] sm:$0xff] %v1440
        %1505 = vst [vmem:[#allocation2 + $0x340] sm:$0xff] %v1441
        %1506 = vst [vmem:[#allocation2 + $0x348] sm:$0xff] %v1442
        %1507 = vst [vmem:[#allocation2 + $0x360] sm:$0xff] %v1443
        %1508 = vst [vmem:[#allocation2 + $0x368] sm:$0xff] %v1444
        %1509 = vst [vmem:[#allocation2 + $0x380] sm:$0xff] %v1445
        %1510 = vst [vmem:[#allocation2 + $0x388] sm:$0xff] %v1446
        %1511 = vst [vmem:[#allocation2 + $0x3a0] sm:$0xff] %v1447
        %1512 = vst [vmem:[#allocation2 + $0x3a8] sm:$0xff] %v1448
        %1513 = vst [vmem:[#allocation2 + $0x3c0] sm:$0xff] %v1449
        %1514 = vst [vmem:[#allocation2 + $0x3c8] sm:$0xff] %v1450
        %1515 = vst [vmem:[#allocation2 + $0x3e0] sm:$0xff] %v1451
        %1516 = vst [vmem:[#allocation2 + $0x3e8] sm:$0xff] %v1452
        %p1517 = scmp.eq.s32.totalorder %s21, 1
        // Predicated region
        $region83: #{node_classifier_forward.3} parent=73 // pred_check
          %p1518 = pneg %p1517
        $region84: #{node_classifier_forward.3} parent=73 // pred_check_branch
          %1520 = sbr.rel (%p1518) target = $region86
        $region85: #{node_classifier_forward.3} parent=73 // pred_region
          %v1521 = vld [vmem:[#allocation2] sm:$0xff]
          %v1522 = vld [vmem:[#allocation2 + $0x8] sm:$0xff]
          %v1523 = vld [vmem:[#allocation2 + $0x10] sm:$0xff]
          %v1524 = vld [vmem:[#allocation2 + $0x18] sm:$0xff]
          %v1525 = vld [vmem:[#allocation2 + $0x20] sm:$0xff]
          %v1526 = vld [vmem:[#allocation2 + $0x28] sm:$0xff]
          %v1527 = vld [vmem:[#allocation2 + $0x30] sm:$0xff]
          %v1528 = vld [vmem:[#allocation2 + $0x38] sm:$0xff]
          %v1529 = vld [vmem:[#allocation2 + $0x40] sm:$0xff]
          %v1530 = vld [vmem:[#allocation2 + $0x48] sm:$0xff]
          %v1531 = vld [vmem:[#allocation2 + $0x50] sm:$0xff]
          %v1532 = vld [vmem:[#allocation2 + $0x58] sm:$0xff]
          %v1533 = vld [vmem:[#allocation2 + $0x60] sm:$0xff]
          %v1534 = vld [vmem:[#allocation2 + $0x68] sm:$0xff]
          %v1535 = vld [vmem:[#allocation2 + $0x70] sm:$0xff]
          %v1536 = vld [vmem:[#allocation2 + $0x78] sm:$0xff]
          %v1537 = vld [vmem:[#allocation2 + $0x80] sm:$0xff]
          %v1538 = vld [vmem:[#allocation2 + $0x88] sm:$0xff]
          %v1539 = vld [vmem:[#allocation2 + $0x90] sm:$0xff]
          %v1540 = vld [vmem:[#allocation2 + $0x98] sm:$0xff]
          %v1541 = vld [vmem:[#allocation2 + $0xa0] sm:$0xff]
          %v1542 = vld [vmem:[#allocation2 + $0xa8] sm:$0xff]
          %v1543 = vld [vmem:[#allocation2 + $0xb0] sm:$0xff]
          %v1544 = vld [vmem:[#allocation2 + $0xb8] sm:$0xff]
          %v1545 = vld [vmem:[#allocation2 + $0xc0] sm:$0xff]
          %v1546 = vld [vmem:[#allocation2 + $0xc8] sm:$0xff]
          %v1547 = vld [vmem:[#allocation2 + $0xd0] sm:$0xff]
          %v1548 = vld [vmem:[#allocation2 + $0xd8] sm:$0xff]
          %v1549 = vld [vmem:[#allocation2 + $0xe0] sm:$0xff]
          %v1550 = vld [vmem:[#allocation2 + $0xe8] sm:$0xff]
          %v1551 = vld [vmem:[#allocation2 + $0xf0] sm:$0xff]
          %v1552 = vld [vmem:[#allocation2 + $0xf8] sm:$0xff]
          %v1553 = vld [vmem:[#allocation2 + $0x100] sm:$0xff]
          %v1554 = vld [vmem:[#allocation2 + $0x108] sm:$0xff]
          %v1555 = vld [vmem:[#allocation2 + $0x110] sm:$0xff]
          %v1556 = vld [vmem:[#allocation2 + $0x118] sm:$0xff]
          %v1557 = vld [vmem:[#allocation2 + $0x120] sm:$0xff]
          %v1558 = vld [vmem:[#allocation2 + $0x128] sm:$0xff]
          %v1559 = vld [vmem:[#allocation2 + $0x130] sm:$0xff]
          %v1560 = vld [vmem:[#allocation2 + $0x138] sm:$0xff]
          %v1561 = vld [vmem:[#allocation2 + $0x140] sm:$0xff]
          %v1562 = vld [vmem:[#allocation2 + $0x148] sm:$0xff]
          %v1563 = vld [vmem:[#allocation2 + $0x150] sm:$0xff]
          %v1564 = vld [vmem:[#allocation2 + $0x158] sm:$0xff]
          %v1565 = vld [vmem:[#allocation2 + $0x160] sm:$0xff]
          %v1566 = vld [vmem:[#allocation2 + $0x168] sm:$0xff]
          %v1567 = vld [vmem:[#allocation2 + $0x170] sm:$0xff]
          %v1568 = vld [vmem:[#allocation2 + $0x178] sm:$0xff]
          %v1569 = vld [vmem:[#allocation2 + $0x180] sm:$0xff]
          %v1570 = vld [vmem:[#allocation2 + $0x188] sm:$0xff]
          %v1571 = vld [vmem:[#allocation2 + $0x190] sm:$0xff]
          %v1572 = vld [vmem:[#allocation2 + $0x198] sm:$0xff]
          %v1573 = vld [vmem:[#allocation2 + $0x1a0] sm:$0xff]
          %v1574 = vld [vmem:[#allocation2 + $0x1a8] sm:$0xff]
          %v1575 = vld [vmem:[#allocation2 + $0x1b0] sm:$0xff]
          %v1576 = vld [vmem:[#allocation2 + $0x1b8] sm:$0xff]
          %v1577 = vld [vmem:[#allocation2 + $0x1c0] sm:$0xff]
          %v1578 = vld [vmem:[#allocation2 + $0x1c8] sm:$0xff]
          %v1579 = vld [vmem:[#allocation2 + $0x1d0] sm:$0xff]
          %v1580 = vld [vmem:[#allocation2 + $0x1d8] sm:$0xff]
          %v1581 = vld [vmem:[#allocation2 + $0x1e0] sm:$0xff]
          %v1582 = vld [vmem:[#allocation2 + $0x1e8] sm:$0xff]
          %v1583 = vld [vmem:[#allocation2 + $0x1f0] sm:$0xff]
          %v1584 = vld [vmem:[#allocation2 + $0x1f8] sm:$0xff]
          %v1585 = vld [vmem:[#allocation2 + $0x200] sm:$0xff]
          %v1586 = vld [vmem:[#allocation2 + $0x208] sm:$0xff]
          %v1587 = vld [vmem:[#allocation2 + $0x210] sm:$0xff]
          %v1588 = vld [vmem:[#allocation2 + $0x218] sm:$0xff]
          %v1589 = vld [vmem:[#allocation2 + $0x220] sm:$0xff]
          %v1590 = vld [vmem:[#allocation2 + $0x228] sm:$0xff]
          %v1591 = vld [vmem:[#allocation2 + $0x230] sm:$0xff]
          %v1592 = vld [vmem:[#allocation2 + $0x238] sm:$0xff]
          %v1593 = vld [vmem:[#allocation2 + $0x240] sm:$0xff]
          %v1594 = vld [vmem:[#allocation2 + $0x248] sm:$0xff]
          %v1595 = vld [vmem:[#allocation2 + $0x250] sm:$0xff]
          %v1596 = vld [vmem:[#allocation2 + $0x258] sm:$0xff]
          %v1597 = vld [vmem:[#allocation2 + $0x260] sm:$0xff]
          %v1598 = vld [vmem:[#allocation2 + $0x268] sm:$0xff]
          %v1599 = vld [vmem:[#allocation2 + $0x270] sm:$0xff]
          %v1600 = vld [vmem:[#allocation2 + $0x278] sm:$0xff]
          %v1601 = vld [vmem:[#allocation2 + $0x280] sm:$0xff]
          %v1602 = vld [vmem:[#allocation2 + $0x288] sm:$0xff]
          %v1603 = vld [vmem:[#allocation2 + $0x290] sm:$0xff]
          %v1604 = vld [vmem:[#allocation2 + $0x298] sm:$0xff]
          %v1605 = vld [vmem:[#allocation2 + $0x2a0] sm:$0xff]
          %v1606 = vld [vmem:[#allocation2 + $0x2a8] sm:$0xff]
          %v1607 = vld [vmem:[#allocation2 + $0x2b0] sm:$0xff]
          %v1608 = vld [vmem:[#allocation2 + $0x2b8] sm:$0xff]
          %v1609 = vld [vmem:[#allocation2 + $0x2c0] sm:$0xff]
          %v1610 = vld [vmem:[#allocation2 + $0x2c8] sm:$0xff]
          %v1611 = vld [vmem:[#allocation2 + $0x2d0] sm:$0xff]
          %v1612 = vld [vmem:[#allocation2 + $0x2d8] sm:$0xff]
          %v1613 = vld [vmem:[#allocation2 + $0x2e0] sm:$0xff]
          %v1614 = vld [vmem:[#allocation2 + $0x2e8] sm:$0xff]
          %v1615 = vld [vmem:[#allocation2 + $0x2f0] sm:$0xff]
          %v1616 = vld [vmem:[#allocation2 + $0x2f8] sm:$0xff]
          %v1617 = vld [vmem:[#allocation2 + $0x300] sm:$0xff]
          %v1618 = vld [vmem:[#allocation2 + $0x308] sm:$0xff]
          %v1619 = vld [vmem:[#allocation2 + $0x310] sm:$0xff]
          %v1620 = vld [vmem:[#allocation2 + $0x318] sm:$0xff]
          %v1621 = vld [vmem:[#allocation2 + $0x320] sm:$0xff]
          %v1622 = vld [vmem:[#allocation2 + $0x328] sm:$0xff]
          %v1623 = vld [vmem:[#allocation2 + $0x330] sm:$0xff]
          %v1624 = vld [vmem:[#allocation2 + $0x338] sm:$0xff]
          %v1625 = vld [vmem:[#allocation2 + $0x340] sm:$0xff]
          %v1626 = vld [vmem:[#allocation2 + $0x348] sm:$0xff]
          %v1627 = vld [vmem:[#allocation2 + $0x350] sm:$0xff]
          %v1628 = vld [vmem:[#allocation2 + $0x358] sm:$0xff]
          %v1629 = vld [vmem:[#allocation2 + $0x360] sm:$0xff]
          %v1630 = vld [vmem:[#allocation2 + $0x368] sm:$0xff]
          %v1631 = vld [vmem:[#allocation2 + $0x370] sm:$0xff]
          %v1632 = vld [vmem:[#allocation2 + $0x378] sm:$0xff]
          %v1633 = vld [vmem:[#allocation2 + $0x380] sm:$0xff]
          %v1634 = vld [vmem:[#allocation2 + $0x388] sm:$0xff]
          %v1635 = vld [vmem:[#allocation2 + $0x390] sm:$0xff]
          %v1636 = vld [vmem:[#allocation2 + $0x398] sm:$0xff]
          %v1637 = vld [vmem:[#allocation2 + $0x3a0] sm:$0xff]
          %v1638 = vld [vmem:[#allocation2 + $0x3a8] sm:$0xff]
          %v1639 = vld [vmem:[#allocation2 + $0x3b0] sm:$0xff]
          %v1640 = vld [vmem:[#allocation2 + $0x3b8] sm:$0xff]
          %v1641 = vld [vmem:[#allocation2 + $0x3c0] sm:$0xff]
          %v1642 = vld [vmem:[#allocation2 + $0x3c8] sm:$0xff]
          %v1643 = vld [vmem:[#allocation2 + $0x3d0] sm:$0xff]
          %v1644 = vld [vmem:[#allocation2 + $0x3d8] sm:$0xff]
          %v1645 = vld [vmem:[#allocation2 + $0x3e0] sm:$0xff]
          %v1646 = vld [vmem:[#allocation2 + $0x3e8] sm:$0xff]
          %v1647 = vld [vmem:[#allocation2 + $0x3f0] sm:$0xff]
          %v1648 = vld [vmem:[#allocation2 + $0x3f8] sm:$0xff]
          %v1649 = vpack.c.bf16 %v1525, %v1521
          %v1650 = vpack.c.bf16 %v1526, %v1522
          %v1651 = vpack.c.bf16 %v1527, %v1523
          %v1652 = vpack.c.bf16 %v1528, %v1524
          %v1653 = vpack.c.bf16 %v1533, %v1529
          %v1654 = vpack.c.bf16 %v1534, %v1530
          %v1655 = vpack.c.bf16 %v1535, %v1531
          %v1656 = vpack.c.bf16 %v1536, %v1532
          %v1657 = vpack.c.bf16 %v1541, %v1537
          %v1658 = vpack.c.bf16 %v1542, %v1538
          %v1659 = vpack.c.bf16 %v1543, %v1539
          %v1660 = vpack.c.bf16 %v1544, %v1540
          %v1661 = vpack.c.bf16 %v1549, %v1545
          %v1662 = vpack.c.bf16 %v1550, %v1546
          %v1663 = vpack.c.bf16 %v1551, %v1547
          %v1664 = vpack.c.bf16 %v1552, %v1548
          %v1665 = vpack.c.bf16 %v1557, %v1553
          %v1666 = vpack.c.bf16 %v1558, %v1554
          %v1667 = vpack.c.bf16 %v1559, %v1555
          %v1668 = vpack.c.bf16 %v1560, %v1556
          %v1669 = vpack.c.bf16 %v1565, %v1561
          %v1670 = vpack.c.bf16 %v1566, %v1562
          %v1671 = vpack.c.bf16 %v1567, %v1563
          %v1672 = vpack.c.bf16 %v1568, %v1564
          %v1673 = vpack.c.bf16 %v1573, %v1569
          %v1674 = vpack.c.bf16 %v1574, %v1570
          %v1675 = vpack.c.bf16 %v1575, %v1571
          %v1676 = vpack.c.bf16 %v1576, %v1572
          %v1677 = vpack.c.bf16 %v1581, %v1577
          %v1678 = vpack.c.bf16 %v1582, %v1578
          %v1679 = vpack.c.bf16 %v1583, %v1579
          %v1680 = vpack.c.bf16 %v1584, %v1580
          %v1681 = vpack.c.bf16 %v1589, %v1585
          %v1682 = vpack.c.bf16 %v1590, %v1586
          %v1683 = vpack.c.bf16 %v1591, %v1587
          %v1684 = vpack.c.bf16 %v1592, %v1588
          %v1685 = vpack.c.bf16 %v1597, %v1593
          %v1686 = vpack.c.bf16 %v1598, %v1594
          %v1687 = vpack.c.bf16 %v1599, %v1595
          %v1688 = vpack.c.bf16 %v1600, %v1596
          %v1689 = vpack.c.bf16 %v1605, %v1601
          %v1690 = vpack.c.bf16 %v1606, %v1602
          %v1691 = vpack.c.bf16 %v1607, %v1603
          %v1692 = vpack.c.bf16 %v1608, %v1604
          %v1693 = vpack.c.bf16 %v1613, %v1609
          %v1694 = vpack.c.bf16 %v1614, %v1610
          %v1695 = vpack.c.bf16 %v1615, %v1611
          %v1696 = vpack.c.bf16 %v1616, %v1612
          %v1697 = vpack.c.bf16 %v1621, %v1617
          %v1698 = vpack.c.bf16 %v1622, %v1618
          %v1699 = vpack.c.bf16 %v1623, %v1619
          %v1700 = vpack.c.bf16 %v1624, %v1620
          %v1701 = vpack.c.bf16 %v1629, %v1625
          %v1702 = vpack.c.bf16 %v1630, %v1626
          %v1703 = vpack.c.bf16 %v1631, %v1627
          %v1704 = vpack.c.bf16 %v1632, %v1628
          %v1705 = vpack.c.bf16 %v1637, %v1633
          %v1706 = vpack.c.bf16 %v1638, %v1634
          %v1707 = vpack.c.bf16 %v1639, %v1635
          %v1708 = vpack.c.bf16 %v1640, %v1636
          %v1709 = vpack.c.bf16 %v1645, %v1641
          %v1710 = vpack.c.bf16 %v1646, %v1642
          %v1711 = vpack.c.bf16 %v1647, %v1643
          %v1712 = vpack.c.bf16 %v1648, %v1644
          %v1713 = vld [vmem:[%s3] sm:$0xf]
          %v1714 = vld [vmem:[%s3 + $0x4] sm:$0xf]
          %v1715 = vld [vmem:[%s3 + $0x8] sm:$0xf]
          %v1716 = vld [vmem:[%s3 + $0xc] sm:$0xf]
          %v1717 = vld [vmem:[%s3 + $0x10] sm:$0xf]
          %v1718 = vld [vmem:[%s3 + $0x14] sm:$0xf]
          %v1719 = vld [vmem:[%s3 + $0x18] sm:$0xf]
          %v1720 = vld [vmem:[%s3 + $0x1c] sm:$0xf]
          %v1721 = vld [vmem:[%s3 + $0x20] sm:$0xf]
          %v1722 = vld [vmem:[%s3 + $0x24] sm:$0xf]
          %v1723 = vld [vmem:[%s3 + $0x28] sm:$0xf]
          %v1724 = vld [vmem:[%s3 + $0x2c] sm:$0xf]
          %v1725 = vld [vmem:[%s3 + $0x30] sm:$0xf]
          %v1726 = vld [vmem:[%s3 + $0x34] sm:$0xf]
          %v1727 = vld [vmem:[%s3 + $0x38] sm:$0xf]
          %v1728 = vld [vmem:[%s3 + $0x3c] sm:$0xf]
          %v1729 = vld [vmem:[%s3 + $0x40] sm:$0xf]
          %v1730 = vld [vmem:[%s3 + $0x44] sm:$0xf]
          %v1731 = vld [vmem:[%s3 + $0x48] sm:$0xf]
          %v1732 = vld [vmem:[%s3 + $0x4c] sm:$0xf]
          %v1733 = vld [vmem:[%s3 + $0x50] sm:$0xf]
          %v1734 = vld [vmem:[%s3 + $0x54] sm:$0xf]
          %v1735 = vld [vmem:[%s3 + $0x58] sm:$0xf]
          %v1736 = vld [vmem:[%s3 + $0x5c] sm:$0xf]
          %v1737 = vld [vmem:[%s3 + $0x60] sm:$0xf]
          %v1738 = vld [vmem:[%s3 + $0x64] sm:$0xf]
          %v1739 = vld [vmem:[%s3 + $0x68] sm:$0xf]
          %v1740 = vld [vmem:[%s3 + $0x6c] sm:$0xf]
          %v1741 = vld [vmem:[%s3 + $0x70] sm:$0xf]
          %v1742 = vld [vmem:[%s3 + $0x74] sm:$0xf]
          %v1743 = vld [vmem:[%s3 + $0x78] sm:$0xf]
          %v1744 = vld [vmem:[%s3 + $0x7c] sm:$0xf]
          %v1745 = vld [vmem:[%s3 + $0x80] sm:$0xf]
          %v1746 = vld [vmem:[%s3 + $0x84] sm:$0xf]
          %v1747 = vld [vmem:[%s3 + $0x88] sm:$0xf]
          %v1748 = vld [vmem:[%s3 + $0x8c] sm:$0xf]
          %v1749 = vld [vmem:[%s3 + $0x90] sm:$0xf]
          %v1750 = vld [vmem:[%s3 + $0x94] sm:$0xf]
          %v1751 = vld [vmem:[%s3 + $0x98] sm:$0xf]
          %v1752 = vld [vmem:[%s3 + $0x9c] sm:$0xf]
          %v1753 = vld [vmem:[%s3 + $0xa0] sm:$0xf]
          %v1754 = vld [vmem:[%s3 + $0xa4] sm:$0xf]
          %v1755 = vld [vmem:[%s3 + $0xa8] sm:$0xf]
          %v1756 = vld [vmem:[%s3 + $0xac] sm:$0xf]
          %v1757 = vld [vmem:[%s3 + $0xb0] sm:$0xf]
          %v1758 = vld [vmem:[%s3 + $0xb4] sm:$0xf]
          %v1759 = vld [vmem:[%s3 + $0xb8] sm:$0xf]
          %v1760 = vld [vmem:[%s3 + $0xbc] sm:$0xf]
          %v1761 = vld [vmem:[%s3 + $0xc0] sm:$0xf]
          %v1762 = vld [vmem:[%s3 + $0xc4] sm:$0xf]
          %v1763 = vld [vmem:[%s3 + $0xc8] sm:$0xf]
          %v1764 = vld [vmem:[%s3 + $0xcc] sm:$0xf]
          %v1765 = vld [vmem:[%s3 + $0xd0] sm:$0xf]
          %v1766 = vld [vmem:[%s3 + $0xd4] sm:$0xf]
          %v1767 = vld [vmem:[%s3 + $0xd8] sm:$0xf]
          %v1768 = vld [vmem:[%s3 + $0xdc] sm:$0xf]
          %v1769 = vld [vmem:[%s3 + $0xe0] sm:$0xf]
          %v1770 = vld [vmem:[%s3 + $0xe4] sm:$0xf]
          %v1771 = vld [vmem:[%s3 + $0xe8] sm:$0xf]
          %v1772 = vld [vmem:[%s3 + $0xec] sm:$0xf]
          %v1773 = vld [vmem:[%s3 + $0xf0] sm:$0xf]
          %v1774 = vld [vmem:[%s3 + $0xf4] sm:$0xf]
          %v1775 = vld [vmem:[%s3 + $0xf8] sm:$0xf]
          %v1776 = vld [vmem:[%s3 + $0xfc] sm:$0xf]
          %v1777 = vld [vmem:[%s4] sm:$0x1]
          %v1779 = vlaneseq
          %v1780 = vshrl.u32 %v1779, 7
          %v1781 = vsub.s32 0, %v1780
          %v1782 = vrot.slane %v1777, %v1781
          %v1848 = vunpack.c.l.b16 %v1713
          %v1849 = vunpack.c.l.b16 %v1714
          %v1850 = vunpack.c.l.b16 %v1715
          %v1851 = vunpack.c.l.b16 %v1716
          %v1852 = vunpack.c.l.b16 %v1717
          %v1853 = vunpack.c.l.b16 %v1718
          %v1854 = vunpack.c.l.b16 %v1719
          %v1855 = vunpack.c.l.b16 %v1720
          %v1856 = vunpack.c.l.b16 %v1721
          %v1857 = vunpack.c.l.b16 %v1722
          %v1858 = vunpack.c.l.b16 %v1723
          %v1859 = vunpack.c.l.b16 %v1724
          %v1860 = vunpack.c.l.b16 %v1725
          %v1861 = vunpack.c.l.b16 %v1726
          %v1862 = vunpack.c.l.b16 %v1727
          %v1863 = vunpack.c.l.b16 %v1728
          %v1864 = vunpack.c.l.b16 %v1729
          %v1865 = vunpack.c.l.b16 %v1730
          %v1866 = vunpack.c.l.b16 %v1731
          %v1867 = vunpack.c.l.b16 %v1732
          %v1868 = vunpack.c.l.b16 %v1733
          %v1869 = vunpack.c.l.b16 %v1734
          %v1870 = vunpack.c.l.b16 %v1735
          %v1871 = vunpack.c.l.b16 %v1736
          %v1872 = vunpack.c.l.b16 %v1737
          %v1873 = vunpack.c.l.b16 %v1738
          %v1874 = vunpack.c.l.b16 %v1739
          %v1875 = vunpack.c.l.b16 %v1740
          %v1876 = vunpack.c.l.b16 %v1741
          %v1877 = vunpack.c.l.b16 %v1742
          %v1878 = vunpack.c.l.b16 %v1743
          %v1879 = vunpack.c.l.b16 %v1744
          %v1880 = vunpack.c.l.b16 %v1745
          %v1881 = vunpack.c.l.b16 %v1746
          %v1882 = vunpack.c.l.b16 %v1747
          %v1883 = vunpack.c.l.b16 %v1748
          %v1884 = vunpack.c.l.b16 %v1749
          %v1885 = vunpack.c.l.b16 %v1750
          %v1886 = vunpack.c.l.b16 %v1751
          %v1887 = vunpack.c.l.b16 %v1752
          %v1888 = vunpack.c.l.b16 %v1753
          %v1889 = vunpack.c.l.b16 %v1754
          %v1890 = vunpack.c.l.b16 %v1755
          %v1891 = vunpack.c.l.b16 %v1756
          %v1892 = vunpack.c.l.b16 %v1757
          %v1893 = vunpack.c.l.b16 %v1758
          %v1894 = vunpack.c.l.b16 %v1759
          %v1895 = vunpack.c.l.b16 %v1760
          %v1896 = vunpack.c.l.b16 %v1761
          %v1897 = vunpack.c.l.b16 %v1762
          %v1898 = vunpack.c.l.b16 %v1763
          %v1899 = vunpack.c.l.b16 %v1764
          %v1900 = vunpack.c.l.b16 %v1765
          %v1901 = vunpack.c.l.b16 %v1766
          %v1902 = vunpack.c.l.b16 %v1767
          %v1903 = vunpack.c.l.b16 %v1768
          %v1904 = vunpack.c.l.b16 %v1769
          %v1905 = vunpack.c.l.b16 %v1770
          %v1906 = vunpack.c.l.b16 %v1771
          %v1907 = vunpack.c.l.b16 %v1772
          %v1908 = vunpack.c.l.b16 %v1773
          %v1909 = vunpack.c.l.b16 %v1774
          %v1910 = vunpack.c.l.b16 %v1775
          %v1911 = vunpack.c.l.b16 %v1776
          %v1912 = vpack.c.b16 %v1849, %v1848
          %v1913 = vpack.c.b16 %v1851, %v1850
          %v1914 = vpack.c.b16 %v1853, %v1852
          %v1915 = vpack.c.b16 %v1855, %v1854
          %v1916 = vpack.c.b16 %v1857, %v1856
          %v1917 = vpack.c.b16 %v1859, %v1858
          %v1918 = vpack.c.b16 %v1861, %v1860
          %v1919 = vpack.c.b16 %v1863, %v1862
          %v1920 = vpack.c.b16 %v1865, %v1864
          %v1921 = vpack.c.b16 %v1867, %v1866
          %v1922 = vpack.c.b16 %v1869, %v1868
          %v1923 = vpack.c.b16 %v1871, %v1870
          %v1924 = vpack.c.b16 %v1873, %v1872
          %v1925 = vpack.c.b16 %v1875, %v1874
          %v1926 = vpack.c.b16 %v1877, %v1876
          %v1927 = vpack.c.b16 %v1879, %v1878
          %v1928 = vpack.c.b16 %v1881, %v1880
          %v1929 = vpack.c.b16 %v1883, %v1882
          %v1930 = vpack.c.b16 %v1885, %v1884
          %v1931 = vpack.c.b16 %v1887, %v1886
          %v1932 = vpack.c.b16 %v1889, %v1888
          %v1933 = vpack.c.b16 %v1891, %v1890
          %v1934 = vpack.c.b16 %v1893, %v1892
          %v1935 = vpack.c.b16 %v1895, %v1894
          %v1936 = vpack.c.b16 %v1897, %v1896
          %v1937 = vpack.c.b16 %v1899, %v1898
          %v1938 = vpack.c.b16 %v1901, %v1900
          %v1939 = vpack.c.b16 %v1903, %v1902
          %v1940 = vpack.c.b16 %v1905, %v1904
          %v1941 = vpack.c.b16 %v1907, %v1906
          %v1942 = vpack.c.b16 %v1909, %v1908
          %v1943 = vpack.c.b16 %v1911, %v1910
          %1976 = vmatprep.subr.bf16.mxu0 0
          %1977 = vmatpush1.bf16.msra.mxu0 %v1919
          %1978 = vmatprep.subr.bf16.mxu0 0
          %1979 = vmatpush1.bf16.msra.mxu0 %v1918
          %1980 = vmatprep.subr.bf16.mxu0 0
          %1981 = vmatpush1.bf16.msra.mxu0 %v1917
          %1982 = vmatprep.subr.bf16.mxu0 0
          %1983 = vmatpush1.bf16.msra.mxu0 %v1916
          %1984 = vmatprep.subr.bf16.mxu0 0
          %1985 = vmatpush1.bf16.msra.mxu0 %v1915
          %1986 = vmatprep.subr.bf16.mxu0 0
          %1987 = vmatpush1.bf16.msra.mxu0 %v1914
          %1988 = vmatprep.subr.bf16.mxu0 0
          %1989 = vmatpush1.bf16.msra.mxu0 %v1913
          %1990 = vmatprep.subr.bf16.mxu0 0
          %1991 = vmatpush1.bf16.msra.mxu0 %v1912
          %1992 = vmatprep.subr.bf16.mxu0 0
          %1993 = vmatpush2.bf16.msra.mxu0 %v1927
          %1994 = vmatprep.subr.bf16.mxu0 0
          %1995 = vmatpush2.bf16.msra.mxu0 %v1926
          %1996 = vmatprep.subr.bf16.mxu0 0
          %1997 = vmatpush2.bf16.msra.mxu0 %v1925
          %1998 = vmatprep.subr.bf16.mxu0 0
          %1999 = vmatpush2.bf16.msra.mxu0 %v1924
          %2000 = vmatprep.subr.bf16.mxu0 0
          %2001 = vmatpush2.bf16.msra.mxu0 %v1923
          %2002 = vmatprep.subr.bf16.mxu0 0
          %2003 = vmatpush2.bf16.msra.mxu0 %v1922
          %2004 = vmatprep.subr.bf16.mxu0 0
          %2005 = vmatpush2.bf16.msra.mxu0 %v1921
          %2006 = vmatprep.subr.bf16.mxu0 0
          %2007 = vmatpush2.bf16.msra.mxu0 %v1920
          %2008 = vmatprep.mubr.bf16.mxu0 %v1650
          %2009 = vmatmul.mubr.bf16.gmra.mxu0 %v1649
          %v2010 = vpop.f32.mrf.mxu0
          %v2011 = vadd.f32 %v1782, %v2010
          %v2012 = vpop.f32.mrf.mxu0
          %v2013 = vpop.f32.mrf.mxu0
          %v2014 = vadd.f32 %v1782, %v2013
          %v2015 = vpop.f32.mrf.mxu0
          %2016 = vmatprep.mubr.bf16.mxu0 %v1654
          %2017 = vmatmul.mubr.bf16.gmra.mxu0 %v1653
          %v2018 = vpop.f32.mrf.mxu0
          %v2019 = vadd.f32 %v1782, %v2018
          %v2020 = vpop.f32.mrf.mxu0
          %v2021 = vpop.f32.mrf.mxu0
          %v2022 = vadd.f32 %v1782, %v2021
          %v2023 = vpop.f32.mrf.mxu0
          %2024 = vmatprep.mubr.bf16.mxu0 %v1658
          %2025 = vmatmul.mubr.bf16.gmra.mxu0 %v1657
          %v2026 = vpop.f32.mrf.mxu0
          %v2027 = vadd.f32 %v1782, %v2026
          %v2028 = vpop.f32.mrf.mxu0
          %v2029 = vpop.f32.mrf.mxu0
          %v2030 = vadd.f32 %v1782, %v2029
          %v2031 = vpop.f32.mrf.mxu0
          %2032 = vmatprep.mubr.bf16.mxu0 %v1662
          %2033 = vmatmul.mubr.bf16.gmra.mxu0 %v1661
          %v2034 = vpop.f32.mrf.mxu0
          %v2035 = vadd.f32 %v1782, %v2034
          %v2036 = vpop.f32.mrf.mxu0
          %v2037 = vpop.f32.mrf.mxu0
          %v2038 = vadd.f32 %v1782, %v2037
          %v2039 = vpop.f32.mrf.mxu0
          %2040 = vmatprep.mubr.bf16.mxu0 %v1666
          %2041 = vmatmul.mubr.bf16.gmra.mxu0 %v1665
          %v2042 = vpop.f32.mrf.mxu0
          %v2043 = vadd.f32 %v1782, %v2042
          %v2044 = vpop.f32.mrf.mxu0
          %v2045 = vpop.f32.mrf.mxu0
          %v2046 = vadd.f32 %v1782, %v2045
          %v2047 = vpop.f32.mrf.mxu0
          %2048 = vmatprep.mubr.bf16.mxu0 %v1670
          %2049 = vmatmul.mubr.bf16.gmra.mxu0 %v1669
          %v2050 = vpop.f32.mrf.mxu0
          %v2051 = vadd.f32 %v1782, %v2050
          %v2052 = vpop.f32.mrf.mxu0
          %v2053 = vpop.f32.mrf.mxu0
          %v2054 = vadd.f32 %v1782, %v2053
          %v2055 = vpop.f32.mrf.mxu0
          %2056 = vmatprep.mubr.bf16.mxu0 %v1674
          %2057 = vmatmul.mubr.bf16.gmra.mxu0 %v1673
          %v2058 = vpop.f32.mrf.mxu0
          %v2059 = vadd.f32 %v1782, %v2058
          %v2060 = vpop.f32.mrf.mxu0
          %v2061 = vpop.f32.mrf.mxu0
          %v2062 = vadd.f32 %v1782, %v2061
          %v2063 = vpop.f32.mrf.mxu0
          %2064 = vmatprep.mubr.bf16.mxu0 %v1678
          %2065 = vmatmul.mubr.bf16.gmra.mxu0 %v1677
          %v2066 = vpop.f32.mrf.mxu0
          %v2067 = vadd.f32 %v1782, %v2066
          %v2068 = vpop.f32.mrf.mxu0
          %v2069 = vpop.f32.mrf.mxu0
          %v2070 = vadd.f32 %v1782, %v2069
          %v2071 = vpop.f32.mrf.mxu0
          %2072 = vmatprep.mubr.bf16.mxu0 %v1682
          %2073 = vmatmul.mubr.bf16.gmra.mxu0 %v1681
          %v2074 = vpop.f32.mrf.mxu0
          %v2075 = vadd.f32 %v1782, %v2074
          %v2076 = vpop.f32.mrf.mxu0
          %v2077 = vpop.f32.mrf.mxu0
          %v2078 = vadd.f32 %v1782, %v2077
          %v2079 = vpop.f32.mrf.mxu0
          %2080 = vmatprep.mubr.bf16.mxu0 %v1686
          %2081 = vmatmul.mubr.bf16.gmra.mxu0 %v1685
          %v2082 = vpop.f32.mrf.mxu0
          %v2083 = vadd.f32 %v1782, %v2082
          %v2084 = vpop.f32.mrf.mxu0
          %v2085 = vpop.f32.mrf.mxu0
          %v2086 = vadd.f32 %v1782, %v2085
          %v2087 = vpop.f32.mrf.mxu0
          %2088 = vmatprep.mubr.bf16.mxu0 %v1690
          %2089 = vmatmul.mubr.bf16.gmra.mxu0 %v1689
          %v2090 = vpop.f32.mrf.mxu0
          %v2091 = vadd.f32 %v1782, %v2090
          %v2092 = vpop.f32.mrf.mxu0
          %v2093 = vpop.f32.mrf.mxu0
          %v2094 = vadd.f32 %v1782, %v2093
          %v2095 = vpop.f32.mrf.mxu0
          %2096 = vmatprep.mubr.bf16.mxu0 %v1694
          %2097 = vmatmul.mubr.bf16.gmra.mxu0 %v1693
          %v2098 = vpop.f32.mrf.mxu0
          %v2099 = vadd.f32 %v1782, %v2098
          %v2100 = vpop.f32.mrf.mxu0
          %v2101 = vpop.f32.mrf.mxu0
          %v2102 = vadd.f32 %v1782, %v2101
          %v2103 = vpop.f32.mrf.mxu0
          %2104 = vmatprep.mubr.bf16.mxu0 %v1698
          %2105 = vmatmul.mubr.bf16.gmra.mxu0 %v1697
          %v2106 = vpop.f32.mrf.mxu0
          %v2107 = vadd.f32 %v1782, %v2106
          %v2108 = vpop.f32.mrf.mxu0
          %v2109 = vpop.f32.mrf.mxu0
          %v2110 = vadd.f32 %v1782, %v2109
          %v2111 = vpop.f32.mrf.mxu0
          %2112 = vmatprep.mubr.bf16.mxu0 %v1702
          %2113 = vmatmul.mubr.bf16.gmra.mxu0 %v1701
          %v2114 = vpop.f32.mrf.mxu0
          %v2115 = vadd.f32 %v1782, %v2114
          %v2116 = vpop.f32.mrf.mxu0
          %v2117 = vpop.f32.mrf.mxu0
          %v2118 = vadd.f32 %v1782, %v2117
          %v2119 = vpop.f32.mrf.mxu0
          %2120 = vmatprep.mubr.bf16.mxu0 %v1706
          %2121 = vmatmul.mubr.bf16.gmra.mxu0 %v1705
          %v2122 = vpop.f32.mrf.mxu0
          %v2123 = vadd.f32 %v1782, %v2122
          %v2124 = vpop.f32.mrf.mxu0
          %v2125 = vpop.f32.mrf.mxu0
          %v2126 = vadd.f32 %v1782, %v2125
          %v2127 = vpop.f32.mrf.mxu0
          %2128 = vmatprep.mubr.bf16.mxu0 %v1710
          %2129 = vmatmul.mubr.bf16.gmra.mxu0 %v1709
          %v2130 = vpop.f32.mrf.mxu0
          %v2131 = vadd.f32 %v1782, %v2130
          %v2132 = vpop.f32.mrf.mxu0
          %v2133 = vpop.f32.mrf.mxu0
          %v2134 = vadd.f32 %v1782, %v2133
          %v2135 = vpop.f32.mrf.mxu0
          %2136 = vdwg.mxu0
          %2137 = vmatprep.subr.bf16.mxu0 0
          %2138 = vmatpush1.bf16.msra.mxu0 %v1935
          %2139 = vmatprep.subr.bf16.mxu0 0
          %2140 = vmatpush1.bf16.msra.mxu0 %v1934
          %2141 = vmatprep.subr.bf16.mxu0 0
          %2142 = vmatpush1.bf16.msra.mxu0 %v1933
          %2143 = vmatprep.subr.bf16.mxu0 0
          %2144 = vmatpush1.bf16.msra.mxu0 %v1932
          %2145 = vmatprep.subr.bf16.mxu0 0
          %2146 = vmatpush1.bf16.msra.mxu0 %v1931
          %2147 = vmatprep.subr.bf16.mxu0 0
          %2148 = vmatpush1.bf16.msra.mxu0 %v1930
          %2149 = vmatprep.subr.bf16.mxu0 0
          %2150 = vmatpush1.bf16.msra.mxu0 %v1929
          %2151 = vmatprep.subr.bf16.mxu0 0
          %2152 = vmatpush1.bf16.msra.mxu0 %v1928
          %2153 = vmatprep.subr.bf16.mxu0 0
          %2154 = vmatpush2.bf16.msra.mxu0 %v1943
          %2155 = vmatprep.subr.bf16.mxu0 0
          %2156 = vmatpush2.bf16.msra.mxu0 %v1942
          %2157 = vmatprep.subr.bf16.mxu0 0
          %2158 = vmatpush2.bf16.msra.mxu0 %v1941
          %2159 = vmatprep.subr.bf16.mxu0 0
          %2160 = vmatpush2.bf16.msra.mxu0 %v1940
          %2161 = vmatprep.subr.bf16.mxu0 0
          %2162 = vmatpush2.bf16.msra.mxu0 %v1939
          %2163 = vmatprep.subr.bf16.mxu0 0
          %2164 = vmatpush2.bf16.msra.mxu0 %v1938
          %2165 = vmatprep.subr.bf16.mxu0 0
          %2166 = vmatpush2.bf16.msra.mxu0 %v1937
          %2167 = vmatprep.subr.bf16.mxu0 0
          %2168 = vmatpush2.bf16.msra.mxu0 %v1936
          %2169 = vmatprep.mubr.bf16.mxu0 %v1652
          %2170 = vmatmul.mubr.bf16.gmra.mxu0 %v1651
          %v2171 = vpop.f32.mrf.mxu0
          %v2172 = vadd.f32 %v2011, %v2171
          %v2173 = vpop.f32.mrf.mxu0
          %v2174 = vpop.f32.mrf.mxu0
          %v2175 = vadd.f32 %v2014, %v2174
          %v2176 = vpop.f32.mrf.mxu0
          %2177 = vmatprep.mubr.bf16.mxu0 %v1656
          %2178 = vmatmul.mubr.bf16.gmra.mxu0 %v1655
          %v2179 = vpop.f32.mrf.mxu0
          %v2180 = vadd.f32 %v2019, %v2179
          %v2181 = vpop.f32.mrf.mxu0
          %v2182 = vpop.f32.mrf.mxu0
          %v2183 = vadd.f32 %v2022, %v2182
          %v2184 = vpop.f32.mrf.mxu0
          %2185 = vmatprep.mubr.bf16.mxu0 %v1660
          %2186 = vmatmul.mubr.bf16.gmra.mxu0 %v1659
          %v2187 = vpop.f32.mrf.mxu0
          %v2188 = vadd.f32 %v2027, %v2187
          %v2189 = vpop.f32.mrf.mxu0
          %v2190 = vpop.f32.mrf.mxu0
          %v2191 = vadd.f32 %v2030, %v2190
          %v2192 = vpop.f32.mrf.mxu0
          %2193 = vmatprep.mubr.bf16.mxu0 %v1664
          %2194 = vmatmul.mubr.bf16.gmra.mxu0 %v1663
          %v2195 = vpop.f32.mrf.mxu0
          %v2196 = vadd.f32 %v2035, %v2195
          %v2197 = vpop.f32.mrf.mxu0
          %v2198 = vpop.f32.mrf.mxu0
          %v2199 = vadd.f32 %v2038, %v2198
          %v2200 = vpop.f32.mrf.mxu0
          %2201 = vmatprep.mubr.bf16.mxu0 %v1668
          %2202 = vmatmul.mubr.bf16.gmra.mxu0 %v1667
          %v2203 = vpop.f32.mrf.mxu0
          %v2204 = vadd.f32 %v2043, %v2203
          %v2205 = vpop.f32.mrf.mxu0
          %v2206 = vpop.f32.mrf.mxu0
          %v2207 = vadd.f32 %v2046, %v2206
          %v2208 = vpop.f32.mrf.mxu0
          %2209 = vmatprep.mubr.bf16.mxu0 %v1672
          %2210 = vmatmul.mubr.bf16.gmra.mxu0 %v1671
          %v2211 = vpop.f32.mrf.mxu0
          %v2212 = vadd.f32 %v2051, %v2211
          %v2213 = vpop.f32.mrf.mxu0
          %v2214 = vpop.f32.mrf.mxu0
          %v2215 = vadd.f32 %v2054, %v2214
          %v2216 = vpop.f32.mrf.mxu0
          %2217 = vmatprep.mubr.bf16.mxu0 %v1676
          %2218 = vmatmul.mubr.bf16.gmra.mxu0 %v1675
          %v2219 = vpop.f32.mrf.mxu0
          %v2220 = vadd.f32 %v2059, %v2219
          %v2221 = vpop.f32.mrf.mxu0
          %v2222 = vpop.f32.mrf.mxu0
          %v2223 = vadd.f32 %v2062, %v2222
          %v2224 = vpop.f32.mrf.mxu0
          %2225 = vmatprep.mubr.bf16.mxu0 %v1680
          %2226 = vmatmul.mubr.bf16.gmra.mxu0 %v1679
          %v2227 = vpop.f32.mrf.mxu0
          %v2228 = vadd.f32 %v2067, %v2227
          %v2229 = vpop.f32.mrf.mxu0
          %v2230 = vpop.f32.mrf.mxu0
          %v2231 = vadd.f32 %v2070, %v2230
          %v2232 = vpop.f32.mrf.mxu0
          %2233 = vmatprep.mubr.bf16.mxu0 %v1684
          %2234 = vmatmul.mubr.bf16.gmra.mxu0 %v1683
          %v2235 = vpop.f32.mrf.mxu0
          %v2236 = vadd.f32 %v2075, %v2235
          %v2237 = vpop.f32.mrf.mxu0
          %v2238 = vpop.f32.mrf.mxu0
          %v2239 = vadd.f32 %v2078, %v2238
          %v2240 = vpop.f32.mrf.mxu0
          %2241 = vmatprep.mubr.bf16.mxu0 %v1688
          %2242 = vmatmul.mubr.bf16.gmra.mxu0 %v1687
          %v2243 = vpop.f32.mrf.mxu0
          %v2244 = vadd.f32 %v2083, %v2243
          %v2245 = vpop.f32.mrf.mxu0
          %v2246 = vpop.f32.mrf.mxu0
          %v2247 = vadd.f32 %v2086, %v2246
          %v2248 = vpop.f32.mrf.mxu0
          %2249 = vmatprep.mubr.bf16.mxu0 %v1692
          %2250 = vmatmul.mubr.bf16.gmra.mxu0 %v1691
          %v2251 = vpop.f32.mrf.mxu0
          %v2252 = vadd.f32 %v2091, %v2251
          %v2253 = vpop.f32.mrf.mxu0
          %v2254 = vpop.f32.mrf.mxu0
          %v2255 = vadd.f32 %v2094, %v2254
          %v2256 = vpop.f32.mrf.mxu0
          %2257 = vmatprep.mubr.bf16.mxu0 %v1696
          %2258 = vmatmul.mubr.bf16.gmra.mxu0 %v1695
          %v2259 = vpop.f32.mrf.mxu0
          %v2260 = vadd.f32 %v2099, %v2259
          %v2261 = vpop.f32.mrf.mxu0
          %v2262 = vpop.f32.mrf.mxu0
          %v2263 = vadd.f32 %v2102, %v2262
          %v2264 = vpop.f32.mrf.mxu0
          %2265 = vmatprep.mubr.bf16.mxu0 %v1700
          %2266 = vmatmul.mubr.bf16.gmra.mxu0 %v1699
          %v2267 = vpop.f32.mrf.mxu0
          %v2268 = vadd.f32 %v2107, %v2267
          %v2269 = vpop.f32.mrf.mxu0
          %v2270 = vpop.f32.mrf.mxu0
          %v2271 = vadd.f32 %v2110, %v2270
          %v2272 = vpop.f32.mrf.mxu0
          %2273 = vmatprep.mubr.bf16.mxu0 %v1704
          %2274 = vmatmul.mubr.bf16.gmra.mxu0 %v1703
          %v2275 = vpop.f32.mrf.mxu0
          %v2276 = vadd.f32 %v2115, %v2275
          %v2277 = vpop.f32.mrf.mxu0
          %v2278 = vpop.f32.mrf.mxu0
          %v2279 = vadd.f32 %v2118, %v2278
          %v2280 = vpop.f32.mrf.mxu0
          %2281 = vmatprep.mubr.bf16.mxu0 %v1708
          %2282 = vmatmul.mubr.bf16.gmra.mxu0 %v1707
          %v2283 = vpop.f32.mrf.mxu0
          %v2284 = vadd.f32 %v2123, %v2283
          %v2285 = vpop.f32.mrf.mxu0
          %v2286 = vpop.f32.mrf.mxu0
          %v2287 = vadd.f32 %v2126, %v2286
          %v2288 = vpop.f32.mrf.mxu0
          %2289 = vmatprep.mubr.bf16.mxu0 %v1712
          %2290 = vmatmul.mubr.bf16.gmra.mxu0 %v1711
          %v2291 = vpop.f32.mrf.mxu0
          %v2292 = vadd.f32 %v2131, %v2291
          %v2293 = vpop.f32.mrf.mxu0
          %v2294 = vpop.f32.mrf.mxu0
          %v2295 = vadd.f32 %v2134, %v2294
          %v2296 = vpop.f32.mrf.mxu0
          %2297 = vdwg.mxu0
          %2298 = vst [vmem:[%s453] sm:$0xff] %v2172
          %2299 = vst [vmem:[%s453 + $0x8] sm:$0xff] %v2175
          %2300 = vst [vmem:[%s453 + $0x10] sm:$0xff] %v2180
          %2301 = vst [vmem:[%s453 + $0x18] sm:$0xff] %v2183
          %2302 = vst [vmem:[%s453 + $0x20] sm:$0xff] %v2188
          %2303 = vst [vmem:[%s453 + $0x28] sm:$0xff] %v2191
          %2304 = vst [vmem:[%s453 + $0x30] sm:$0xff] %v2196
          %2305 = vst [vmem:[%s453 + $0x38] sm:$0xff] %v2199
          %2306 = vst [vmem:[%s453 + $0x40] sm:$0xff] %v2204
          %2307 = vst [vmem:[%s453 + $0x48] sm:$0xff] %v2207
          %2308 = vst [vmem:[%s453 + $0x50] sm:$0xff] %v2212
          %2309 = vst [vmem:[%s453 + $0x58] sm:$0xff] %v2215
          %2310 = vst [vmem:[%s453 + $0x60] sm:$0xff] %v2220
          %2311 = vst [vmem:[%s453 + $0x68] sm:$0xff] %v2223
          %2312 = vst [vmem:[%s453 + $0x70] sm:$0xff] %v2228
          %2313 = vst [vmem:[%s453 + $0x78] sm:$0xff] %v2231
          %2314 = vst [vmem:[%s453 + $0x80] sm:$0xff] %v2236
          %2315 = vst [vmem:[%s453 + $0x88] sm:$0xff] %v2239
          %2316 = vst [vmem:[%s453 + $0x90] sm:$0xff] %v2244
          %2317 = vst [vmem:[%s453 + $0x98] sm:$0xff] %v2247
          %2318 = vst [vmem:[%s453 + $0xa0] sm:$0xff] %v2252
          %2319 = vst [vmem:[%s453 + $0xa8] sm:$0xff] %v2255
          %2320 = vst [vmem:[%s453 + $0xb0] sm:$0xff] %v2260
          %2321 = vst [vmem:[%s453 + $0xb8] sm:$0xff] %v2263
          %2322 = vst [vmem:[%s453 + $0xc0] sm:$0xff] %v2268
          %2323 = vst [vmem:[%s453 + $0xc8] sm:$0xff] %v2271
          %2324 = vst [vmem:[%s453 + $0xd0] sm:$0xff] %v2276
          %2325 = vst [vmem:[%s453 + $0xd8] sm:$0xff] %v2279
          %2326 = vst [vmem:[%s453 + $0xe0] sm:$0xff] %v2284
          %2327 = vst [vmem:[%s453 + $0xe8] sm:$0xff] %v2287
          %2328 = vst [vmem:[%s453 + $0xf0] sm:$0xff] %v2292
          %2329 = vst [vmem:[%s453 + $0xf8] sm:$0xff] %v2295
        $region86: #{node_classifier_forward.3} parent=73 // pred_fallthru
          _
        %s2330 = smul.u32 32, %s20
        %p2331 = scmp.lt.s32.totalorder %s2330, 63
        %s2332 = scalar_select %p2331, %s2330, 63
        %s2333 = smul.addr %s2332, 8
        %s2334 = scalar_lea.vmem %s5, %s2333
        // Predicated region
        $region87: #{node_classifier_forward.3} parent=73 // pred_check
          %p2335 = pneg %p168
        $region88: #{node_classifier_forward.3} parent=73 // pred_check_branch
          %2337 = sbr.rel (%p2335) target = $region90
        $region89: #{node_classifier_forward.3} parent=73 // pred_region
          %s2338 = smul.u32 32, %s20
        $region90: #{node_classifier_forward.3} parent=73 // pred_fallthru
          _
      $region74: #{node_classifier_forward.3} parent=5 // pred_fallthru
        _
      %p2339 = scmp.le.s32.totalorder 2, %s11
      // Predicated region
      $region91: #{node_classifier_forward.3} parent=5 // pred_check
        %p2340 = pneg %p2339
      $region92: #{node_classifier_forward.3} parent=5 // pred_check_branch
        %2342 = sbr.rel (%p2340) target = $region94
      $region93: #{node_classifier_forward.3} parent=5 // pred_region
        %s2343 = ssub.s32 %s11, 2
        // Predicated region
        $region95: #{node_classifier_forward.3} parent=93 // pred_check
          %p2344 = pneg %p174
        $region96: #{node_classifier_forward.3} parent=93 // pred_check_branch
          %2346 = sbr.rel (%p2344) target = $region98
        $region97: #{node_classifier_forward.3} parent=93 // pred_region
          %s2347 = smul.u32 32, %s22
          %p2348 = scmp.lt.s32.totalorder %s2347, 63
          %s2349 = scalar_select %p2348, %s2347, 63
          %s2350 = smul.addr %s2349, 8
          %s2351 = scalar_lea.vmem %s5, %s2350
        $region98: #{node_classifier_forward.3} parent=93 // pred_fallthru
          _
      $region94: #{node_classifier_forward.3} parent=5 // pred_fallthru
        _
    $region6: #{node_classifier_forward.3} parent=1 // loop_footer
      %s15 = sadd.s32 1, %s11
    $region7: #{node_classifier_forward.3} parent=1 // loop_footer_branch
      %10 = sbr.rel target = $region3
    $region8: #{node_classifier_forward.3} parent=1 // loop_exit
      _

</llo_original>
